<compile_context>
chip_gen: v7x
topology: tpu7x:2x2x1
jax: 0.10.0
libtpu: 0.0.40
codegen_flags: <defaults>
</compile_context>

<pallas_src>
import functools
import math

import jax
import jax.numpy as jnp
from jax import lax
from jax.experimental import pallas as pl
from jax.experimental.pallas import tpu as pltpu


def fusion_kernel(q_ref, k_ref, v_ref,
                  wq_ref, wk_ref, wv_ref,
                  bq_ref, bk_ref, bv_ref,
                  o_ref, *, precision):
    # q/k/v_ref : (Bb, L, D)      one batch block each
    # w*_ref    : (D, D)          torch W.T (q weight pre-scaled by 1/sqrt(D))
    # b*_ref    : (1, D)          bias      (q bias pre-scaled by 1/sqrt(D))
    # o_ref     : (Bb, L, D)
    Bb, L, D = q_ref.shape

    def project(x_ref, w_ref, b_ref):
        # (Bb, L) -> Bb*L is a free sublane merge because L % 8 == 0 (guarded
        # in the wrapper), so this 2-D MXU matmul has no hidden VMEM copy.
        x2d = x_ref[...].reshape(Bb * L, D)
        y = jnp.dot(x2d, w_ref[...],
                    preferred_element_type=jnp.float32,
                    precision=precision) + b_ref[...]
        return y.reshape(Bb, L, D)

    qp = project(q_ref, wq_ref, bq_ref)   # already scaled by 1/sqrt(D)
    kp = project(k_ref, wk_ref, bk_ref)
    vp = project(v_ref, wv_ref, bv_ref)

    # Scores (Bb, L, L): contract the feature axes directly (einsum bqd,bkd->bqk).
    # A transposed-RHS contraction may cost one XLU transpose per tile; accepted
    # knowingly at these sizes.
    s = lax.dot_general(qp, kp, (((2,), (2,)), ((0,), (0,))),
                        preferred_element_type=jnp.float32,
                        precision=precision)

    # Softmax over the key axis (f32 throughout).
    m = jnp.max(s, axis=-1, keepdims=True)
    p = jnp.exp(s - m)
    denom = jnp.sum(p, axis=-1, keepdims=True)
    r = pl.reciprocal(denom, approx=True)      # EUP slot (nearly free)
    r = r * (2.0 - denom * r)                  # one Newton step -> f32 accuracy
    p = p * r

    # Output (Bb, L, D): einsum bqk,bkd->bqd.
    o = lax.dot_general(p, vp, (((2,), (1,)), ((0,), (0,))),
                        preferred_element_type=jnp.float32,
                        precision=precision)
    o_ref[...] = o.astype(o_ref.dtype)


def fusion_module2(q, k, v, params, *, num_batch_blocks=1,
                   mxu_precision=lax.Precision.HIGHEST):
    """q, k, v: [B, L, D] float32.  params: torch-layout weights/biases.

    num_batch_blocks=1 collapses the grid (single pipeline step; best on
    single-TC v5e/v6e at small shapes); pass 2 on v7x so the "parallel" batch
    axis can be sharded across both TensorCores.
    """
    B, L, D = q.shape
    assert B % num_batch_blocks == 0
    # Guard the in-kernel (Bb, L, D) <-> (Bb*L, D) reshape: free sublane merge
    # only when L is a multiple of the 8-row sublane tile.
    assert L % 8 == 0, "L must be a multiple of 8 for the free sublane merge"
    Bb = B // num_batch_blocks
    scale = 1.0 / math.sqrt(D)     # SDPA default scale, folded into W_q / b_q

    dt = q.dtype
    wq = (params["wq"].T * scale).astype(dt)
    wk = params["wk"].T.astype(dt)
    wv = params["wv"].T.astype(dt)
    bq = (params["bq"] * scale).reshape(1, D).astype(dt)
    bk = params["bk"].reshape(1, D).astype(dt)
    bv = params["bv"].reshape(1, D).astype(dt)

    # VMEM budget from the actual block sizes (double-buffered I/O blocks +
    # f32 intermediates).  Only raise the limit if it would exceed the most
    # conservative scoped default (16 MiB on v5e).
    itemsize = jnp.dtype(dt).itemsize
    io_bytes = (3 * Bb * L * D + 3 * D * D + 3 * D + Bb * L * D) * itemsize * 2
    interm_bytes = (4 * Bb * L * D + 2 * Bb * L * L) * 4
    vmem_est = io_bytes + interm_bytes
    vmem_limit = None
    if vmem_est > (16 << 20):
        vmem_limit = min(int(vmem_est * 1.5), 100 << 20)

    kernel = functools.partial(fusion_kernel, precision=mxu_precision)

    batch_map = lambda g: (g, 0, 0)
    const_map = lambda g: (0, 0)

    return pl.pallas_call(
        kernel,
        out_shape=jax.ShapeDtypeStruct((B, L, D), dt),
        grid_spec=pltpu.PrefetchScalarGridSpec(
            num_scalar_prefetch=0,
            grid=(num_batch_blocks,),
            in_specs=[
                pl.BlockSpec((Bb, L, D), batch_map),    # q
                pl.BlockSpec((Bb, L, D), batch_map),    # k
                pl.BlockSpec((Bb, L, D), batch_map),    # v
                pl.BlockSpec((D, D), const_map),        # wq (scaled)
                pl.BlockSpec((D, D), const_map),        # wk
                pl.BlockSpec((D, D), const_map),        # wv
                pl.BlockSpec((1, D), const_map),        # bq (scaled)
                pl.BlockSpec((1, D), const_map),        # bk
                pl.BlockSpec((1, D), const_map),        # bv
            ],
            out_specs=pl.BlockSpec((Bb, L, D), batch_map),
        ),
        compiler_params=pltpu.CompilerParams(
            dimension_semantics=("parallel",),
            vmem_limit_bytes=vmem_limit),
    )(q, k, v, wq, wk, wv, bq, bk, bv)


def _reference(q, k, v, params):
    """Pure-JAX reference mirroring the PyTorch forward (eval mode), f32."""
    D = q.shape[-1]
    hp = lax.Precision.HIGHEST
    qp = jnp.einsum("bld,ed->ble", q, params["wq"], precision=hp) + params["bq"]
    kp = jnp.einsum("bld,ed->ble", k, params["wk"], precision=hp) + params["bk"]
    vp = jnp.einsum("bld,ed->ble", v, params["wv"], precision=hp) + params["bv"]
    s = jnp.einsum("bqd,bkd->bqk", qp, kp, precision=hp) / math.sqrt(D)
    a = jax.nn.softmax(s, axis=-1)
    return jnp.einsum("bqk,bkd->bqd", a, vp, precision=hp)


if __name__ == "__main__":
    B, L, D = 2, 8, 32   # small d_model consistent with nn.Linear(d_model, d_model)

    key = jax.random.PRNGKey(0)
    keys = jax.random.split(key, 9)
    bound = 1.0 / math.sqrt(D)   # torch.nn.Linear default init range

    params = {
        "wq": jax.random.uniform(keys[0], (D, D), jnp.float32, -bound, bound),
        "wk": jax.random.uniform(keys[1], (D, D), jnp.float32, -bound, bound),
        "wv": jax.random.uniform(keys[2], (D, D), jnp.float32, -bound, bound),
        "bq": jax.random.uniform(keys[3], (D,), jnp.float32, -bound, bound),
        "bk": jax.random.uniform(keys[4], (D,), jnp.float32, -bound, bound),
        "bv": jax.random.uniform(keys[5], (D,), jnp.float32, -bound, bound),
    }

    q = jax.random.normal(keys[6], (B, L, D), jnp.float32)
    k = jax.random.normal(keys[7], (B, L, D), jnp.float32)
    v = jax.random.normal(keys[8], (B, L, D), jnp.float32)

    ref = jax.block_until_ready(_reference(q, k, v, params))

    # Preferred path: fp32 contract precision on the MXU (matches the PyTorch
    # f32 semantics).  If this Mosaic build rejects HIGHEST, fall back to the
    # default MXU precision with a correspondingly looser tolerance.
    used_precision = lax.Precision.HIGHEST
    tol = 1e-4
    try:
        out = jax.block_until_ready(
            fusion_module2(q, k, v, params, mxu_precision=used_precision))
    except Exception:
        used_precision = None
        tol = 2e-2
        out = jax.block_until_ready(
            fusion_module2(q, k, v, params, mxu_precision=used_precision))

    assert out.shape == (B, L, D)
    assert jnp.allclose(out, ref, atol=tol, rtol=tol), \
        "mismatch vs reference (collapsed grid)"

    # v7x-friendly path: batch axis kept as a 2-step parallel grid dimension.
    out2 = jax.block_until_ready(
        fusion_module2(q, k, v, params, num_batch_blocks=2,
                       mxu_precision=used_precision))
    assert jnp.allclose(out2, ref, atol=tol, rtol=tol), \
        "mismatch vs reference (parallel grid)"

    print("KERNEL_OK")
</pallas_src>

<mosaic_0001>
module attributes {stable_mosaic.version = 11 : i64} {
  func.func @fusion_kernel(%arg0: i32, %arg1: memref<2x8x32xf32, #tpu.memory_space<vmem>>, %arg2: memref<2x8x32xf32, #tpu.memory_space<vmem>>, %arg3: memref<2x8x32xf32, #tpu.memory_space<vmem>>, %arg4: memref<32x32xf32, #tpu.memory_space<vmem>>, %arg5: memref<32x32xf32, #tpu.memory_space<vmem>>, %arg6: memref<32x32xf32, #tpu.memory_space<vmem>>, %arg7: memref<1x32xf32, #tpu.memory_space<vmem>>, %arg8: memref<1x32xf32, #tpu.memory_space<vmem>>, %arg9: memref<1x32xf32, #tpu.memory_space<vmem>>, %arg10: memref<2x8x32xf32, #tpu.memory_space<vmem>>) attributes {dimension_semantics = [#tpu.dimension_semantics<parallel>], iteration_bounds = array<i64: 1>, scalar_prefetch = 0 : i64, scratch_operands = 0 : i64, tpu.core_type = #tpu.core_type<tc>, window_params = [{transform_indices = @transform_0, window_bounds = array<i64: 2, 8, 32>}, {transform_indices = @transform_1, window_bounds = array<i64: 2, 8, 32>}, {transform_indices = @transform_2, window_bounds = array<i64: 2, 8, 32>}, {pipeline_mode = #tpu.pipeline_mode<synchronous>, transform_indices = @transform_3, window_bounds = array<i64: 32, 32>}, {pipeline_mode = #tpu.pipeline_mode<synchronous>, transform_indices = @transform_4, window_bounds = array<i64: 32, 32>}, {pipeline_mode = #tpu.pipeline_mode<synchronous>, transform_indices = @transform_5, window_bounds = array<i64: 32, 32>}, {pipeline_mode = #tpu.pipeline_mode<synchronous>, transform_indices = @transform_6, window_bounds = array<i64: 1, 32>}, {pipeline_mode = #tpu.pipeline_mode<synchronous>, transform_indices = @transform_7, window_bounds = array<i64: 1, 32>}, {pipeline_mode = #tpu.pipeline_mode<synchronous>, transform_indices = @transform_8, window_bounds = array<i64: 1, 32>}, {transform_indices = @transform_9, window_bounds = array<i64: 2, 8, 32>}]} {
    %c0 = arith.constant 0 : index
    %c0_0 = arith.constant 0 : index
    %c0_1 = arith.constant 0 : index
    %0 = vector.load %arg1[%c0, %c0_0, %c0_1] : memref<2x8x32xf32, #tpu.memory_space<vmem>>, vector<2x8x32xf32>
    %1 = vector.shape_cast %0 : vector<2x8x32xf32> to vector<16x32xf32>
    %c0_2 = arith.constant 0 : index
    %c0_3 = arith.constant 0 : index
    %2 = vector.load %arg4[%c0_2, %c0_3] : memref<32x32xf32, #tpu.memory_space<vmem>>, vector<32x32xf32>
    %cst = arith.constant dense<0.000000e+00> : vector<16x32xf32>
    %3 = tpu.matmul %1, %2, %cst {dimension_numbers = #tpu.dot_dimension_numbers<[1], [0], [0], [1], [0, 0, 1, 1], [], []>, precision = #tpu.contract_precision<fp32>} : vector<16x32xf32>, vector<32x32xf32>, vector<16x32xf32> -> vector<16x32xf32>
    %c0_4 = arith.constant 0 : index
    %c0_5 = arith.constant 0 : index
    %4 = vector.load %arg7[%c0_4, %c0_5] : memref<1x32xf32, #tpu.memory_space<vmem>>, vector<1x32xf32>
    %5 = vector.broadcast %4 : vector<1x32xf32> to vector<16x32xf32>
    %6 = arith.addf %3, %5 : vector<16x32xf32>
    %7 = vector.shape_cast %6 : vector<16x32xf32> to vector<2x8x32xf32>
    %c0_6 = arith.constant 0 : index
    %c0_7 = arith.constant 0 : index
    %c0_8 = arith.constant 0 : index
    %8 = vector.load %arg2[%c0_6, %c0_7, %c0_8] : memref<2x8x32xf32, #tpu.memory_space<vmem>>, vector<2x8x32xf32>
    %9 = vector.shape_cast %8 : vector<2x8x32xf32> to vector<16x32xf32>
    %c0_9 = arith.constant 0 : index
    %c0_10 = arith.constant 0 : index
    %10 = vector.load %arg5[%c0_9, %c0_10] : memref<32x32xf32, #tpu.memory_space<vmem>>, vector<32x32xf32>
    %cst_11 = arith.constant dense<0.000000e+00> : vector<16x32xf32>
    %11 = tpu.matmul %9, %10, %cst_11 {dimension_numbers = #tpu.dot_dimension_numbers<[1], [0], [0], [1], [0, 0, 1, 1], [], []>, precision = #tpu.contract_precision<fp32>} : vector<16x32xf32>, vector<32x32xf32>, vector<16x32xf32> -> vector<16x32xf32>
    %c0_12 = arith.constant 0 : index
    %c0_13 = arith.constant 0 : index
    %12 = vector.load %arg8[%c0_12, %c0_13] : memref<1x32xf32, #tpu.memory_space<vmem>>, vector<1x32xf32>
    %13 = vector.broadcast %12 : vector<1x32xf32> to vector<16x32xf32>
    %14 = arith.addf %11, %13 : vector<16x32xf32>
    %15 = vector.shape_cast %14 : vector<16x32xf32> to vector<2x8x32xf32>
    %c0_14 = arith.constant 0 : index
    %c0_15 = arith.constant 0 : index
    %c0_16 = arith.constant 0 : index
    %16 = vector.load %arg3[%c0_14, %c0_15, %c0_16] : memref<2x8x32xf32, #tpu.memory_space<vmem>>, vector<2x8x32xf32>
    %17 = vector.shape_cast %16 : vector<2x8x32xf32> to vector<16x32xf32>
    %c0_17 = arith.constant 0 : index
    %c0_18 = arith.constant 0 : index
    %18 = vector.load %arg6[%c0_17, %c0_18] : memref<32x32xf32, #tpu.memory_space<vmem>>, vector<32x32xf32>
    %cst_19 = arith.constant dense<0.000000e+00> : vector<16x32xf32>
    %19 = tpu.matmul %17, %18, %cst_19 {dimension_numbers = #tpu.dot_dimension_numbers<[1], [0], [0], [1], [0, 0, 1, 1], [], []>, precision = #tpu.contract_precision<fp32>} : vector<16x32xf32>, vector<32x32xf32>, vector<16x32xf32> -> vector<16x32xf32>
    %c0_20 = arith.constant 0 : index
    %c0_21 = arith.constant 0 : index
    %20 = vector.load %arg9[%c0_20, %c0_21] : memref<1x32xf32, #tpu.memory_space<vmem>>, vector<1x32xf32>
    %21 = vector.broadcast %20 : vector<1x32xf32> to vector<16x32xf32>
    %22 = arith.addf %19, %21 : vector<16x32xf32>
    %23 = vector.shape_cast %22 : vector<16x32xf32> to vector<2x8x32xf32>
    %cst_22 = arith.constant dense<0.000000e+00> : vector<2x8x8xf32>
    %24 = tpu.matmul %7, %15, %cst_22 {dimension_numbers = #tpu.dot_dimension_numbers<[2], [2], [1], [1], [0, 0, 0, 1, 1, 1], [0], [0]>, precision = #tpu.contract_precision<fp32>} : vector<2x8x32xf32>, vector<2x8x32xf32>, vector<2x8x8xf32> -> vector<2x8x8xf32>
    %cst_23 = arith.constant dense<0xFF800000> : vector<2x8xf32>
    %25 = vector.multi_reduction <maximumf>, %24, %cst_23 [2] : vector<2x8x8xf32> to vector<2x8xf32>
    %26 = vector.shape_cast %25 : vector<2x8xf32> to vector<2x8x1xf32>
    %27 = vector.broadcast %26 : vector<2x8x1xf32> to vector<2x8x8xf32>
    %28 = arith.subf %24, %27 : vector<2x8x8xf32>
    %29 = math.exp %28 : vector<2x8x8xf32>
    %cst_24 = arith.constant dense<0.000000e+00> : vector<2x8xf32>
    %30 = vector.multi_reduction <add>, %29, %cst_24 [2] : vector<2x8x8xf32> to vector<2x8xf32>
    %31 = vector.shape_cast %30 : vector<2x8xf32> to vector<2x8x1xf32>
    %32 = tpu.reciprocal %31 {approx = true} : vector<2x8x1xf32> -> vector<2x8x1xf32>
    %33 = arith.mulf %31, %32 : vector<2x8x1xf32>
    %cst_25 = arith.constant 2.000000e+00 : f32
    %34 = vector.broadcast %cst_25 : f32 to vector<2x8x1xf32>
    %35 = arith.subf %34, %33 : vector<2x8x1xf32>
    %36 = arith.mulf %32, %35 : vector<2x8x1xf32>
    %37 = vector.broadcast %36 : vector<2x8x1xf32> to vector<2x8x8xf32>
    %38 = arith.mulf %29, %37 : vector<2x8x8xf32>
    %cst_26 = arith.constant dense<0.000000e+00> : vector<2x8x32xf32>
    %39 = tpu.matmul %38, %23, %cst_26 {dimension_numbers = #tpu.dot_dimension_numbers<[2], [1], [1], [2], [0, 0, 0, 1, 1, 2], [0], [0]>, precision = #tpu.contract_precision<fp32>} : vector<2x8x8xf32>, vector<2x8x32xf32>, vector<2x8x32xf32> -> vector<2x8x32xf32>
    %c0_27 = arith.constant 0 : index
    %c0_28 = arith.constant 0 : index
    %c0_29 = arith.constant 0 : index
    %40 = vector.load %arg10[%c0_27, %c0_28, %c0_29] : memref<2x8x32xf32, #tpu.memory_space<vmem>>, vector<2x8x32xf32>
    tpu.vector_store %arg10[%c0_27, %c0_28, %c0_29], %39 {strides = array<i32>} : memref<2x8x32xf32, #tpu.memory_space<vmem>>, vector<2x8x32xf32>,
    return
  }
  func.func @transform_0(%arg0: i32) -> (i32, i32, i32) {
    %c0_i32 = arith.constant 0 : i32
    %c0_i32_0 = arith.constant 0 : i32
    %c0_i32_1 = arith.constant 0 : i32
    return %arg0, %c0_i32, %c0_i32_0 : i32, i32, i32
  }
  func.func @transform_1(%arg0: i32) -> (i32, i32, i32) {
    %c0_i32 = arith.constant 0 : i32
    %c0_i32_0 = arith.constant 0 : i32
    %c0_i32_1 = arith.constant 0 : i32
    return %arg0, %c0_i32, %c0_i32_0 : i32, i32, i32
  }
  func.func @transform_2(%arg0: i32) -> (i32, i32, i32) {
    %c0_i32 = arith.constant 0 : i32
    %c0_i32_0 = arith.constant 0 : i32
    %c0_i32_1 = arith.constant 0 : i32
    return %arg0, %c0_i32, %c0_i32_0 : i32, i32, i32
  }
  func.func @transform_3(%arg0: i32) -> (i32, i32) {
    %c0_i32 = arith.constant 0 : i32
    %c0_i32_0 = arith.constant 0 : i32
    %c0_i32_1 = arith.constant 0 : i32
    return %c0_i32, %c0_i32_0 : i32, i32
  }
  func.func @transform_4(%arg0: i32) -> (i32, i32) {
    %c0_i32 = arith.constant 0 : i32
    %c0_i32_0 = arith.constant 0 : i32
    %c0_i32_1 = arith.constant 0 : i32
    return %c0_i32, %c0_i32_0 : i32, i32
  }
  func.func @transform_5(%arg0: i32) -> (i32, i32) {
    %c0_i32 = arith.constant 0 : i32
    %c0_i32_0 = arith.constant 0 : i32
    %c0_i32_1 = arith.constant 0 : i32
    return %c0_i32, %c0_i32_0 : i32, i32
  }
  func.func @transform_6(%arg0: i32) -> (i32, i32) {
    %c0_i32 = arith.constant 0 : i32
    %c0_i32_0 = arith.constant 0 : i32
    %c0_i32_1 = arith.constant 0 : i32
    return %c0_i32, %c0_i32_0 : i32, i32
  }
  func.func @transform_7(%arg0: i32) -> (i32, i32) {
    %c0_i32 = arith.constant 0 : i32
    %c0_i32_0 = arith.constant 0 : i32
    %c0_i32_1 = arith.constant 0 : i32
    return %c0_i32, %c0_i32_0 : i32, i32
  }
  func.func @transform_8(%arg0: i32) -> (i32, i32) {
    %c0_i32 = arith.constant 0 : i32
    %c0_i32_0 = arith.constant 0 : i32
    %c0_i32_1 = arith.constant 0 : i32
    return %c0_i32, %c0_i32_0 : i32, i32
  }
  func.func @transform_9(%arg0: i32) -> (i32, i32, i32) {
    %c0_i32 = arith.constant 0 : i32
    %c0_i32_0 = arith.constant 0 : i32
    %c0_i32_1 = arith.constant 0 : i32
    return %arg0, %c0_i32, %c0_i32_0 : i32, i32, i32
  }
}

module attributes {stable_mosaic.version = 11 : i64} {
  func.func @fusion_kernel(%arg0: i32, %arg1: memref<2x8x32xf32, #tpu.memory_space<vmem>>, %arg2: memref<2x8x32xf32, #tpu.memory_space<vmem>>, %arg3: memref<2x8x32xf32, #tpu.memory_space<vmem>>, %arg4: memref<32x32xf32, #tpu.memory_space<vmem>>, %arg5: memref<32x32xf32, #tpu.memory_space<vmem>>, %arg6: memref<32x32xf32, #tpu.memory_space<vmem>>, %arg7: memref<1x32xf32, #tpu.memory_space<vmem>>, %arg8: memref<1x32xf32, #tpu.memory_space<vmem>>, %arg9: memref<1x32xf32, #tpu.memory_space<vmem>>, %arg10: memref<2x8x32xf32, #tpu.memory_space<vmem>>) attributes {dimension_semantics = [#tpu.dimension_semantics<parallel>], iteration_bounds = array<i64: 1>, scalar_prefetch = 0 : i64, scratch_operands = 0 : i64, tpu.core_type = #tpu.core_type<tc>, window_params = [{transform_indices = @transform_0, window_bounds = array<i64: 2, 8, 32>}, {transform_indices = @transform_1, window_bounds = array<i64: 2, 8, 32>}, {transform_indices = @transform_2, window_bounds = array<i64: 2, 8, 32>}, {pipeline_mode = #tpu.pipeline_mode<synchronous>, transform_indices = @transform_3, window_bounds = array<i64: 32, 32>}, {pipeline_mode = #tpu.pipeline_mode<synchronous>, transform_indices = @transform_4, window_bounds = array<i64: 32, 32>}, {pipeline_mode = #tpu.pipeline_mode<synchronous>, transform_indices = @transform_5, window_bounds = array<i64: 32, 32>}, {pipeline_mode = #tpu.pipeline_mode<synchronous>, transform_indices = @transform_6, window_bounds = array<i64: 1, 32>}, {pipeline_mode = #tpu.pipeline_mode<synchronous>, transform_indices = @transform_7, window_bounds = array<i64: 1, 32>}, {pipeline_mode = #tpu.pipeline_mode<synchronous>, transform_indices = @transform_8, window_bounds = array<i64: 1, 32>}, {transform_indices = @transform_9, window_bounds = array<i64: 2, 8, 32>}]} {
    %c0 = arith.constant 0 : index
    %c0_0 = arith.constant 0 : index
    %c0_1 = arith.constant 0 : index
    %0 = vector.load %arg1[%c0, %c0_0, %c0_1] : memref<2x8x32xf32, #tpu.memory_space<vmem>>, vector<2x8x32xf32>
    %1 = vector.shape_cast %0 : vector<2x8x32xf32> to vector<16x32xf32>
    %c0_2 = arith.constant 0 : index
    %c0_3 = arith.constant 0 : index
    %2 = vector.load %arg4[%c0_2, %c0_3] : memref<32x32xf32, #tpu.memory_space<vmem>>, vector<32x32xf32>
    %cst = arith.constant dense<0.000000e+00> : vector<16x32xf32>
    %3 = tpu.matmul %1, %2, %cst {dimension_numbers = #tpu.dot_dimension_numbers<[1], [0], [0], [1], [0, 0, 1, 1], [], []>} : vector<16x32xf32>, vector<32x32xf32>, vector<16x32xf32> -> vector<16x32xf32>
    %c0_4 = arith.constant 0 : index
    %c0_5 = arith.constant 0 : index
    %4 = vector.load %arg7[%c0_4, %c0_5] : memref<1x32xf32, #tpu.memory_space<vmem>>, vector<1x32xf32>
    %5 = vector.broadcast %4 : vector<1x32xf32> to vector<16x32xf32>
    %6 = arith.addf %3, %5 : vector<16x32xf32>
    %7 = vector.shape_cast %6 : vector<16x32xf32> to vector<2x8x32xf32>
    %c0_6 = arith.constant 0 : index
    %c0_7 = arith.constant 0 : index
    %c0_8 = arith.constant 0 : index
    %8 = vector.load %arg2[%c0_6, %c0_7, %c0_8] : memref<2x8x32xf32, #tpu.memory_space<vmem>>, vector<2x8x32xf32>
    %9 = vector.shape_cast %8 : vector<2x8x32xf32> to vector<16x32xf32>
    %c0_9 = arith.constant 0 : index
    %c0_10 = arith.constant 0 : index
    %10 = vector.load %arg5[%c0_9, %c0_10] : memref<32x32xf32, #tpu.memory_space<vmem>>, vector<32x32xf32>
    %cst_11 = arith.constant dense<0.000000e+00> : vector<16x32xf32>
    %11 = tpu.matmul %9, %10, %cst_11 {dimension_numbers = #tpu.dot_dimension_numbers<[1], [0], [0], [1], [0, 0, 1, 1], [], []>} : vector<16x32xf32>, vector<32x32xf32>, vector<16x32xf32> -> vector<16x32xf32>
    %c0_12 = arith.constant 0 : index
    %c0_13 = arith.constant 0 : index
    %12 = vector.load %arg8[%c0_12, %c0_13] : memref<1x32xf32, #tpu.memory_space<vmem>>, vector<1x32xf32>
    %13 = vector.broadcast %12 : vector<1x32xf32> to vector<16x32xf32>
    %14 = arith.addf %11, %13 : vector<16x32xf32>
    %15 = vector.shape_cast %14 : vector<16x32xf32> to vector<2x8x32xf32>
    %c0_14 = arith.constant 0 : index
    %c0_15 = arith.constant 0 : index
    %c0_16 = arith.constant 0 : index
    %16 = vector.load %arg3[%c0_14, %c0_15, %c0_16] : memref<2x8x32xf32, #tpu.memory_space<vmem>>, vector<2x8x32xf32>
    %17 = vector.shape_cast %16 : vector<2x8x32xf32> to vector<16x32xf32>
    %c0_17 = arith.constant 0 : index
    %c0_18 = arith.constant 0 : index
    %18 = vector.load %arg6[%c0_17, %c0_18] : memref<32x32xf32, #tpu.memory_space<vmem>>, vector<32x32xf32>
    %cst_19 = arith.constant dense<0.000000e+00> : vector<16x32xf32>
    %19 = tpu.matmul %17, %18, %cst_19 {dimension_numbers = #tpu.dot_dimension_numbers<[1], [0], [0], [1], [0, 0, 1, 1], [], []>} : vector<16x32xf32>, vector<32x32xf32>, vector<16x32xf32> -> vector<16x32xf32>
    %c0_20 = arith.constant 0 : index
    %c0_21 = arith.constant 0 : index
    %20 = vector.load %arg9[%c0_20, %c0_21] : memref<1x32xf32, #tpu.memory_space<vmem>>, vector<1x32xf32>
    %21 = vector.broadcast %20 : vector<1x32xf32> to vector<16x32xf32>
    %22 = arith.addf %19, %21 : vector<16x32xf32>
    %23 = vector.shape_cast %22 : vector<16x32xf32> to vector<2x8x32xf32>
    %cst_22 = arith.constant dense<0.000000e+00> : vector<2x8x8xf32>
    %24 = tpu.matmul %7, %15, %cst_22 {dimension_numbers = #tpu.dot_dimension_numbers<[2], [2], [1], [1], [0, 0, 0, 1, 1, 1], [0], [0]>} : vector<2x8x32xf32>, vector<2x8x32xf32>, vector<2x8x8xf32> -> vector<2x8x8xf32>
    %cst_23 = arith.constant dense<0xFF800000> : vector<2x8xf32>
    %25 = vector.multi_reduction <maximumf>, %24, %cst_23 [2] : vector<2x8x8xf32> to vector<2x8xf32>
    %26 = vector.shape_cast %25 : vector<2x8xf32> to vector<2x8x1xf32>
    %27 = vector.broadcast %26 : vector<2x8x1xf32> to vector<2x8x8xf32>
    %28 = arith.subf %24, %27 : vector<2x8x8xf32>
    %29 = math.exp %28 : vector<2x8x8xf32>
    %cst_24 = arith.constant dense<0.000000e+00> : vector<2x8xf32>
    %30 = vector.multi_reduction <add>, %29, %cst_24 [2] : vector<2x8x8xf32> to vector<2x8xf32>
    %31 = vector.shape_cast %30 : vector<2x8xf32> to vector<2x8x1xf32>
    %32 = tpu.reciprocal %31 {approx = true} : vector<2x8x1xf32> -> vector<2x8x1xf32>
    %33 = arith.mulf %31, %32 : vector<2x8x1xf32>
    %cst_25 = arith.constant 2.000000e+00 : f32
    %34 = vector.broadcast %cst_25 : f32 to vector<2x8x1xf32>
    %35 = arith.subf %34, %33 : vector<2x8x1xf32>
    %36 = arith.mulf %32, %35 : vector<2x8x1xf32>
    %37 = vector.broadcast %36 : vector<2x8x1xf32> to vector<2x8x8xf32>
    %38 = arith.mulf %29, %37 : vector<2x8x8xf32>
    %cst_26 = arith.constant dense<0.000000e+00> : vector<2x8x32xf32>
    %39 = tpu.matmul %38, %23, %cst_26 {dimension_numbers = #tpu.dot_dimension_numbers<[2], [1], [1], [2], [0, 0, 0, 1, 1, 2], [0], [0]>} : vector<2x8x8xf32>, vector<2x8x32xf32>, vector<2x8x32xf32> -> vector<2x8x32xf32>
    %c0_27 = arith.constant 0 : index
    %c0_28 = arith.constant 0 : index
    %c0_29 = arith.constant 0 : index
    %40 = vector.load %arg10[%c0_27, %c0_28, %c0_29] : memref<2x8x32xf32, #tpu.memory_space<vmem>>, vector<2x8x32xf32>
    tpu.vector_store %arg10[%c0_27, %c0_28, %c0_29], %39 {strides = array<i32>} : memref<2x8x32xf32, #tpu.memory_space<vmem>>, vector<2x8x32xf32>,
    return
  }
  func.func @transform_0(%arg0: i32) -> (i32, i32, i32) {
    %c0_i32 = arith.constant 0 : i32
    %c0_i32_0 = arith.constant 0 : i32
    %c0_i32_1 = arith.constant 0 : i32
    return %arg0, %c0_i32, %c0_i32_0 : i32, i32, i32
  }
  func.func @transform_1(%arg0: i32) -> (i32, i32, i32) {
    %c0_i32 = arith.constant 0 : i32
    %c0_i32_0 = arith.constant 0 : i32
    %c0_i32_1 = arith.constant 0 : i32
    return %arg0, %c0_i32, %c0_i32_0 : i32, i32, i32
  }
  func.func @transform_2(%arg0: i32) -> (i32, i32, i32) {
    %c0_i32 = arith.constant 0 : i32
    %c0_i32_0 = arith.constant 0 : i32
    %c0_i32_1 = arith.constant 0 : i32
    return %arg0, %c0_i32, %c0_i32_0 : i32, i32, i32
  }
  func.func @transform_3(%arg0: i32) -> (i32, i32) {
    %c0_i32 = arith.constant 0 : i32
    %c0_i32_0 = arith.constant 0 : i32
    %c0_i32_1 = arith.constant 0 : i32
    return %c0_i32, %c0_i32_0 : i32, i32
  }
  func.func @transform_4(%arg0: i32) -> (i32, i32) {
    %c0_i32 = arith.constant 0 : i32
    %c0_i32_0 = arith.constant 0 : i32
    %c0_i32_1 = arith.constant 0 : i32
    return %c0_i32, %c0_i32_0 : i32, i32
  }
  func.func @transform_5(%arg0: i32) -> (i32, i32) {
    %c0_i32 = arith.constant 0 : i32
    %c0_i32_0 = arith.constant 0 : i32
    %c0_i32_1 = arith.constant 0 : i32
    return %c0_i32, %c0_i32_0 : i32, i32
  }
  func.func @transform_6(%arg0: i32) -> (i32, i32) {
    %c0_i32 = arith.constant 0 : i32
    %c0_i32_0 = arith.constant 0 : i32
    %c0_i32_1 = arith.constant 0 : i32
    return %c0_i32, %c0_i32_0 : i32, i32
  }
  func.func @transform_7(%arg0: i32) -> (i32, i32) {
    %c0_i32 = arith.constant 0 : i32
    %c0_i32_0 = arith.constant 0 : i32
    %c0_i32_1 = arith.constant 0 : i32
    return %c0_i32, %c0_i32_0 : i32, i32
  }
  func.func @transform_8(%arg0: i32) -> (i32, i32) {
    %c0_i32 = arith.constant 0 : i32
    %c0_i32_0 = arith.constant 0 : i32
    %c0_i32_1 = arith.constant 0 : i32
    return %c0_i32, %c0_i32_0 : i32, i32
  }
  func.func @transform_9(%arg0: i32) -> (i32, i32, i32) {
    %c0_i32 = arith.constant 0 : i32
    %c0_i32_0 = arith.constant 0 : i32
    %c0_i32_1 = arith.constant 0 : i32
    return %arg0, %c0_i32, %c0_i32_0 : i32, i32, i32
  }
}

</mosaic_0001>

<llo_original>
// kernel: tpu_custom_call.1
$region0: #{tpu_custom_call.1}
  #allocation0 [shape = 'u32[]', space=smem, size = 0x4, offset = 0x4, fixed_abs, tag = 'smem constant byte address 0x4 - core index']
  #allocation1 [shape = 'u32[144,128]{1,0:T(1,128)}', space=vmem, size = 0x12000, scoped, tag = 'internal scratch']
  %s0 = inlined_call_operand.hbm [shape: f32[2,8,32], index: 0, kind: input, shape index: {}]
  %s1 = inlined_call_operand.hbm [shape: f32[2,8,32], index: 1, kind: input, shape index: {}]
  %s2 = inlined_call_operand.hbm [shape: f32[2,8,32], index: 2, kind: input, shape index: {}]
  %s3 = inlined_call_operand.hbm [shape: f32[32,32], index: 3, kind: input, shape index: {}]
  %s4 = inlined_call_operand.hbm [shape: f32[32,32], index: 4, kind: input, shape index: {}]
  %s5 = inlined_call_operand.hbm [shape: f32[32,32], index: 5, kind: input, shape index: {}]
  %s6 = inlined_call_operand.vmem [shape: f32[1,32], index: 6, kind: input, shape index: {}]
  %s7 = inlined_call_operand.vmem [shape: f32[1,32], index: 7, kind: input, shape index: {}]
  %s8 = inlined_call_operand.vmem [shape: f32[1,32], index: 8, kind: input, shape index: {}]
  %s9 = inlined_call_operand.hbm [shape: f32[2,8,32], index: 9, kind: output, shape index: {}]
  %s10 = sld [smem:[#allocation0]]
  $region70: #{tpu_custom_call.1} parent=0
    _
  %s12 = ssub.s32 1, %s10
  %s13 = scalar_select 0, %s12, %s10
  $region1: #{tpu_custom_call.1} parent=0
    #allocation2 [shape = 'u8[8192]{0}', space=vmem, size = 0x2000, scoped, tag = 'input window, operand 0, single buffered']
    #allocation3 [shape = 's32[1]{0}', space=sflag, size = 0x4, scoped, tag = 'scoped memory for tpu_custom_call.1']
    #allocation4 [shape = 's32[1]{0}', space=sflag, size = 0x4, scoped, tag = 'scoped memory for tpu_custom_call.1']
    #allocation5 [shape = 'u8[8192]{0}', space=vmem, size = 0x2000, scoped, tag = 'input window, operand 1, single buffered']
    #allocation6 [shape = 's32[1]{0}', space=sflag, size = 0x4, scoped, tag = 'scoped memory for tpu_custom_call.1']
    #allocation7 [shape = 'u8[8192]{0}', space=vmem, size = 0x2000, scoped, tag = 'input window, operand 2, single buffered']
    #allocation8 [shape = 'u8[16384]{0}', space=vmem, size = 0x4000, scoped, tag = 'input window, operand 3, single buffered']
    #allocation9 [shape = 's32[1]{0}', space=sflag, size = 0x4, scoped, tag = 'scoped memory for tpu_custom_call.1']
    #allocation10 [shape = 'u8[16384]{0}', space=vmem, size = 0x4000, scoped, tag = 'input window, operand 4, single buffered']
    #allocation11 [shape = 'u8[16384]{0}', space=vmem, size = 0x4000, scoped, tag = 'input window, operand 5, single buffered']
    #allocation12 [shape = 's32[1]{0}', space=sflag, size = 0x4, scoped, tag = 'scoped memory for tpu_custom_call.1']
    #allocation13 [shape = 'u8[8192]{0}', space=vmem, size = 0x2000, scoped, tag = 'output window, operand 0, single buffered']
    %14 = vsyncpa [#allocation3], 0
    %15 = vsyncpa [#allocation6], 0
    %16 = vsyncpa [#allocation9], 0
    %17 = vsyncpa [#allocation12], 0
    %18 = vsyncpa [#allocation4], 0
    // Predicated region
    $region2: #{tpu_custom_call.1} parent=1 // pred_check
      _
    $region3: #{tpu_custom_call.1} parent=1 // pred_check_branch
      %20 = sbr.rel (0) target = $region5
    $region4: #{tpu_custom_call.1} parent=1 // pred_region
      %s22 = ssub.s32 256, 256
      %23 = vsyncadd [#allocation3], %s22
      %s24 = sshll.u32 [#allocation2], 4
      %s25 = int_to_ptr.vmem [resolvable:$true] %s24
      %30 = dma.hbm_to_vmem [thread:$0]  %s0, 256, %s25, [#allocation3], 128, 128, 8
    $region5: #{tpu_custom_call.1} parent=1 // pred_fallthru
      _
    // Predicated region
    $region6: #{tpu_custom_call.1} parent=1 // pred_check
      _
    $region7: #{tpu_custom_call.1} parent=1 // pred_check_branch
      %32 = sbr.rel (0) target = $region9
    $region8: #{tpu_custom_call.1} parent=1 // pred_region
      %s34 = ssub.s32 256, 256
      %35 = vsyncadd [#allocation6], %s34
      %s36 = sshll.u32 [#allocation5], 4
      %s37 = int_to_ptr.vmem [resolvable:$true] %s36
      %42 = dma.hbm_to_vmem [thread:$0]  %s1, 256, %s37, [#allocation6], 128, 128, 8
    $region9: #{tpu_custom_call.1} parent=1 // pred_fallthru
      _
    // Predicated region
    $region10: #{tpu_custom_call.1} parent=1 // pred_check
      _
    $region11: #{tpu_custom_call.1} parent=1 // pred_check_branch
      %44 = sbr.rel (0) target = $region13
    $region12: #{tpu_custom_call.1} parent=1 // pred_region
      %s46 = ssub.s32 256, 256
      %47 = vsyncadd [#allocation6], %s46
      %s48 = sshll.u32 [#allocation7], 4
      %s49 = int_to_ptr.vmem [resolvable:$true] %s48
      %54 = dma.hbm_to_vmem [thread:$0]  %s2, 256, %s49, [#allocation6], 128, 128, 8
    $region13: #{tpu_custom_call.1} parent=1 // pred_fallthru
      _
    // Predicated region
    $region14: #{tpu_custom_call.1} parent=1 // pred_check
      _
    $region15: #{tpu_custom_call.1} parent=1 // pred_check_branch
      %56 = sbr.rel (0) target = $region17
    $region16: #{tpu_custom_call.1} parent=1 // pred_region
      %s58 = ssub.s32 512, 512
      %59 = vsyncadd [#allocation9], %s58
      %s60 = sshll.u32 [#allocation8], 4
      %s61 = int_to_ptr.vmem [resolvable:$true] %s60
      %66 = dma.hbm_to_vmem [thread:$0]  %s3, 512, %s61, [#allocation9], 128, 128, 8
    $region17: #{tpu_custom_call.1} parent=1 // pred_fallthru
      _
    // Predicated region
    $region18: #{tpu_custom_call.1} parent=1 // pred_check
      _
    $region19: #{tpu_custom_call.1} parent=1 // pred_check_branch
      %68 = sbr.rel (0) target = $region21
    $region20: #{tpu_custom_call.1} parent=1 // pred_region
      %s70 = ssub.s32 512, 512
      %71 = vsyncadd [#allocation9], %s70
      %s72 = sshll.u32 [#allocation10], 4
      %s73 = int_to_ptr.vmem [resolvable:$true] %s72
      %78 = dma.hbm_to_vmem [thread:$0]  %s4, 512, %s73, [#allocation9], 128, 128, 8
    $region21: #{tpu_custom_call.1} parent=1 // pred_fallthru
      _
    // Predicated region
    $region22: #{tpu_custom_call.1} parent=1 // pred_check
      _
    $region23: #{tpu_custom_call.1} parent=1 // pred_check_branch
      %80 = sbr.rel (0) target = $region25
    $region24: #{tpu_custom_call.1} parent=1 // pred_region
      %s82 = ssub.s32 512, 512
      %83 = vsyncadd [#allocation12], %s82
      %s84 = sshll.u32 [#allocation11], 4
      %s85 = int_to_ptr.vmem [resolvable:$true] %s84
      %90 = dma.hbm_to_vmem [thread:$0]  %s5, 512, %s85, [#allocation12], 128, 128, 8
    $region25: #{tpu_custom_call.1} parent=1 // pred_fallthru
      _
    // Predicated region
    $region26: #{tpu_custom_call.1} parent=1 // pred_check
      _
    $region27: #{tpu_custom_call.1} parent=1 // pred_check_branch
      %92 = sbr.rel (0) target = $region29
    $region28: #{tpu_custom_call.1} parent=1 // pred_region
      _
    $region29: #{tpu_custom_call.1} parent=1 // pred_fallthru
      _
    // Predicated region
    $region30: #{tpu_custom_call.1} parent=1 // pred_check
      _
    $region31: #{tpu_custom_call.1} parent=1 // pred_check_branch
      %94 = sbr.rel (0) target = $region33
    $region32: #{tpu_custom_call.1} parent=1 // pred_region
      _
    $region33: #{tpu_custom_call.1} parent=1 // pred_fallthru
      _
    // Predicated region
    $region34: #{tpu_custom_call.1} parent=1 // pred_check
      _
    $region35: #{tpu_custom_call.1} parent=1 // pred_check_branch
      %96 = sbr.rel (0) target = $region37
    $region36: #{tpu_custom_call.1} parent=1 // pred_region
      _
    $region37: #{tpu_custom_call.1} parent=1 // pred_fallthru
      _
    // Predicated region
    $region38: #{tpu_custom_call.1} parent=1 // pred_check
      _
    $region39: #{tpu_custom_call.1} parent=1 // pred_check_branch
      %98 = sbr.rel (0) target = $region41
    $region40: #{tpu_custom_call.1} parent=1 // pred_region
      %99 = dma.done [#allocation3], 256
    $region41: #{tpu_custom_call.1} parent=1 // pred_fallthru
      _
    // Predicated region
    $region42: #{tpu_custom_call.1} parent=1 // pred_check
      _
    $region43: #{tpu_custom_call.1} parent=1 // pred_check_branch
      %101 = sbr.rel (0) target = $region45
    $region44: #{tpu_custom_call.1} parent=1 // pred_region
      %102 = dma.done [#allocation6], 256
    $region45: #{tpu_custom_call.1} parent=1 // pred_fallthru
      _
    // Predicated region
    $region46: #{tpu_custom_call.1} parent=1 // pred_check
      _
    $region47: #{tpu_custom_call.1} parent=1 // pred_check_branch
      %104 = sbr.rel (0) target = $region49
    $region48: #{tpu_custom_call.1} parent=1 // pred_region
      %105 = dma.done [#allocation6], 256
    $region49: #{tpu_custom_call.1} parent=1 // pred_fallthru
      _
    // Predicated region
    $region50: #{tpu_custom_call.1} parent=1 // pred_check
      _
    $region51: #{tpu_custom_call.1} parent=1 // pred_check_branch
      %107 = sbr.rel (0) target = $region53
    $region52: #{tpu_custom_call.1} parent=1 // pred_region
      %108 = dma.done [#allocation9], 512
    $region53: #{tpu_custom_call.1} parent=1 // pred_fallthru
      _
    // Predicated region
    $region54: #{tpu_custom_call.1} parent=1 // pred_check
      _
    $region55: #{tpu_custom_call.1} parent=1 // pred_check_branch
      %110 = sbr.rel (0) target = $region57
    $region56: #{tpu_custom_call.1} parent=1 // pred_region
      %111 = dma.done [#allocation9], 512
    $region57: #{tpu_custom_call.1} parent=1 // pred_fallthru
      _
    // Predicated region
    $region58: #{tpu_custom_call.1} parent=1 // pred_check
      _
    $region59: #{tpu_custom_call.1} parent=1 // pred_check_branch
      %113 = sbr.rel (0) target = $region61
    $region60: #{tpu_custom_call.1} parent=1 // pred_region
      %114 = dma.done [#allocation12], 512
    $region61: #{tpu_custom_call.1} parent=1 // pred_fallthru
      _
    %v115 = vld [vmem:[#allocation2] sm:$0xff]
    %v116 = vld [vmem:[#allocation2 + $0x8] sm:$0xff]
    %v117 = vld [vmem:[#allocation8] sm:$0xff]
    %v118 = vld [vmem:[#allocation8 + $0x8] sm:$0xff]
    %v119 = vld [vmem:[#allocation8 + $0x10] sm:$0xff]
    %v120 = vld [vmem:[#allocation8 + $0x18] sm:$0xff]
    %v121 = vld [vmem:[%s6] sm:$0x1]
    %v123 = vlaneseq
    %v124 = vshrl.u32 %v123, 7
    %v125 = vsub.s32 0, %v124
    %v126 = vrot.slane %v121, %v125
    %vm128 = vcmask 261120
    %v130 = vsel %vm128, %v115, 0
    %v133 = vsel %vm128, %v116, 0
    %135 = vmatprep.subr.mxu0 0.0
    %v136 = vand.u32 %v117, 4294901760
    %137 = vmatpush1.msra.mxu0 %v136
    %138 = vmatprep.subr.mxu0 0.0
    %v139 = vand.u32 %v118, 4294901760
    %140 = vmatpush1.msra.mxu0 %v139
    %141 = vmatprep.subr.mxu0 0.0
    %v142 = vand.u32 %v119, 4294901760
    %143 = vmatpush1.msra.mxu0 %v142
    %144 = vmatprep.subr.mxu0 0.0
    %v145 = vand.u32 %v120, 4294901760
    %146 = vmatpush1.msra.mxu0 %v145
    %147 = vmatprep.subr.mxu0 0.0
    %148 = vmatpush1.msra.mxu0 0.0
    %149 = vmatprep.subr.mxu0 0.0
    %150 = vmatpush1.msra.mxu0 0.0
    %151 = vmatprep.subr.mxu0 0.0
    %152 = vmatpush1.msra.mxu0 0.0
    %153 = vmatprep.subr.mxu0 0.0
    %154 = vmatpush1.msra.mxu0 0.0
    %155 = vmatprep.subr.mxu0 0.0
    %156 = vmatpush1.msra.mxu0 0.0
    %157 = vmatprep.subr.mxu0 0.0
    %158 = vmatpush1.msra.mxu0 0.0
    %159 = vmatprep.subr.mxu0 0.0
    %160 = vmatpush1.msra.mxu0 0.0
    %161 = vmatprep.subr.mxu0 0.0
    %162 = vmatpush1.msra.mxu0 0.0
    %163 = vmatprep.subr.mxu0 0.0
    %164 = vmatpush1.msra.mxu0 0.0
    %165 = vmatprep.subr.mxu0 0.0
    %166 = vmatpush1.msra.mxu0 0.0
    %167 = vmatprep.subr.mxu0 0.0
    %168 = vmatpush1.msra.mxu0 0.0
    %169 = vmatprep.subr.mxu0 0.0
    %170 = vmatpush1.msra.mxu0 0.0
    %171 = vmatprep.subr.mxu0 0.0
    %172 = vmatpush1.msra.mxu0 0.0
    %173 = vmatprep.subr.mxu0 0.0
    %174 = vmatpush1.msra.mxu0 0.0
    %175 = vmatprep.subr.mxu0 0.0
    %176 = vmatpush1.msra.mxu0 0.0
    %177 = vmatprep.subr.mxu0 0.0
    %178 = vmatpush1.msra.mxu0 0.0
    %179 = vmatprep.subr.mxu0 0.0
    %180 = vmatpush1.msra.mxu0 0.0
    %181 = vmatprep.subr.mxu0 0.0
    %182 = vmatpush1.msra.mxu0 0.0
    %183 = vmatprep.subr.mxu0 0.0
    %184 = vmatpush1.msra.mxu0 0.0
    %185 = vmatprep.subr.mxu0 0.0
    %186 = vmatpush1.msra.mxu0 0.0
    %187 = vmatprep.subr.mxu0 0.0
    %188 = vmatpush1.msra.mxu0 0.0
    %189 = vmatprep.subr.mxu0 0.0
    %190 = vmatpush1.msra.mxu0 0.0
    %191 = vmatprep.subr.mxu0 0.0
    %192 = vmatpush1.msra.mxu0 0.0
    %193 = vmatprep.subr.mxu0 0.0
    %194 = vmatpush1.msra.mxu0 0.0
    %195 = vmatprep.subr.mxu0 0.0
    %196 = vmatpush1.msra.mxu0 0.0
    %197 = vmatprep.subr.mxu0 0.0
    %198 = vmatpush1.msra.mxu0 0.0
    %199 = vmatprep.subr.mxu0 0.0
    %200 = vmatpush1.msra.mxu0 0.0
    %201 = vmatprep.subr.mxu0 0.0
    %202 = vmatpush1.msra.mxu0 0.0
    %203 = vmatprep.mubr.f32.mxu0 0.0
    %v204 = vand.u32 %v130, 4294901760
    %v205 = vsub.f32 %v130, %v204
    %v206 = vand.u32 %v205, 4294901760
    %v207 = vsub.f32 %v205, %v206
    %v208 = vand.u32 %v207, 4294901760
    %209 = vmatmul.mubr.f32.gmra.mrb[0].mxu0 %v208
    %v210 = vpop.f32.mrb[0].mxu0
    %v211 = vadd.f32 %v126, %v210
    %v212 = vpop.f32.mrb[0].mxu0
    %213 = vmatprep.mubr.f32.mxu0 0.0
    %v214 = vand.u32 %v133, 4294901760
    %v215 = vsub.f32 %v133, %v214
    %v216 = vand.u32 %v215, 4294901760
    %v217 = vsub.f32 %v215, %v216
    %v218 = vand.u32 %v217, 4294901760
    %219 = vmatmul.mubr.f32.gmra.mrb[0].mxu0 %v218
    %v220 = vpop.f32.mrb[0].mxu0
    %v221 = vadd.f32 %v126, %v220
    %v222 = vpop.f32.mrb[0].mxu0
    %223 = vdwg.mxu0
    %224 = vmatprep.subr.mxu0 0.0
    %v225 = vand.u32 %v117, 4294901760
    %v226 = vsub.f32 %v117, %v225
    %v227 = vand.u32 %v226, 4294901760
    %v228 = vsub.f32 %v226, %v227
    %v229 = vand.u32 %v228, 4294901760
    %230 = vmatpush1.msra.mxu0 %v229
    %231 = vmatprep.subr.mxu0 0.0
    %v232 = vand.u32 %v118, 4294901760
    %v233 = vsub.f32 %v118, %v232
    %v234 = vand.u32 %v233, 4294901760
    %v235 = vsub.f32 %v233, %v234
    %v236 = vand.u32 %v235, 4294901760
    %237 = vmatpush1.msra.mxu0 %v236
    %238 = vmatprep.subr.mxu0 0.0
    %v239 = vand.u32 %v119, 4294901760
    %v240 = vsub.f32 %v119, %v239
    %v241 = vand.u32 %v240, 4294901760
    %v242 = vsub.f32 %v240, %v241
    %v243 = vand.u32 %v242, 4294901760
    %244 = vmatpush1.msra.mxu0 %v243
    %245 = vmatprep.subr.mxu0 0.0
    %v246 = vand.u32 %v120, 4294901760
    %v247 = vsub.f32 %v120, %v246
    %v248 = vand.u32 %v247, 4294901760
    %v249 = vsub.f32 %v247, %v248
    %v250 = vand.u32 %v249, 4294901760
    %251 = vmatpush1.msra.mxu0 %v250
    %252 = vmatprep.subr.mxu0 0.0
    %253 = vmatpush1.msra.mxu0 0.0
    %254 = vmatprep.subr.mxu0 0.0
    %255 = vmatpush1.msra.mxu0 0.0
    %256 = vmatprep.subr.mxu0 0.0
    %257 = vmatpush1.msra.mxu0 0.0
    %258 = vmatprep.subr.mxu0 0.0
    %259 = vmatpush1.msra.mxu0 0.0
    %260 = vmatprep.subr.mxu0 0.0
    %261 = vmatpush1.msra.mxu0 0.0
    %262 = vmatprep.subr.mxu0 0.0
    %263 = vmatpush1.msra.mxu0 0.0
    %264 = vmatprep.subr.mxu0 0.0
    %265 = vmatpush1.msra.mxu0 0.0
    %266 = vmatprep.subr.mxu0 0.0
    %267 = vmatpush1.msra.mxu0 0.0
    %268 = vmatprep.subr.mxu0 0.0
    %269 = vmatpush1.msra.mxu0 0.0
    %270 = vmatprep.subr.mxu0 0.0
    %271 = vmatpush1.msra.mxu0 0.0
    %272 = vmatprep.subr.mxu0 0.0
    %273 = vmatpush1.msra.mxu0 0.0
    %274 = vmatprep.subr.mxu0 0.0
    %275 = vmatpush1.msra.mxu0 0.0
    %276 = vmatprep.subr.mxu0 0.0
    %277 = vmatpush1.msra.mxu0 0.0
    %278 = vmatprep.subr.mxu0 0.0
    %279 = vmatpush1.msra.mxu0 0.0
    %280 = vmatprep.subr.mxu0 0.0
    %281 = vmatpush1.msra.mxu0 0.0
    %282 = vmatprep.subr.mxu0 0.0
    %283 = vmatpush1.msra.mxu0 0.0
    %284 = vmatprep.subr.mxu0 0.0
    %285 = vmatpush1.msra.mxu0 0.0
    %286 = vmatprep.subr.mxu0 0.0
    %287 = vmatpush1.msra.mxu0 0.0
    %288 = vmatprep.subr.mxu0 0.0
    %289 = vmatpush1.msra.mxu0 0.0
    %290 = vmatprep.subr.mxu0 0.0
    %291 = vmatpush1.msra.mxu0 0.0
    %292 = vmatprep.subr.mxu0 0.0
    %293 = vmatpush1.msra.mxu0 0.0
    %294 = vmatprep.subr.mxu0 0.0
    %295 = vmatpush1.msra.mxu0 0.0
    %296 = vmatprep.subr.mxu0 0.0
    %297 = vmatpush1.msra.mxu0 0.0
    %298 = vmatprep.subr.mxu0 0.0
    %299 = vmatpush1.msra.mxu0 0.0
    %300 = vmatprep.subr.mxu0 0.0
    %301 = vmatpush1.msra.mxu0 0.0
    %302 = vmatprep.subr.mxu0 0.0
    %303 = vmatpush1.msra.mxu0 0.0
    %304 = vmatprep.subr.mxu0 0.0
    %305 = vmatpush1.msra.mxu0 0.0
    %306 = vmatprep.subr.mxu0 0.0
    %307 = vmatpush1.msra.mxu0 0.0
    %308 = vmatprep.mubr.f32.mxu0 0.0
    %v309 = vand.u32 %v130, 4294901760
    %310 = vmatmul.mubr.f32.gmra.mrb[0].mxu0 %v309
    %v311 = vpop.f32.mrb[0].mxu0
    %v312 = vadd.f32 %v211, %v311
    %v313 = vpop.f32.mrb[0].mxu0
    %314 = vmatprep.mubr.f32.mxu0 0.0
    %v315 = vand.u32 %v133, 4294901760
    %316 = vmatmul.mubr.f32.gmra.mrb[0].mxu0 %v315
    %v317 = vpop.f32.mrb[0].mxu0
    %v318 = vadd.f32 %v221, %v317
    %v319 = vpop.f32.mrb[0].mxu0
    %320 = vdwg.mxu0
    %321 = vmatprep.subr.mxu0 0.0
    %v322 = vand.u32 %v117, 4294901760
    %v323 = vsub.f32 %v117, %v322
    %324 = vmatpush1.msra.mxu0 %v323
    %325 = vmatprep.subr.mxu0 0.0
    %v326 = vand.u32 %v118, 4294901760
    %v327 = vsub.f32 %v118, %v326
    %328 = vmatpush1.msra.mxu0 %v327
    %329 = vmatprep.subr.mxu0 0.0
    %v330 = vand.u32 %v119, 4294901760
    %v331 = vsub.f32 %v119, %v330
    %332 = vmatpush1.msra.mxu0 %v331
    %333 = vmatprep.subr.mxu0 0.0
    %v334 = vand.u32 %v120, 4294901760
    %v335 = vsub.f32 %v120, %v334
    %336 = vmatpush1.msra.mxu0 %v335
    %337 = vmatprep.subr.mxu0 0.0
    %338 = vmatpush1.msra.mxu0 0.0
    %339 = vmatprep.subr.mxu0 0.0
    %340 = vmatpush1.msra.mxu0 0.0
    %341 = vmatprep.subr.mxu0 0.0
    %342 = vmatpush1.msra.mxu0 0.0
    %343 = vmatprep.subr.mxu0 0.0
    %344 = vmatpush1.msra.mxu0 0.0
    %345 = vmatprep.subr.mxu0 0.0
    %346 = vmatpush1.msra.mxu0 0.0
    %347 = vmatprep.subr.mxu0 0.0
    %348 = vmatpush1.msra.mxu0 0.0
    %349 = vmatprep.subr.mxu0 0.0
    %350 = vmatpush1.msra.mxu0 0.0
    %351 = vmatprep.subr.mxu0 0.0
    %352 = vmatpush1.msra.mxu0 0.0
    %353 = vmatprep.subr.mxu0 0.0
    %354 = vmatpush1.msra.mxu0 0.0
    %355 = vmatprep.subr.mxu0 0.0
    %356 = vmatpush1.msra.mxu0 0.0
    %357 = vmatprep.subr.mxu0 0.0
    %358 = vmatpush1.msra.mxu0 0.0
    %359 = vmatprep.subr.mxu0 0.0
    %360 = vmatpush1.msra.mxu0 0.0
    %361 = vmatprep.subr.mxu0 0.0
    %362 = vmatpush1.msra.mxu0 0.0
    %363 = vmatprep.subr.mxu0 0.0
    %364 = vmatpush1.msra.mxu0 0.0
    %365 = vmatprep.subr.mxu0 0.0
    %366 = vmatpush1.msra.mxu0 0.0
    %367 = vmatprep.subr.mxu0 0.0
    %368 = vmatpush1.msra.mxu0 0.0
    %369 = vmatprep.subr.mxu0 0.0
    %370 = vmatpush1.msra.mxu0 0.0
    %371 = vmatprep.subr.mxu0 0.0
    %372 = vmatpush1.msra.mxu0 0.0
    %373 = vmatprep.subr.mxu0 0.0
    %374 = vmatpush1.msra.mxu0 0.0
    %375 = vmatprep.subr.mxu0 0.0
    %376 = vmatpush1.msra.mxu0 0.0
    %377 = vmatprep.subr.mxu0 0.0
    %378 = vmatpush1.msra.mxu0 0.0
    %379 = vmatprep.subr.mxu0 0.0
    %380 = vmatpush1.msra.mxu0 0.0
    %381 = vmatprep.subr.mxu0 0.0
    %382 = vmatpush1.msra.mxu0 0.0
    %383 = vmatprep.subr.mxu0 0.0
    %384 = vmatpush1.msra.mxu0 0.0
    %385 = vmatprep.subr.mxu0 0.0
    %386 = vmatpush1.msra.mxu0 0.0
    %387 = vmatprep.subr.mxu0 0.0
    %388 = vmatpush1.msra.mxu0 0.0
    %389 = vmatprep.subr.mxu0 0.0
    %390 = vmatpush1.msra.mxu0 0.0
    %391 = vmatprep.subr.mxu0 0.0
    %392 = vmatpush1.msra.mxu0 0.0
    %393 = vmatprep.mubr.f32.mxu0 0.0
    %v394 = vand.u32 %v130, 4294901760
    %v395 = vsub.f32 %v130, %v394
    %396 = vmatmul.mubr.f32.gmra.mrb[0].mxu0 %v395
    %v397 = vpop.f32.mrb[0].mxu0
    %v398 = vadd.f32 %v312, %v397
    %v399 = vpop.f32.mrb[0].mxu0
    %400 = vmatprep.mubr.f32.mxu0 0.0
    %v401 = vand.u32 %v133, 4294901760
    %v402 = vsub.f32 %v133, %v401
    %403 = vmatmul.mubr.f32.gmra.mrb[0].mxu0 %v402
    %v404 = vpop.f32.mrb[0].mxu0
    %v405 = vadd.f32 %v318, %v404
    %v406 = vpop.f32.mrb[0].mxu0
    %407 = vdwg.mxu0
    %408 = vmatprep.subr.mxu0 0.0
    %v409 = vand.u32 %v117, 4294901760
    %410 = vmatpush1.msra.mxu0 %v409
    %411 = vmatprep.subr.mxu0 0.0
    %v412 = vand.u32 %v118, 4294901760
    %413 = vmatpush1.msra.mxu0 %v412
    %414 = vmatprep.subr.mxu0 0.0
    %v415 = vand.u32 %v119, 4294901760
    %416 = vmatpush1.msra.mxu0 %v415
    %417 = vmatprep.subr.mxu0 0.0
    %v418 = vand.u32 %v120, 4294901760
    %419 = vmatpush1.msra.mxu0 %v418
    %420 = vmatprep.subr.mxu0 0.0
    %421 = vmatpush1.msra.mxu0 0.0
    %422 = vmatprep.subr.mxu0 0.0
    %423 = vmatpush1.msra.mxu0 0.0
    %424 = vmatprep.subr.mxu0 0.0
    %425 = vmatpush1.msra.mxu0 0.0
    %426 = vmatprep.subr.mxu0 0.0
    %427 = vmatpush1.msra.mxu0 0.0
    %428 = vmatprep.subr.mxu0 0.0
    %429 = vmatpush1.msra.mxu0 0.0
    %430 = vmatprep.subr.mxu0 0.0
    %431 = vmatpush1.msra.mxu0 0.0
    %432 = vmatprep.subr.mxu0 0.0
    %433 = vmatpush1.msra.mxu0 0.0
    %434 = vmatprep.subr.mxu0 0.0
    %435 = vmatpush1.msra.mxu0 0.0
    %436 = vmatprep.subr.mxu0 0.0
    %437 = vmatpush1.msra.mxu0 0.0
    %438 = vmatprep.subr.mxu0 0.0
    %439 = vmatpush1.msra.mxu0 0.0
    %440 = vmatprep.subr.mxu0 0.0
    %441 = vmatpush1.msra.mxu0 0.0
    %442 = vmatprep.subr.mxu0 0.0
    %443 = vmatpush1.msra.mxu0 0.0
    %444 = vmatprep.subr.mxu0 0.0
    %445 = vmatpush1.msra.mxu0 0.0
    %446 = vmatprep.subr.mxu0 0.0
    %447 = vmatpush1.msra.mxu0 0.0
    %448 = vmatprep.subr.mxu0 0.0
    %449 = vmatpush1.msra.mxu0 0.0
    %450 = vmatprep.subr.mxu0 0.0
    %451 = vmatpush1.msra.mxu0 0.0
    %452 = vmatprep.subr.mxu0 0.0
    %453 = vmatpush1.msra.mxu0 0.0
    %454 = vmatprep.subr.mxu0 0.0
    %455 = vmatpush1.msra.mxu0 0.0
    %456 = vmatprep.subr.mxu0 0.0
    %457 = vmatpush1.msra.mxu0 0.0
    %458 = vmatprep.subr.mxu0 0.0
    %459 = vmatpush1.msra.mxu0 0.0
    %460 = vmatprep.subr.mxu0 0.0
    %461 = vmatpush1.msra.mxu0 0.0
    %462 = vmatprep.subr.mxu0 0.0
    %463 = vmatpush1.msra.mxu0 0.0
    %464 = vmatprep.subr.mxu0 0.0
    %465 = vmatpush1.msra.mxu0 0.0
    %466 = vmatprep.subr.mxu0 0.0
    %467 = vmatpush1.msra.mxu0 0.0
    %468 = vmatprep.subr.mxu0 0.0
    %469 = vmatpush1.msra.mxu0 0.0
    %470 = vmatprep.subr.mxu0 0.0
    %471 = vmatpush1.msra.mxu0 0.0
    %472 = vmatprep.subr.mxu0 0.0
    %473 = vmatpush1.msra.mxu0 0.0
    %474 = vmatprep.subr.mxu0 0.0
    %475 = vmatpush1.msra.mxu0 0.0
    %476 = vmatprep.mubr.f32.mxu0 0.0
    %v477 = vand.u32 %v130, 4294901760
    %v478 = vsub.f32 %v130, %v477
    %v479 = vand.u32 %v478, 4294901760
    %480 = vmatmul.mubr.f32.gmra.mrb[0].mxu0 %v479
    %v481 = vpop.f32.mrb[0].mxu0
    %v482 = vadd.f32 %v398, %v481
    %v483 = vpop.f32.mrb[0].mxu0
    %484 = vmatprep.mubr.f32.mxu0 0.0
    %v485 = vand.u32 %v133, 4294901760
    %v486 = vsub.f32 %v133, %v485
    %v487 = vand.u32 %v486, 4294901760
    %488 = vmatmul.mubr.f32.gmra.mrb[0].mxu0 %v487
    %v489 = vpop.f32.mrb[0].mxu0
    %v490 = vadd.f32 %v405, %v489
    %v491 = vpop.f32.mrb[0].mxu0
    %492 = vdwg.mxu0
    %493 = vmatprep.subr.mxu0 0.0
    %v494 = vand.u32 %v117, 4294901760
    %v495 = vsub.f32 %v117, %v494
    %v496 = vand.u32 %v495, 4294901760
    %497 = vmatpush1.msra.mxu0 %v496
    %498 = vmatprep.subr.mxu0 0.0
    %v499 = vand.u32 %v118, 4294901760
    %v500 = vsub.f32 %v118, %v499
    %v501 = vand.u32 %v500, 4294901760
    %502 = vmatpush1.msra.mxu0 %v501
    %503 = vmatprep.subr.mxu0 0.0
    %v504 = vand.u32 %v119, 4294901760
    %v505 = vsub.f32 %v119, %v504
    %v506 = vand.u32 %v505, 4294901760
    %507 = vmatpush1.msra.mxu0 %v506
    %508 = vmatprep.subr.mxu0 0.0
    %v509 = vand.u32 %v120, 4294901760
    %v510 = vsub.f32 %v120, %v509
    %v511 = vand.u32 %v510, 4294901760
    %512 = vmatpush1.msra.mxu0 %v511
    %513 = vmatprep.subr.mxu0 0.0
    %514 = vmatpush1.msra.mxu0 0.0
    %515 = vmatprep.subr.mxu0 0.0
    %516 = vmatpush1.msra.mxu0 0.0
    %517 = vmatprep.subr.mxu0 0.0
    %518 = vmatpush1.msra.mxu0 0.0
    %519 = vmatprep.subr.mxu0 0.0
    %520 = vmatpush1.msra.mxu0 0.0
    %521 = vmatprep.subr.mxu0 0.0
    %522 = vmatpush1.msra.mxu0 0.0
    %523 = vmatprep.subr.mxu0 0.0
    %524 = vmatpush1.msra.mxu0 0.0
    %525 = vmatprep.subr.mxu0 0.0
    %526 = vmatpush1.msra.mxu0 0.0
    %527 = vmatprep.subr.mxu0 0.0
    %528 = vmatpush1.msra.mxu0 0.0
    %529 = vmatprep.subr.mxu0 0.0
    %530 = vmatpush1.msra.mxu0 0.0
    %531 = vmatprep.subr.mxu0 0.0
    %532 = vmatpush1.msra.mxu0 0.0
    %533 = vmatprep.subr.mxu0 0.0
    %534 = vmatpush1.msra.mxu0 0.0
    %535 = vmatprep.subr.mxu0 0.0
    %536 = vmatpush1.msra.mxu0 0.0
    %537 = vmatprep.subr.mxu0 0.0
    %538 = vmatpush1.msra.mxu0 0.0
    %539 = vmatprep.subr.mxu0 0.0
    %540 = vmatpush1.msra.mxu0 0.0
    %541 = vmatprep.subr.mxu0 0.0
    %542 = vmatpush1.msra.mxu0 0.0
    %543 = vmatprep.subr.mxu0 0.0
    %544 = vmatpush1.msra.mxu0 0.0
    %545 = vmatprep.subr.mxu0 0.0
    %546 = vmatpush1.msra.mxu0 0.0
    %547 = vmatprep.subr.mxu0 0.0
    %548 = vmatpush1.msra.mxu0 0.0
    %549 = vmatprep.subr.mxu0 0.0
    %550 = vmatpush1.msra.mxu0 0.0
    %551 = vmatprep.subr.mxu0 0.0
    %552 = vmatpush1.msra.mxu0 0.0
    %553 = vmatprep.subr.mxu0 0.0
    %554 = vmatpush1.msra.mxu0 0.0
    %555 = vmatprep.subr.mxu0 0.0
    %556 = vmatpush1.msra.mxu0 0.0
    %557 = vmatprep.subr.mxu0 0.0
    %558 = vmatpush1.msra.mxu0 0.0
    %559 = vmatprep.subr.mxu0 0.0
    %560 = vmatpush1.msra.mxu0 0.0
    %561 = vmatprep.subr.mxu0 0.0
    %562 = vmatpush1.msra.mxu0 0.0
    %563 = vmatprep.subr.mxu0 0.0
    %564 = vmatpush1.msra.mxu0 0.0
    %565 = vmatprep.subr.mxu0 0.0
    %566 = vmatpush1.msra.mxu0 0.0
    %567 = vmatprep.subr.mxu0 0.0
    %568 = vmatpush1.msra.mxu0 0.0
    %569 = vmatprep.mubr.f32.mxu0 0.0
    %v570 = vand.u32 %v130, 4294901760
    %571 = vmatmul.mubr.f32.gmra.mrb[0].mxu0 %v570
    %v572 = vpop.f32.mrb[0].mxu0
    %v573 = vadd.f32 %v482, %v572
    %v574 = vpop.f32.mrb[0].mxu0
    %575 = vmatprep.mubr.f32.mxu0 0.0
    %v576 = vand.u32 %v133, 4294901760
    %577 = vmatmul.mubr.f32.gmra.mrb[0].mxu0 %v576
    %v578 = vpop.f32.mrb[0].mxu0
    %v579 = vadd.f32 %v490, %v578
    %v580 = vpop.f32.mrb[0].mxu0
    %581 = vdwg.mxu0
    %582 = vmatprep.subr.mxu0 0.0
    %v583 = vand.u32 %v117, 4294901760
    %584 = vmatpush1.msra.mxu0 %v583
    %585 = vmatprep.subr.mxu0 0.0
    %v586 = vand.u32 %v118, 4294901760
    %587 = vmatpush1.msra.mxu0 %v586
    %588 = vmatprep.subr.mxu0 0.0
    %v589 = vand.u32 %v119, 4294901760
    %590 = vmatpush1.msra.mxu0 %v589
    %591 = vmatprep.subr.mxu0 0.0
    %v592 = vand.u32 %v120, 4294901760
    %593 = vmatpush1.msra.mxu0 %v592
    %594 = vmatprep.subr.mxu0 0.0
    %595 = vmatpush1.msra.mxu0 0.0
    %596 = vmatprep.subr.mxu0 0.0
    %597 = vmatpush1.msra.mxu0 0.0
    %598 = vmatprep.subr.mxu0 0.0
    %599 = vmatpush1.msra.mxu0 0.0
    %600 = vmatprep.subr.mxu0 0.0
    %601 = vmatpush1.msra.mxu0 0.0
    %602 = vmatprep.subr.mxu0 0.0
    %603 = vmatpush1.msra.mxu0 0.0
    %604 = vmatprep.subr.mxu0 0.0
    %605 = vmatpush1.msra.mxu0 0.0
    %606 = vmatprep.subr.mxu0 0.0
    %607 = vmatpush1.msra.mxu0 0.0
    %608 = vmatprep.subr.mxu0 0.0
    %609 = vmatpush1.msra.mxu0 0.0
    %610 = vmatprep.subr.mxu0 0.0
    %611 = vmatpush1.msra.mxu0 0.0
    %612 = vmatprep.subr.mxu0 0.0
    %613 = vmatpush1.msra.mxu0 0.0
    %614 = vmatprep.subr.mxu0 0.0
    %615 = vmatpush1.msra.mxu0 0.0
    %616 = vmatprep.subr.mxu0 0.0
    %617 = vmatpush1.msra.mxu0 0.0
    %618 = vmatprep.subr.mxu0 0.0
    %619 = vmatpush1.msra.mxu0 0.0
    %620 = vmatprep.subr.mxu0 0.0
    %621 = vmatpush1.msra.mxu0 0.0
    %622 = vmatprep.subr.mxu0 0.0
    %623 = vmatpush1.msra.mxu0 0.0
    %624 = vmatprep.subr.mxu0 0.0
    %625 = vmatpush1.msra.mxu0 0.0
    %626 = vmatprep.subr.mxu0 0.0
    %627 = vmatpush1.msra.mxu0 0.0
    %628 = vmatprep.subr.mxu0 0.0
    %629 = vmatpush1.msra.mxu0 0.0
    %630 = vmatprep.subr.mxu0 0.0
    %631 = vmatpush1.msra.mxu0 0.0
    %632 = vmatprep.subr.mxu0 0.0
    %633 = vmatpush1.msra.mxu0 0.0
    %634 = vmatprep.subr.mxu0 0.0
    %635 = vmatpush1.msra.mxu0 0.0
    %636 = vmatprep.subr.mxu0 0.0
    %637 = vmatpush1.msra.mxu0 0.0
    %638 = vmatprep.subr.mxu0 0.0
    %639 = vmatpush1.msra.mxu0 0.0
    %640 = vmatprep.subr.mxu0 0.0
    %641 = vmatpush1.msra.mxu0 0.0
    %642 = vmatprep.subr.mxu0 0.0
    %643 = vmatpush1.msra.mxu0 0.0
    %644 = vmatprep.subr.mxu0 0.0
    %645 = vmatpush1.msra.mxu0 0.0
    %646 = vmatprep.subr.mxu0 0.0
    %647 = vmatpush1.msra.mxu0 0.0
    %648 = vmatprep.subr.mxu0 0.0
    %649 = vmatpush1.msra.mxu0 0.0
    %650 = vmatprep.mubr.f32.mxu0 0.0
    %v651 = vand.u32 %v130, 4294901760
    %652 = vmatmul.mubr.f32.gmra.mrb[0].mxu0 %v651
    %v653 = vpop.f32.mrb[0].mxu0
    %v654 = vadd.f32 %v573, %v653
    %v655 = vpop.f32.mrb[0].mxu0
    %656 = vmatprep.mubr.f32.mxu0 0.0
    %v657 = vand.u32 %v133, 4294901760
    %658 = vmatmul.mubr.f32.gmra.mrb[0].mxu0 %v657
    %v659 = vpop.f32.mrb[0].mxu0
    %v660 = vadd.f32 %v579, %v659
    %v661 = vpop.f32.mrb[0].mxu0
    %662 = vdwg.mxu0
    %v663 = vld [vmem:[#allocation5] sm:$0xff]
    %v664 = vld [vmem:[#allocation5 + $0x8] sm:$0xff]
    %v665 = vld [vmem:[#allocation10] sm:$0xff]
    %v666 = vld [vmem:[#allocation10 + $0x8] sm:$0xff]
    %v667 = vld [vmem:[#allocation10 + $0x10] sm:$0xff]
    %v668 = vld [vmem:[#allocation10 + $0x18] sm:$0xff]
    %v669 = vld [vmem:[%s7] sm:$0x1]
    %v671 = vlaneseq
    %v672 = vshrl.u32 %v671, 7
    %v673 = vsub.s32 0, %v672
    %v674 = vrot.slane %v669, %v673
    %v677 = vsel %vm128, %v663, 0
    %v680 = vsel %vm128, %v664, 0
    %682 = vmatprep.subr.mxu0 0.0
    %v683 = vand.u32 %v665, 4294901760
    %684 = vmatpush1.msra.mxu0 %v683
    %685 = vmatprep.subr.mxu0 0.0
    %v686 = vand.u32 %v666, 4294901760
    %687 = vmatpush1.msra.mxu0 %v686
    %688 = vmatprep.subr.mxu0 0.0
    %v689 = vand.u32 %v667, 4294901760
    %690 = vmatpush1.msra.mxu0 %v689
    %691 = vmatprep.subr.mxu0 0.0
    %v692 = vand.u32 %v668, 4294901760
    %693 = vmatpush1.msra.mxu0 %v692
    %694 = vmatprep.subr.mxu0 0.0
    %695 = vmatpush1.msra.mxu0 0.0
    %696 = vmatprep.subr.mxu0 0.0
    %697 = vmatpush1.msra.mxu0 0.0
    %698 = vmatprep.subr.mxu0 0.0
    %699 = vmatpush1.msra.mxu0 0.0
    %700 = vmatprep.subr.mxu0 0.0
    %701 = vmatpush1.msra.mxu0 0.0
    %702 = vmatprep.subr.mxu0 0.0
    %703 = vmatpush1.msra.mxu0 0.0
    %704 = vmatprep.subr.mxu0 0.0
    %705 = vmatpush1.msra.mxu0 0.0
    %706 = vmatprep.subr.mxu0 0.0
    %707 = vmatpush1.msra.mxu0 0.0
    %708 = vmatprep.subr.mxu0 0.0
    %709 = vmatpush1.msra.mxu0 0.0
    %710 = vmatprep.subr.mxu0 0.0
    %711 = vmatpush1.msra.mxu0 0.0
    %712 = vmatprep.subr.mxu0 0.0
    %713 = vmatpush1.msra.mxu0 0.0
    %714 = vmatprep.subr.mxu0 0.0
    %715 = vmatpush1.msra.mxu0 0.0
    %716 = vmatprep.subr.mxu0 0.0
    %717 = vmatpush1.msra.mxu0 0.0
    %718 = vmatprep.subr.mxu0 0.0
    %719 = vmatpush1.msra.mxu0 0.0
    %720 = vmatprep.subr.mxu0 0.0
    %721 = vmatpush1.msra.mxu0 0.0
    %722 = vmatprep.subr.mxu0 0.0
    %723 = vmatpush1.msra.mxu0 0.0
    %724 = vmatprep.subr.mxu0 0.0
    %725 = vmatpush1.msra.mxu0 0.0
    %726 = vmatprep.subr.mxu0 0.0
    %727 = vmatpush1.msra.mxu0 0.0
    %728 = vmatprep.subr.mxu0 0.0
    %729 = vmatpush1.msra.mxu0 0.0
    %730 = vmatprep.subr.mxu0 0.0
    %731 = vmatpush1.msra.mxu0 0.0
    %732 = vmatprep.subr.mxu0 0.0
    %733 = vmatpush1.msra.mxu0 0.0
    %734 = vmatprep.subr.mxu0 0.0
    %735 = vmatpush1.msra.mxu0 0.0
    %736 = vmatprep.subr.mxu0 0.0
    %737 = vmatpush1.msra.mxu0 0.0
    %738 = vmatprep.subr.mxu0 0.0
    %739 = vmatpush1.msra.mxu0 0.0
    %740 = vmatprep.subr.mxu0 0.0
    %741 = vmatpush1.msra.mxu0 0.0
    %742 = vmatprep.subr.mxu0 0.0
    %743 = vmatpush1.msra.mxu0 0.0
    %744 = vmatprep.subr.mxu0 0.0
    %745 = vmatpush1.msra.mxu0 0.0
    %746 = vmatprep.subr.mxu0 0.0
    %747 = vmatpush1.msra.mxu0 0.0
    %748 = vmatprep.subr.mxu0 0.0
    %749 = vmatpush1.msra.mxu0 0.0
    %750 = vmatprep.mubr.f32.mxu0 0.0
    %v751 = vand.u32 %v677, 4294901760
    %v752 = vsub.f32 %v677, %v751
    %v753 = vand.u32 %v752, 4294901760
    %v754 = vsub.f32 %v752, %v753
    %v755 = vand.u32 %v754, 4294901760
    %756 = vmatmul.mubr.f32.gmra.mrb[0].mxu0 %v755
    %v757 = vpop.f32.mrb[0].mxu0
    %v758 = vadd.f32 %v674, %v757
    %v759 = vpop.f32.mrb[0].mxu0
    %760 = vmatprep.mubr.f32.mxu0 0.0
    %v761 = vand.u32 %v680, 4294901760
    %v762 = vsub.f32 %v680, %v761
    %v763 = vand.u32 %v762, 4294901760
    %v764 = vsub.f32 %v762, %v763
    %v765 = vand.u32 %v764, 4294901760
    %766 = vmatmul.mubr.f32.gmra.mrb[0].mxu0 %v765
    %v767 = vpop.f32.mrb[0].mxu0
    %v768 = vadd.f32 %v674, %v767
    %v769 = vpop.f32.mrb[0].mxu0
    %770 = vdwg.mxu0
    %771 = vmatprep.subr.mxu0 0.0
    %v772 = vand.u32 %v665, 4294901760
    %v773 = vsub.f32 %v665, %v772
    %v774 = vand.u32 %v773, 4294901760
    %v775 = vsub.f32 %v773, %v774
    %v776 = vand.u32 %v775, 4294901760
    %777 = vmatpush1.msra.mxu0 %v776
    %778 = vmatprep.subr.mxu0 0.0
    %v779 = vand.u32 %v666, 4294901760
    %v780 = vsub.f32 %v666, %v779
    %v781 = vand.u32 %v780, 4294901760
    %v782 = vsub.f32 %v780, %v781
    %v783 = vand.u32 %v782, 4294901760
    %784 = vmatpush1.msra.mxu0 %v783
    %785 = vmatprep.subr.mxu0 0.0
    %v786 = vand.u32 %v667, 4294901760
    %v787 = vsub.f32 %v667, %v786
    %v788 = vand.u32 %v787, 4294901760
    %v789 = vsub.f32 %v787, %v788
    %v790 = vand.u32 %v789, 4294901760
    %791 = vmatpush1.msra.mxu0 %v790
    %792 = vmatprep.subr.mxu0 0.0
    %v793 = vand.u32 %v668, 4294901760
    %v794 = vsub.f32 %v668, %v793
    %v795 = vand.u32 %v794, 4294901760
    %v796 = vsub.f32 %v794, %v795
    %v797 = vand.u32 %v796, 4294901760
    %798 = vmatpush1.msra.mxu0 %v797
    %799 = vmatprep.subr.mxu0 0.0
    %800 = vmatpush1.msra.mxu0 0.0
    %801 = vmatprep.subr.mxu0 0.0
    %802 = vmatpush1.msra.mxu0 0.0
    %803 = vmatprep.subr.mxu0 0.0
    %804 = vmatpush1.msra.mxu0 0.0
    %805 = vmatprep.subr.mxu0 0.0
    %806 = vmatpush1.msra.mxu0 0.0
    %807 = vmatprep.subr.mxu0 0.0
    %808 = vmatpush1.msra.mxu0 0.0
    %809 = vmatprep.subr.mxu0 0.0
    %810 = vmatpush1.msra.mxu0 0.0
    %811 = vmatprep.subr.mxu0 0.0
    %812 = vmatpush1.msra.mxu0 0.0
    %813 = vmatprep.subr.mxu0 0.0
    %814 = vmatpush1.msra.mxu0 0.0
    %815 = vmatprep.subr.mxu0 0.0
    %816 = vmatpush1.msra.mxu0 0.0
    %817 = vmatprep.subr.mxu0 0.0
    %818 = vmatpush1.msra.mxu0 0.0
    %819 = vmatprep.subr.mxu0 0.0
    %820 = vmatpush1.msra.mxu0 0.0
    %821 = vmatprep.subr.mxu0 0.0
    %822 = vmatpush1.msra.mxu0 0.0
    %823 = vmatprep.subr.mxu0 0.0
    %824 = vmatpush1.msra.mxu0 0.0
    %825 = vmatprep.subr.mxu0 0.0
    %826 = vmatpush1.msra.mxu0 0.0
    %827 = vmatprep.subr.mxu0 0.0
    %828 = vmatpush1.msra.mxu0 0.0
    %829 = vmatprep.subr.mxu0 0.0
    %830 = vmatpush1.msra.mxu0 0.0
    %831 = vmatprep.subr.mxu0 0.0
    %832 = vmatpush1.msra.mxu0 0.0
    %833 = vmatprep.subr.mxu0 0.0
    %834 = vmatpush1.msra.mxu0 0.0
    %835 = vmatprep.subr.mxu0 0.0
    %836 = vmatpush1.msra.mxu0 0.0
    %837 = vmatprep.subr.mxu0 0.0
    %838 = vmatpush1.msra.mxu0 0.0
    %839 = vmatprep.subr.mxu0 0.0
    %840 = vmatpush1.msra.mxu0 0.0
    %841 = vmatprep.subr.mxu0 0.0
    %842 = vmatpush1.msra.mxu0 0.0
    %843 = vmatprep.subr.mxu0 0.0
    %844 = vmatpush1.msra.mxu0 0.0
    %845 = vmatprep.subr.mxu0 0.0
    %846 = vmatpush1.msra.mxu0 0.0
    %847 = vmatprep.subr.mxu0 0.0
    %848 = vmatpush1.msra.mxu0 0.0
    %849 = vmatprep.subr.mxu0 0.0
    %850 = vmatpush1.msra.mxu0 0.0
    %851 = vmatprep.subr.mxu0 0.0
    %852 = vmatpush1.msra.mxu0 0.0
    %853 = vmatprep.subr.mxu0 0.0
    %854 = vmatpush1.msra.mxu0 0.0
    %855 = vmatprep.mubr.f32.mxu0 0.0
    %v856 = vand.u32 %v677, 4294901760
    %857 = vmatmul.mubr.f32.gmra.mrb[0].mxu0 %v856
    %v858 = vpop.f32.mrb[0].mxu0
    %v859 = vadd.f32 %v758, %v858
    %v860 = vpop.f32.mrb[0].mxu0
    %861 = vmatprep.mubr.f32.mxu0 0.0
    %v862 = vand.u32 %v680, 4294901760
    %863 = vmatmul.mubr.f32.gmra.mrb[0].mxu0 %v862
    %v864 = vpop.f32.mrb[0].mxu0
    %v865 = vadd.f32 %v768, %v864
    %v866 = vpop.f32.mrb[0].mxu0
    %867 = vdwg.mxu0
    %868 = vmatprep.subr.mxu0 0.0
    %v869 = vand.u32 %v665, 4294901760
    %v870 = vsub.f32 %v665, %v869
    %871 = vmatpush1.msra.mxu0 %v870
    %872 = vmatprep.subr.mxu0 0.0
    %v873 = vand.u32 %v666, 4294901760
    %v874 = vsub.f32 %v666, %v873
    %875 = vmatpush1.msra.mxu0 %v874
    %876 = vmatprep.subr.mxu0 0.0
    %v877 = vand.u32 %v667, 4294901760
    %v878 = vsub.f32 %v667, %v877
    %879 = vmatpush1.msra.mxu0 %v878
    %880 = vmatprep.subr.mxu0 0.0
    %v881 = vand.u32 %v668, 4294901760
    %v882 = vsub.f32 %v668, %v881
    %883 = vmatpush1.msra.mxu0 %v882
    %884 = vmatprep.subr.mxu0 0.0
    %885 = vmatpush1.msra.mxu0 0.0
    %886 = vmatprep.subr.mxu0 0.0
    %887 = vmatpush1.msra.mxu0 0.0
    %888 = vmatprep.subr.mxu0 0.0
    %889 = vmatpush1.msra.mxu0 0.0
    %890 = vmatprep.subr.mxu0 0.0
    %891 = vmatpush1.msra.mxu0 0.0
    %892 = vmatprep.subr.mxu0 0.0
    %893 = vmatpush1.msra.mxu0 0.0
    %894 = vmatprep.subr.mxu0 0.0
    %895 = vmatpush1.msra.mxu0 0.0
    %896 = vmatprep.subr.mxu0 0.0
    %897 = vmatpush1.msra.mxu0 0.0
    %898 = vmatprep.subr.mxu0 0.0
    %899 = vmatpush1.msra.mxu0 0.0
    %900 = vmatprep.subr.mxu0 0.0
    %901 = vmatpush1.msra.mxu0 0.0
    %902 = vmatprep.subr.mxu0 0.0
    %903 = vmatpush1.msra.mxu0 0.0
    %904 = vmatprep.subr.mxu0 0.0
    %905 = vmatpush1.msra.mxu0 0.0
    %906 = vmatprep.subr.mxu0 0.0
    %907 = vmatpush1.msra.mxu0 0.0
    %908 = vmatprep.subr.mxu0 0.0
    %909 = vmatpush1.msra.mxu0 0.0
    %910 = vmatprep.subr.mxu0 0.0
    %911 = vmatpush1.msra.mxu0 0.0
    %912 = vmatprep.subr.mxu0 0.0
    %913 = vmatpush1.msra.mxu0 0.0
    %914 = vmatprep.subr.mxu0 0.0
    %915 = vmatpush1.msra.mxu0 0.0
    %916 = vmatprep.subr.mxu0 0.0
    %917 = vmatpush1.msra.mxu0 0.0
    %918 = vmatprep.subr.mxu0 0.0
    %919 = vmatpush1.msra.mxu0 0.0
    %920 = vmatprep.subr.mxu0 0.0
    %921 = vmatpush1.msra.mxu0 0.0
    %922 = vmatprep.subr.mxu0 0.0
    %923 = vmatpush1.msra.mxu0 0.0
    %924 = vmatprep.subr.mxu0 0.0
    %925 = vmatpush1.msra.mxu0 0.0
    %926 = vmatprep.subr.mxu0 0.0
    %927 = vmatpush1.msra.mxu0 0.0
    %928 = vmatprep.subr.mxu0 0.0
    %929 = vmatpush1.msra.mxu0 0.0
    %930 = vmatprep.subr.mxu0 0.0
    %931 = vmatpush1.msra.mxu0 0.0
    %932 = vmatprep.subr.mxu0 0.0
    %933 = vmatpush1.msra.mxu0 0.0
    %934 = vmatprep.subr.mxu0 0.0
    %935 = vmatpush1.msra.mxu0 0.0
    %936 = vmatprep.subr.mxu0 0.0
    %937 = vmatpush1.msra.mxu0 0.0
    %938 = vmatprep.subr.mxu0 0.0
    %939 = vmatpush1.msra.mxu0 0.0
    %940 = vmatprep.mubr.f32.mxu0 0.0
    %v941 = vand.u32 %v677, 4294901760
    %v942 = vsub.f32 %v677, %v941
    %943 = vmatmul.mubr.f32.gmra.mrb[0].mxu0 %v942
    %v944 = vpop.f32.mrb[0].mxu0
    %v945 = vadd.f32 %v859, %v944
    %v946 = vpop.f32.mrb[0].mxu0
    %947 = vmatprep.mubr.f32.mxu0 0.0
    %v948 = vand.u32 %v680, 4294901760
    %v949 = vsub.f32 %v680, %v948
    %950 = vmatmul.mubr.f32.gmra.mrb[0].mxu0 %v949
    %v951 = vpop.f32.mrb[0].mxu0
    %v952 = vadd.f32 %v865, %v951
    %v953 = vpop.f32.mrb[0].mxu0
    %954 = vdwg.mxu0
    %955 = vmatprep.subr.mxu0 0.0
    %v956 = vand.u32 %v665, 4294901760
    %957 = vmatpush1.msra.mxu0 %v956
    %958 = vmatprep.subr.mxu0 0.0
    %v959 = vand.u32 %v666, 4294901760
    %960 = vmatpush1.msra.mxu0 %v959
    %961 = vmatprep.subr.mxu0 0.0
    %v962 = vand.u32 %v667, 4294901760
    %963 = vmatpush1.msra.mxu0 %v962
    %964 = vmatprep.subr.mxu0 0.0
    %v965 = vand.u32 %v668, 4294901760
    %966 = vmatpush1.msra.mxu0 %v965
    %967 = vmatprep.subr.mxu0 0.0
    %968 = vmatpush1.msra.mxu0 0.0
    %969 = vmatprep.subr.mxu0 0.0
    %970 = vmatpush1.msra.mxu0 0.0
    %971 = vmatprep.subr.mxu0 0.0
    %972 = vmatpush1.msra.mxu0 0.0
    %973 = vmatprep.subr.mxu0 0.0
    %974 = vmatpush1.msra.mxu0 0.0
    %975 = vmatprep.subr.mxu0 0.0
    %976 = vmatpush1.msra.mxu0 0.0
    %977 = vmatprep.subr.mxu0 0.0
    %978 = vmatpush1.msra.mxu0 0.0
    %979 = vmatprep.subr.mxu0 0.0
    %980 = vmatpush1.msra.mxu0 0.0
    %981 = vmatprep.subr.mxu0 0.0
    %982 = vmatpush1.msra.mxu0 0.0
    %983 = vmatprep.subr.mxu0 0.0
    %984 = vmatpush1.msra.mxu0 0.0
    %985 = vmatprep.subr.mxu0 0.0
    %986 = vmatpush1.msra.mxu0 0.0
    %987 = vmatprep.subr.mxu0 0.0
    %988 = vmatpush1.msra.mxu0 0.0
    %989 = vmatprep.subr.mxu0 0.0
    %990 = vmatpush1.msra.mxu0 0.0
    %991 = vmatprep.subr.mxu0 0.0
    %992 = vmatpush1.msra.mxu0 0.0
    %993 = vmatprep.subr.mxu0 0.0
    %994 = vmatpush1.msra.mxu0 0.0
    %995 = vmatprep.subr.mxu0 0.0
    %996 = vmatpush1.msra.mxu0 0.0
    %997 = vmatprep.subr.mxu0 0.0
    %998 = vmatpush1.msra.mxu0 0.0
    %999 = vmatprep.subr.mxu0 0.0
    %1000 = vmatpush1.msra.mxu0 0.0
    %1001 = vmatprep.subr.mxu0 0.0
    %1002 = vmatpush1.msra.mxu0 0.0
    %1003 = vmatprep.subr.mxu0 0.0
    %1004 = vmatpush1.msra.mxu0 0.0
    %1005 = vmatprep.subr.mxu0 0.0
    %1006 = vmatpush1.msra.mxu0 0.0
    %1007 = vmatprep.subr.mxu0 0.0
    %1008 = vmatpush1.msra.mxu0 0.0
    %1009 = vmatprep.subr.mxu0 0.0
    %1010 = vmatpush1.msra.mxu0 0.0
    %1011 = vmatprep.subr.mxu0 0.0
    %1012 = vmatpush1.msra.mxu0 0.0
    %1013 = vmatprep.subr.mxu0 0.0
    %1014 = vmatpush1.msra.mxu0 0.0
    %1015 = vmatprep.subr.mxu0 0.0
    %1016 = vmatpush1.msra.mxu0 0.0
    %1017 = vmatprep.subr.mxu0 0.0
    %1018 = vmatpush1.msra.mxu0 0.0
    %1019 = vmatprep.subr.mxu0 0.0
    %1020 = vmatpush1.msra.mxu0 0.0
    %1021 = vmatprep.subr.mxu0 0.0
    %1022 = vmatpush1.msra.mxu0 0.0
    %1023 = vmatprep.mubr.f32.mxu0 0.0
    %v1024 = vand.u32 %v677, 4294901760
    %v1025 = vsub.f32 %v677, %v1024
    %v1026 = vand.u32 %v1025, 4294901760
    %1027 = vmatmul.mubr.f32.gmra.mrb[0].mxu0 %v1026
    %v1028 = vpop.f32.mrb[0].mxu0
    %v1029 = vadd.f32 %v945, %v1028
    %v1030 = vpop.f32.mrb[0].mxu0
    %1031 = vmatprep.mubr.f32.mxu0 0.0
    %v1032 = vand.u32 %v680, 4294901760
    %v1033 = vsub.f32 %v680, %v1032
    %v1034 = vand.u32 %v1033, 4294901760
    %1035 = vmatmul.mubr.f32.gmra.mrb[0].mxu0 %v1034
    %v1036 = vpop.f32.mrb[0].mxu0
    %v1037 = vadd.f32 %v952, %v1036
    %v1038 = vpop.f32.mrb[0].mxu0
    %1039 = vdwg.mxu0
    %1040 = vmatprep.subr.mxu0 0.0
    %v1041 = vand.u32 %v665, 4294901760
    %v1042 = vsub.f32 %v665, %v1041
    %v1043 = vand.u32 %v1042, 4294901760
    %1044 = vmatpush1.msra.mxu0 %v1043
    %1045 = vmatprep.subr.mxu0 0.0
    %v1046 = vand.u32 %v666, 4294901760
    %v1047 = vsub.f32 %v666, %v1046
    %v1048 = vand.u32 %v1047, 4294901760
    %1049 = vmatpush1.msra.mxu0 %v1048
    %1050 = vmatprep.subr.mxu0 0.0
    %v1051 = vand.u32 %v667, 4294901760
    %v1052 = vsub.f32 %v667, %v1051
    %v1053 = vand.u32 %v1052, 4294901760
    %1054 = vmatpush1.msra.mxu0 %v1053
    %1055 = vmatprep.subr.mxu0 0.0
    %v1056 = vand.u32 %v668, 4294901760
    %v1057 = vsub.f32 %v668, %v1056
    %v1058 = vand.u32 %v1057, 4294901760
    %1059 = vmatpush1.msra.mxu0 %v1058
    %1060 = vmatprep.subr.mxu0 0.0
    %1061 = vmatpush1.msra.mxu0 0.0
    %1062 = vmatprep.subr.mxu0 0.0
    %1063 = vmatpush1.msra.mxu0 0.0
    %1064 = vmatprep.subr.mxu0 0.0
    %1065 = vmatpush1.msra.mxu0 0.0
    %1066 = vmatprep.subr.mxu0 0.0
    %1067 = vmatpush1.msra.mxu0 0.0
    %1068 = vmatprep.subr.mxu0 0.0
    %1069 = vmatpush1.msra.mxu0 0.0
    %1070 = vmatprep.subr.mxu0 0.0
    %1071 = vmatpush1.msra.mxu0 0.0
    %1072 = vmatprep.subr.mxu0 0.0
    %1073 = vmatpush1.msra.mxu0 0.0
    %1074 = vmatprep.subr.mxu0 0.0
    %1075 = vmatpush1.msra.mxu0 0.0
    %1076 = vmatprep.subr.mxu0 0.0
    %1077 = vmatpush1.msra.mxu0 0.0
    %1078 = vmatprep.subr.mxu0 0.0
    %1079 = vmatpush1.msra.mxu0 0.0
    %1080 = vmatprep.subr.mxu0 0.0
    %1081 = vmatpush1.msra.mxu0 0.0
    %1082 = vmatprep.subr.mxu0 0.0
    %1083 = vmatpush1.msra.mxu0 0.0
    %1084 = vmatprep.subr.mxu0 0.0
    %1085 = vmatpush1.msra.mxu0 0.0
    %1086 = vmatprep.subr.mxu0 0.0
    %1087 = vmatpush1.msra.mxu0 0.0
    %1088 = vmatprep.subr.mxu0 0.0
    %1089 = vmatpush1.msra.mxu0 0.0
    %1090 = vmatprep.subr.mxu0 0.0
    %1091 = vmatpush1.msra.mxu0 0.0
    %1092 = vmatprep.subr.mxu0 0.0
    %1093 = vmatpush1.msra.mxu0 0.0
    %1094 = vmatprep.subr.mxu0 0.0
    %1095 = vmatpush1.msra.mxu0 0.0
    %1096 = vmatprep.subr.mxu0 0.0
    %1097 = vmatpush1.msra.mxu0 0.0
    %1098 = vmatprep.subr.mxu0 0.0
    %1099 = vmatpush1.msra.mxu0 0.0
    %1100 = vmatprep.subr.mxu0 0.0
    %1101 = vmatpush1.msra.mxu0 0.0
    %1102 = vmatprep.subr.mxu0 0.0
    %1103 = vmatpush1.msra.mxu0 0.0
    %1104 = vmatprep.subr.mxu0 0.0
    %1105 = vmatpush1.msra.mxu0 0.0
    %1106 = vmatprep.subr.mxu0 0.0
    %1107 = vmatpush1.msra.mxu0 0.0
    %1108 = vmatprep.subr.mxu0 0.0
    %1109 = vmatpush1.msra.mxu0 0.0
    %1110 = vmatprep.subr.mxu0 0.0
    %1111 = vmatpush1.msra.mxu0 0.0
    %1112 = vmatprep.subr.mxu0 0.0
    %1113 = vmatpush1.msra.mxu0 0.0
    %1114 = vmatprep.subr.mxu0 0.0
    %1115 = vmatpush1.msra.mxu0 0.0
    %1116 = vmatprep.mubr.f32.mxu0 0.0
    %v1117 = vand.u32 %v677, 4294901760
    %1118 = vmatmul.mubr.f32.gmra.mrb[0].mxu0 %v1117
    %v1119 = vpop.f32.mrb[0].mxu0
    %v1120 = vadd.f32 %v1029, %v1119
    %v1121 = vpop.f32.mrb[0].mxu0
    %1122 = vmatprep.mubr.f32.mxu0 0.0
    %v1123 = vand.u32 %v680, 4294901760
    %1124 = vmatmul.mubr.f32.gmra.mrb[0].mxu0 %v1123
    %v1125 = vpop.f32.mrb[0].mxu0
    %v1126 = vadd.f32 %v1037, %v1125
    %v1127 = vpop.f32.mrb[0].mxu0
    %1128 = vdwg.mxu0
    %1129 = vmatprep.subr.mxu0 0.0
    %v1130 = vand.u32 %v665, 4294901760
    %1131 = vmatpush1.msra.mxu0 %v1130
    %1132 = vmatprep.subr.mxu0 0.0
    %v1133 = vand.u32 %v666, 4294901760
    %1134 = vmatpush1.msra.mxu0 %v1133
    %1135 = vmatprep.subr.mxu0 0.0
    %v1136 = vand.u32 %v667, 4294901760
    %1137 = vmatpush1.msra.mxu0 %v1136
    %1138 = vmatprep.subr.mxu0 0.0
    %v1139 = vand.u32 %v668, 4294901760
    %1140 = vmatpush1.msra.mxu0 %v1139
    %1141 = vmatprep.subr.mxu0 0.0
    %1142 = vmatpush1.msra.mxu0 0.0
    %1143 = vmatprep.subr.mxu0 0.0
    %1144 = vmatpush1.msra.mxu0 0.0
    %1145 = vmatprep.subr.mxu0 0.0
    %1146 = vmatpush1.msra.mxu0 0.0
    %1147 = vmatprep.subr.mxu0 0.0
    %1148 = vmatpush1.msra.mxu0 0.0
    %1149 = vmatprep.subr.mxu0 0.0
    %1150 = vmatpush1.msra.mxu0 0.0
    %1151 = vmatprep.subr.mxu0 0.0
    %1152 = vmatpush1.msra.mxu0 0.0
    %1153 = vmatprep.subr.mxu0 0.0
    %1154 = vmatpush1.msra.mxu0 0.0
    %1155 = vmatprep.subr.mxu0 0.0
    %1156 = vmatpush1.msra.mxu0 0.0
    %1157 = vmatprep.subr.mxu0 0.0
    %1158 = vmatpush1.msra.mxu0 0.0
    %1159 = vmatprep.subr.mxu0 0.0
    %1160 = vmatpush1.msra.mxu0 0.0
    %1161 = vmatprep.subr.mxu0 0.0
    %1162 = vmatpush1.msra.mxu0 0.0
    %1163 = vmatprep.subr.mxu0 0.0
    %1164 = vmatpush1.msra.mxu0 0.0
    %1165 = vmatprep.subr.mxu0 0.0
    %1166 = vmatpush1.msra.mxu0 0.0
    %1167 = vmatprep.subr.mxu0 0.0
    %1168 = vmatpush1.msra.mxu0 0.0
    %1169 = vmatprep.subr.mxu0 0.0
    %1170 = vmatpush1.msra.mxu0 0.0
    %1171 = vmatprep.subr.mxu0 0.0
    %1172 = vmatpush1.msra.mxu0 0.0
    %1173 = vmatprep.subr.mxu0 0.0
    %1174 = vmatpush1.msra.mxu0 0.0
    %1175 = vmatprep.subr.mxu0 0.0
    %1176 = vmatpush1.msra.mxu0 0.0
    %1177 = vmatprep.subr.mxu0 0.0
    %1178 = vmatpush1.msra.mxu0 0.0
    %1179 = vmatprep.subr.mxu0 0.0
    %1180 = vmatpush1.msra.mxu0 0.0
    %1181 = vmatprep.subr.mxu0 0.0
    %1182 = vmatpush1.msra.mxu0 0.0
    %1183 = vmatprep.subr.mxu0 0.0
    %1184 = vmatpush1.msra.mxu0 0.0
    %1185 = vmatprep.subr.mxu0 0.0
    %1186 = vmatpush1.msra.mxu0 0.0
    %1187 = vmatprep.subr.mxu0 0.0
    %1188 = vmatpush1.msra.mxu0 0.0
    %1189 = vmatprep.subr.mxu0 0.0
    %1190 = vmatpush1.msra.mxu0 0.0
    %1191 = vmatprep.subr.mxu0 0.0
    %1192 = vmatpush1.msra.mxu0 0.0
    %1193 = vmatprep.subr.mxu0 0.0
    %1194 = vmatpush1.msra.mxu0 0.0
    %1195 = vmatprep.subr.mxu0 0.0
    %1196 = vmatpush1.msra.mxu0 0.0
    %1197 = vmatprep.mubr.f32.mxu0 0.0
    %v1198 = vand.u32 %v677, 4294901760
    %1199 = vmatmul.mubr.f32.gmra.mrb[0].mxu0 %v1198
    %v1200 = vpop.f32.mrb[0].mxu0
    %v1201 = vadd.f32 %v1120, %v1200
    %v1202 = vpop.f32.mrb[0].mxu0
    %1203 = vmatprep.mubr.f32.mxu0 0.0
    %v1204 = vand.u32 %v680, 4294901760
    %1205 = vmatmul.mubr.f32.gmra.mrb[0].mxu0 %v1204
    %v1206 = vpop.f32.mrb[0].mxu0
    %v1207 = vadd.f32 %v1126, %v1206
    %v1208 = vpop.f32.mrb[0].mxu0
    %1209 = vdwg.mxu0
    %v1210 = vld [vmem:[#allocation7] sm:$0xff]
    %v1211 = vld [vmem:[#allocation7 + $0x8] sm:$0xff]
    %v1212 = vld [vmem:[#allocation11] sm:$0xff]
    %v1213 = vld [vmem:[#allocation11 + $0x8] sm:$0xff]
    %v1214 = vld [vmem:[#allocation11 + $0x10] sm:$0xff]
    %v1215 = vld [vmem:[#allocation11 + $0x18] sm:$0xff]
    %v1216 = vld [vmem:[%s8] sm:$0x1]
    %v1218 = vlaneseq
    %v1219 = vshrl.u32 %v1218, 7
    %v1220 = vsub.s32 0, %v1219
    %v1221 = vrot.slane %v1216, %v1220
    %v1224 = vsel %vm128, %v1210, 0
    %v1227 = vsel %vm128, %v1211, 0
    %1229 = vmatprep.subr.mxu0 0.0
    %v1230 = vand.u32 %v1212, 4294901760
    %1231 = vmatpush1.msra.mxu0 %v1230
    %1232 = vmatprep.subr.mxu0 0.0
    %v1233 = vand.u32 %v1213, 4294901760
    %1234 = vmatpush1.msra.mxu0 %v1233
    %1235 = vmatprep.subr.mxu0 0.0
    %v1236 = vand.u32 %v1214, 4294901760
    %1237 = vmatpush1.msra.mxu0 %v1236
    %1238 = vmatprep.subr.mxu0 0.0
    %v1239 = vand.u32 %v1215, 4294901760
    %1240 = vmatpush1.msra.mxu0 %v1239
    %1241 = vmatprep.subr.mxu0 0.0
    %1242 = vmatpush1.msra.mxu0 0.0
    %1243 = vmatprep.subr.mxu0 0.0
    %1244 = vmatpush1.msra.mxu0 0.0
    %1245 = vmatprep.subr.mxu0 0.0
    %1246 = vmatpush1.msra.mxu0 0.0
    %1247 = vmatprep.subr.mxu0 0.0
    %1248 = vmatpush1.msra.mxu0 0.0
    %1249 = vmatprep.subr.mxu0 0.0
    %1250 = vmatpush1.msra.mxu0 0.0
    %1251 = vmatprep.subr.mxu0 0.0
    %1252 = vmatpush1.msra.mxu0 0.0
    %1253 = vmatprep.subr.mxu0 0.0
    %1254 = vmatpush1.msra.mxu0 0.0
    %1255 = vmatprep.subr.mxu0 0.0
    %1256 = vmatpush1.msra.mxu0 0.0
    %1257 = vmatprep.subr.mxu0 0.0
    %1258 = vmatpush1.msra.mxu0 0.0
    %1259 = vmatprep.subr.mxu0 0.0
    %1260 = vmatpush1.msra.mxu0 0.0
    %1261 = vmatprep.subr.mxu0 0.0
    %1262 = vmatpush1.msra.mxu0 0.0
    %1263 = vmatprep.subr.mxu0 0.0
    %1264 = vmatpush1.msra.mxu0 0.0
    %1265 = vmatprep.subr.mxu0 0.0
    %1266 = vmatpush1.msra.mxu0 0.0
    %1267 = vmatprep.subr.mxu0 0.0
    %1268 = vmatpush1.msra.mxu0 0.0
    %1269 = vmatprep.subr.mxu0 0.0
    %1270 = vmatpush1.msra.mxu0 0.0
    %1271 = vmatprep.subr.mxu0 0.0
    %1272 = vmatpush1.msra.mxu0 0.0
    %1273 = vmatprep.subr.mxu0 0.0
    %1274 = vmatpush1.msra.mxu0 0.0
    %1275 = vmatprep.subr.mxu0 0.0
    %1276 = vmatpush1.msra.mxu0 0.0
    %1277 = vmatprep.subr.mxu0 0.0
    %1278 = vmatpush1.msra.mxu0 0.0
    %1279 = vmatprep.subr.mxu0 0.0
    %1280 = vmatpush1.msra.mxu0 0.0
    %1281 = vmatprep.subr.mxu0 0.0
    %1282 = vmatpush1.msra.mxu0 0.0
    %1283 = vmatprep.subr.mxu0 0.0
    %1284 = vmatpush1.msra.mxu0 0.0
    %1285 = vmatprep.subr.mxu0 0.0
    %1286 = vmatpush1.msra.mxu0 0.0
    %1287 = vmatprep.subr.mxu0 0.0
    %1288 = vmatpush1.msra.mxu0 0.0
    %1289 = vmatprep.subr.mxu0 0.0
    %1290 = vmatpush1.msra.mxu0 0.0
    %1291 = vmatprep.subr.mxu0 0.0
    %1292 = vmatpush1.msra.mxu0 0.0
    %1293 = vmatprep.subr.mxu0 0.0
    %1294 = vmatpush1.msra.mxu0 0.0
    %1295 = vmatprep.subr.mxu0 0.0
    %1296 = vmatpush1.msra.mxu0 0.0
    %1297 = vmatprep.mubr.f32.mxu0 0.0
    %v1298 = vand.u32 %v1224, 4294901760
    %v1299 = vsub.f32 %v1224, %v1298
    %v1300 = vand.u32 %v1299, 4294901760
    %v1301 = vsub.f32 %v1299, %v1300
    %v1302 = vand.u32 %v1301, 4294901760
    %1303 = vmatmul.mubr.f32.gmra.mrb[0].mxu0 %v1302
    %v1304 = vpop.f32.mrb[0].mxu0
    %v1305 = vadd.f32 %v1221, %v1304
    %v1306 = vpop.f32.mrb[0].mxu0
    %1307 = vmatprep.mubr.f32.mxu0 0.0
    %v1308 = vand.u32 %v1227, 4294901760
    %v1309 = vsub.f32 %v1227, %v1308
    %v1310 = vand.u32 %v1309, 4294901760
    %v1311 = vsub.f32 %v1309, %v1310
    %v1312 = vand.u32 %v1311, 4294901760
    %1313 = vmatmul.mubr.f32.gmra.mrb[0].mxu0 %v1312
    %v1314 = vpop.f32.mrb[0].mxu0
    %v1315 = vadd.f32 %v1221, %v1314
    %v1316 = vpop.f32.mrb[0].mxu0
    %1317 = vdwg.mxu0
    %1318 = vmatprep.subr.mxu0 0.0
    %v1319 = vand.u32 %v1212, 4294901760
    %v1320 = vsub.f32 %v1212, %v1319
    %v1321 = vand.u32 %v1320, 4294901760
    %v1322 = vsub.f32 %v1320, %v1321
    %v1323 = vand.u32 %v1322, 4294901760
    %1324 = vmatpush1.msra.mxu0 %v1323
    %1325 = vmatprep.subr.mxu0 0.0
    %v1326 = vand.u32 %v1213, 4294901760
    %v1327 = vsub.f32 %v1213, %v1326
    %v1328 = vand.u32 %v1327, 4294901760
    %v1329 = vsub.f32 %v1327, %v1328
    %v1330 = vand.u32 %v1329, 4294901760
    %1331 = vmatpush1.msra.mxu0 %v1330
    %1332 = vmatprep.subr.mxu0 0.0
    %v1333 = vand.u32 %v1214, 4294901760
    %v1334 = vsub.f32 %v1214, %v1333
    %v1335 = vand.u32 %v1334, 4294901760
    %v1336 = vsub.f32 %v1334, %v1335
    %v1337 = vand.u32 %v1336, 4294901760
    %1338 = vmatpush1.msra.mxu0 %v1337
    %1339 = vmatprep.subr.mxu0 0.0
    %v1340 = vand.u32 %v1215, 4294901760
    %v1341 = vsub.f32 %v1215, %v1340
    %v1342 = vand.u32 %v1341, 4294901760
    %v1343 = vsub.f32 %v1341, %v1342
    %v1344 = vand.u32 %v1343, 4294901760
    %1345 = vmatpush1.msra.mxu0 %v1344
    %1346 = vmatprep.subr.mxu0 0.0
    %1347 = vmatpush1.msra.mxu0 0.0
    %1348 = vmatprep.subr.mxu0 0.0
    %1349 = vmatpush1.msra.mxu0 0.0
    %1350 = vmatprep.subr.mxu0 0.0
    %1351 = vmatpush1.msra.mxu0 0.0
    %1352 = vmatprep.subr.mxu0 0.0
    %1353 = vmatpush1.msra.mxu0 0.0
    %1354 = vmatprep.subr.mxu0 0.0
    %1355 = vmatpush1.msra.mxu0 0.0
    %1356 = vmatprep.subr.mxu0 0.0
    %1357 = vmatpush1.msra.mxu0 0.0
    %1358 = vmatprep.subr.mxu0 0.0
    %1359 = vmatpush1.msra.mxu0 0.0
    %1360 = vmatprep.subr.mxu0 0.0
    %1361 = vmatpush1.msra.mxu0 0.0
    %1362 = vmatprep.subr.mxu0 0.0
    %1363 = vmatpush1.msra.mxu0 0.0
    %1364 = vmatprep.subr.mxu0 0.0
    %1365 = vmatpush1.msra.mxu0 0.0
    %1366 = vmatprep.subr.mxu0 0.0
    %1367 = vmatpush1.msra.mxu0 0.0
    %1368 = vmatprep.subr.mxu0 0.0
    %1369 = vmatpush1.msra.mxu0 0.0
    %1370 = vmatprep.subr.mxu0 0.0
    %1371 = vmatpush1.msra.mxu0 0.0
    %1372 = vmatprep.subr.mxu0 0.0
    %1373 = vmatpush1.msra.mxu0 0.0
    %1374 = vmatprep.subr.mxu0 0.0
    %1375 = vmatpush1.msra.mxu0 0.0
    %1376 = vmatprep.subr.mxu0 0.0
    %1377 = vmatpush1.msra.mxu0 0.0
    %1378 = vmatprep.subr.mxu0 0.0
    %1379 = vmatpush1.msra.mxu0 0.0
    %1380 = vmatprep.subr.mxu0 0.0
    %1381 = vmatpush1.msra.mxu0 0.0
    %1382 = vmatprep.subr.mxu0 0.0
    %1383 = vmatpush1.msra.mxu0 0.0
    %1384 = vmatprep.subr.mxu0 0.0
    %1385 = vmatpush1.msra.mxu0 0.0
    %1386 = vmatprep.subr.mxu0 0.0
    %1387 = vmatpush1.msra.mxu0 0.0
    %1388 = vmatprep.subr.mxu0 0.0
    %1389 = vmatpush1.msra.mxu0 0.0
    %1390 = vmatprep.subr.mxu0 0.0
    %1391 = vmatpush1.msra.mxu0 0.0
    %1392 = vmatprep.subr.mxu0 0.0
    %1393 = vmatpush1.msra.mxu0 0.0
    %1394 = vmatprep.subr.mxu0 0.0
    %1395 = vmatpush1.msra.mxu0 0.0
    %1396 = vmatprep.subr.mxu0 0.0
    %1397 = vmatpush1.msra.mxu0 0.0
    %1398 = vmatprep.subr.mxu0 0.0
    %1399 = vmatpush1.msra.mxu0 0.0
    %1400 = vmatprep.subr.mxu0 0.0
    %1401 = vmatpush1.msra.mxu0 0.0
    %1402 = vmatprep.mubr.f32.mxu0 0.0
    %v1403 = vand.u32 %v1224, 4294901760
    %1404 = vmatmul.mubr.f32.gmra.mrb[0].mxu0 %v1403
    %v1405 = vpop.f32.mrb[0].mxu0
    %v1406 = vadd.f32 %v1305, %v1405
    %v1407 = vpop.f32.mrb[0].mxu0
    %1408 = vmatprep.mubr.f32.mxu0 0.0
    %v1409 = vand.u32 %v1227, 4294901760
    %1410 = vmatmul.mubr.f32.gmra.mrb[0].mxu0 %v1409
    %v1411 = vpop.f32.mrb[0].mxu0
    %v1412 = vadd.f32 %v1315, %v1411
    %v1413 = vpop.f32.mrb[0].mxu0
    %1414 = vdwg.mxu0
    %1415 = vmatprep.subr.mxu0 0.0
    %v1416 = vand.u32 %v1212, 4294901760
    %v1417 = vsub.f32 %v1212, %v1416
    %1418 = vmatpush1.msra.mxu0 %v1417
    %1419 = vmatprep.subr.mxu0 0.0
    %v1420 = vand.u32 %v1213, 4294901760
    %v1421 = vsub.f32 %v1213, %v1420
    %1422 = vmatpush1.msra.mxu0 %v1421
    %1423 = vmatprep.subr.mxu0 0.0
    %v1424 = vand.u32 %v1214, 4294901760
    %v1425 = vsub.f32 %v1214, %v1424
    %1426 = vmatpush1.msra.mxu0 %v1425
    %1427 = vmatprep.subr.mxu0 0.0
    %v1428 = vand.u32 %v1215, 4294901760
    %v1429 = vsub.f32 %v1215, %v1428
    %1430 = vmatpush1.msra.mxu0 %v1429
    %1431 = vmatprep.subr.mxu0 0.0
    %1432 = vmatpush1.msra.mxu0 0.0
    %1433 = vmatprep.subr.mxu0 0.0
    %1434 = vmatpush1.msra.mxu0 0.0
    %1435 = vmatprep.subr.mxu0 0.0
    %1436 = vmatpush1.msra.mxu0 0.0
    %1437 = vmatprep.subr.mxu0 0.0
    %1438 = vmatpush1.msra.mxu0 0.0
    %1439 = vmatprep.subr.mxu0 0.0
    %1440 = vmatpush1.msra.mxu0 0.0
    %1441 = vmatprep.subr.mxu0 0.0
    %1442 = vmatpush1.msra.mxu0 0.0
    %1443 = vmatprep.subr.mxu0 0.0
    %1444 = vmatpush1.msra.mxu0 0.0
    %1445 = vmatprep.subr.mxu0 0.0
    %1446 = vmatpush1.msra.mxu0 0.0
    %1447 = vmatprep.subr.mxu0 0.0
    %1448 = vmatpush1.msra.mxu0 0.0
    %1449 = vmatprep.subr.mxu0 0.0
    %1450 = vmatpush1.msra.mxu0 0.0
    %1451 = vmatprep.subr.mxu0 0.0
    %1452 = vmatpush1.msra.mxu0 0.0
    %1453 = vmatprep.subr.mxu0 0.0
    %1454 = vmatpush1.msra.mxu0 0.0
    %1455 = vmatprep.subr.mxu0 0.0
    %1456 = vmatpush1.msra.mxu0 0.0
    %1457 = vmatprep.subr.mxu0 0.0
    %1458 = vmatpush1.msra.mxu0 0.0
    %1459 = vmatprep.subr.mxu0 0.0
    %1460 = vmatpush1.msra.mxu0 0.0
    %1461 = vmatprep.subr.mxu0 0.0
    %1462 = vmatpush1.msra.mxu0 0.0
    %1463 = vmatprep.subr.mxu0 0.0
    %1464 = vmatpush1.msra.mxu0 0.0
    %1465 = vmatprep.subr.mxu0 0.0
    %1466 = vmatpush1.msra.mxu0 0.0
    %1467 = vmatprep.subr.mxu0 0.0
    %1468 = vmatpush1.msra.mxu0 0.0
    %1469 = vmatprep.subr.mxu0 0.0
    %1470 = vmatpush1.msra.mxu0 0.0
    %1471 = vmatprep.subr.mxu0 0.0
    %1472 = vmatpush1.msra.mxu0 0.0
    %1473 = vmatprep.subr.mxu0 0.0
    %1474 = vmatpush1.msra.mxu0 0.0
    %1475 = vmatprep.subr.mxu0 0.0
    %1476 = vmatpush1.msra.mxu0 0.0
    %1477 = vmatprep.subr.mxu0 0.0
    %1478 = vmatpush1.msra.mxu0 0.0
    %1479 = vmatprep.subr.mxu0 0.0
    %1480 = vmatpush1.msra.mxu0 0.0
    %1481 = vmatprep.subr.mxu0 0.0
    %1482 = vmatpush1.msra.mxu0 0.0
    %1483 = vmatprep.subr.mxu0 0.0
    %1484 = vmatpush1.msra.mxu0 0.0
    %1485 = vmatprep.subr.mxu0 0.0
    %1486 = vmatpush1.msra.mxu0 0.0
    %1487 = vmatprep.mubr.f32.mxu0 0.0
    %v1488 = vand.u32 %v1224, 4294901760
    %v1489 = vsub.f32 %v1224, %v1488
    %1490 = vmatmul.mubr.f32.gmra.mrb[0].mxu0 %v1489
    %v1491 = vpop.f32.mrb[0].mxu0
    %v1492 = vadd.f32 %v1406, %v1491
    %v1493 = vpop.f32.mrb[0].mxu0
    %1494 = vmatprep.mubr.f32.mxu0 0.0
    %v1495 = vand.u32 %v1227, 4294901760
    %v1496 = vsub.f32 %v1227, %v1495
    %1497 = vmatmul.mubr.f32.gmra.mrb[0].mxu0 %v1496
    %v1498 = vpop.f32.mrb[0].mxu0
    %v1499 = vadd.f32 %v1412, %v1498
    %v1500 = vpop.f32.mrb[0].mxu0
    %1501 = vdwg.mxu0
    %1502 = vmatprep.subr.mxu0 0.0
    %v1503 = vand.u32 %v1212, 4294901760
    %1504 = vmatpush1.msra.mxu0 %v1503
    %1505 = vmatprep.subr.mxu0 0.0
    %v1506 = vand.u32 %v1213, 4294901760
    %1507 = vmatpush1.msra.mxu0 %v1506
    %1508 = vmatprep.subr.mxu0 0.0
    %v1509 = vand.u32 %v1214, 4294901760
    %1510 = vmatpush1.msra.mxu0 %v1509
    %1511 = vmatprep.subr.mxu0 0.0
    %v1512 = vand.u32 %v1215, 4294901760
    %1513 = vmatpush1.msra.mxu0 %v1512
    %1514 = vmatprep.subr.mxu0 0.0
    %1515 = vmatpush1.msra.mxu0 0.0
    %1516 = vmatprep.subr.mxu0 0.0
    %1517 = vmatpush1.msra.mxu0 0.0
    %1518 = vmatprep.subr.mxu0 0.0
    %1519 = vmatpush1.msra.mxu0 0.0
    %1520 = vmatprep.subr.mxu0 0.0
    %1521 = vmatpush1.msra.mxu0 0.0
    %1522 = vmatprep.subr.mxu0 0.0
    %1523 = vmatpush1.msra.mxu0 0.0
    %1524 = vmatprep.subr.mxu0 0.0
    %1525 = vmatpush1.msra.mxu0 0.0
    %1526 = vmatprep.subr.mxu0 0.0
    %1527 = vmatpush1.msra.mxu0 0.0
    %1528 = vmatprep.subr.mxu0 0.0
    %1529 = vmatpush1.msra.mxu0 0.0
    %1530 = vmatprep.subr.mxu0 0.0
    %1531 = vmatpush1.msra.mxu0 0.0
    %1532 = vmatprep.subr.mxu0 0.0
    %1533 = vmatpush1.msra.mxu0 0.0
    %1534 = vmatprep.subr.mxu0 0.0
    %1535 = vmatpush1.msra.mxu0 0.0
    %1536 = vmatprep.subr.mxu0 0.0
    %1537 = vmatpush1.msra.mxu0 0.0
    %1538 = vmatprep.subr.mxu0 0.0
    %1539 = vmatpush1.msra.mxu0 0.0
    %1540 = vmatprep.subr.mxu0 0.0
    %1541 = vmatpush1.msra.mxu0 0.0
    %1542 = vmatprep.subr.mxu0 0.0
    %1543 = vmatpush1.msra.mxu0 0.0
    %1544 = vmatprep.subr.mxu0 0.0
    %1545 = vmatpush1.msra.mxu0 0.0
    %1546 = vmatprep.subr.mxu0 0.0
    %1547 = vmatpush1.msra.mxu0 0.0
    %1548 = vmatprep.subr.mxu0 0.0
    %1549 = vmatpush1.msra.mxu0 0.0
    %1550 = vmatprep.subr.mxu0 0.0
    %1551 = vmatpush1.msra.mxu0 0.0
    %1552 = vmatprep.subr.mxu0 0.0
    %1553 = vmatpush1.msra.mxu0 0.0
    %1554 = vmatprep.subr.mxu0 0.0
    %1555 = vmatpush1.msra.mxu0 0.0
    %1556 = vmatprep.subr.mxu0 0.0
    %1557 = vmatpush1.msra.mxu0 0.0
    %1558 = vmatprep.subr.mxu0 0.0
    %1559 = vmatpush1.msra.mxu0 0.0
    %1560 = vmatprep.subr.mxu0 0.0
    %1561 = vmatpush1.msra.mxu0 0.0
    %1562 = vmatprep.subr.mxu0 0.0
    %1563 = vmatpush1.msra.mxu0 0.0
    %1564 = vmatprep.subr.mxu0 0.0
    %1565 = vmatpush1.msra.mxu0 0.0
    %1566 = vmatprep.subr.mxu0 0.0
    %1567 = vmatpush1.msra.mxu0 0.0
    %1568 = vmatprep.subr.mxu0 0.0
    %1569 = vmatpush1.msra.mxu0 0.0
    %1570 = vmatprep.mubr.f32.mxu0 0.0
    %v1571 = vand.u32 %v1224, 4294901760
    %v1572 = vsub.f32 %v1224, %v1571
    %v1573 = vand.u32 %v1572, 4294901760
    %1574 = vmatmul.mubr.f32.gmra.mrb[0].mxu0 %v1573
    %v1575 = vpop.f32.mrb[0].mxu0
    %v1576 = vadd.f32 %v1492, %v1575
    %v1577 = vpop.f32.mrb[0].mxu0
    %1578 = vmatprep.mubr.f32.mxu0 0.0
    %v1579 = vand.u32 %v1227, 4294901760
    %v1580 = vsub.f32 %v1227, %v1579
    %v1581 = vand.u32 %v1580, 4294901760
    %1582 = vmatmul.mubr.f32.gmra.mrb[0].mxu0 %v1581
    %v1583 = vpop.f32.mrb[0].mxu0
    %v1584 = vadd.f32 %v1499, %v1583
    %v1585 = vpop.f32.mrb[0].mxu0
    %1586 = vdwg.mxu0
    %1587 = vmatprep.subr.mxu0 0.0
    %v1588 = vand.u32 %v1212, 4294901760
    %v1589 = vsub.f32 %v1212, %v1588
    %v1590 = vand.u32 %v1589, 4294901760
    %1591 = vmatpush1.msra.mxu0 %v1590
    %1592 = vmatprep.subr.mxu0 0.0
    %v1593 = vand.u32 %v1213, 4294901760
    %v1594 = vsub.f32 %v1213, %v1593
    %v1595 = vand.u32 %v1594, 4294901760
    %1596 = vmatpush1.msra.mxu0 %v1595
    %1597 = vmatprep.subr.mxu0 0.0
    %v1598 = vand.u32 %v1214, 4294901760
    %v1599 = vsub.f32 %v1214, %v1598
    %v1600 = vand.u32 %v1599, 4294901760
    %1601 = vmatpush1.msra.mxu0 %v1600
    %1602 = vmatprep.subr.mxu0 0.0
    %v1603 = vand.u32 %v1215, 4294901760
    %v1604 = vsub.f32 %v1215, %v1603
    %v1605 = vand.u32 %v1604, 4294901760
    %1606 = vmatpush1.msra.mxu0 %v1605
    %1607 = vmatprep.subr.mxu0 0.0
    %1608 = vmatpush1.msra.mxu0 0.0
    %1609 = vmatprep.subr.mxu0 0.0
    %1610 = vmatpush1.msra.mxu0 0.0
    %1611 = vmatprep.subr.mxu0 0.0
    %1612 = vmatpush1.msra.mxu0 0.0
    %1613 = vmatprep.subr.mxu0 0.0
    %1614 = vmatpush1.msra.mxu0 0.0
    %1615 = vmatprep.subr.mxu0 0.0
    %1616 = vmatpush1.msra.mxu0 0.0
    %1617 = vmatprep.subr.mxu0 0.0
    %1618 = vmatpush1.msra.mxu0 0.0
    %1619 = vmatprep.subr.mxu0 0.0
    %1620 = vmatpush1.msra.mxu0 0.0
    %1621 = vmatprep.subr.mxu0 0.0
    %1622 = vmatpush1.msra.mxu0 0.0
    %1623 = vmatprep.subr.mxu0 0.0
    %1624 = vmatpush1.msra.mxu0 0.0
    %1625 = vmatprep.subr.mxu0 0.0
    %1626 = vmatpush1.msra.mxu0 0.0
    %1627 = vmatprep.subr.mxu0 0.0
    %1628 = vmatpush1.msra.mxu0 0.0
    %1629 = vmatprep.subr.mxu0 0.0
    %1630 = vmatpush1.msra.mxu0 0.0
    %1631 = vmatprep.subr.mxu0 0.0
    %1632 = vmatpush1.msra.mxu0 0.0
    %1633 = vmatprep.subr.mxu0 0.0
    %1634 = vmatpush1.msra.mxu0 0.0
    %1635 = vmatprep.subr.mxu0 0.0
    %1636 = vmatpush1.msra.mxu0 0.0
    %1637 = vmatprep.subr.mxu0 0.0
    %1638 = vmatpush1.msra.mxu0 0.0
    %1639 = vmatprep.subr.mxu0 0.0
    %1640 = vmatpush1.msra.mxu0 0.0
    %1641 = vmatprep.subr.mxu0 0.0
    %1642 = vmatpush1.msra.mxu0 0.0
    %1643 = vmatprep.subr.mxu0 0.0
    %1644 = vmatpush1.msra.mxu0 0.0
    %1645 = vmatprep.subr.mxu0 0.0
    %1646 = vmatpush1.msra.mxu0 0.0
    %1647 = vmatprep.subr.mxu0 0.0
    %1648 = vmatpush1.msra.mxu0 0.0
    %1649 = vmatprep.subr.mxu0 0.0
    %1650 = vmatpush1.msra.mxu0 0.0
    %1651 = vmatprep.subr.mxu0 0.0
    %1652 = vmatpush1.msra.mxu0 0.0
    %1653 = vmatprep.subr.mxu0 0.0
    %1654 = vmatpush1.msra.mxu0 0.0
    %1655 = vmatprep.subr.mxu0 0.0
    %1656 = vmatpush1.msra.mxu0 0.0
    %1657 = vmatprep.subr.mxu0 0.0
    %1658 = vmatpush1.msra.mxu0 0.0
    %1659 = vmatprep.subr.mxu0 0.0
    %1660 = vmatpush1.msra.mxu0 0.0
    %1661 = vmatprep.subr.mxu0 0.0
    %1662 = vmatpush1.msra.mxu0 0.0
    %1663 = vmatprep.mubr.f32.mxu0 0.0
    %v1664 = vand.u32 %v1224, 4294901760
    %1665 = vmatmul.mubr.f32.gmra.mrb[0].mxu0 %v1664
    %v1666 = vpop.f32.mrb[0].mxu0
    %v1667 = vadd.f32 %v1576, %v1666
    %v1668 = vpop.f32.mrb[0].mxu0
    %1669 = vmatprep.mubr.f32.mxu0 0.0
    %v1670 = vand.u32 %v1227, 4294901760
    %1671 = vmatmul.mubr.f32.gmra.mrb[0].mxu0 %v1670
    %v1672 = vpop.f32.mrb[0].mxu0
    %v1673 = vadd.f32 %v1584, %v1672
    %v1674 = vpop.f32.mrb[0].mxu0
    %1675 = vdwg.mxu0
    %1676 = vmatprep.subr.mxu0 0.0
    %v1677 = vand.u32 %v1212, 4294901760
    %1678 = vmatpush1.msra.mxu0 %v1677
    %1679 = vmatprep.subr.mxu0 0.0
    %v1680 = vand.u32 %v1213, 4294901760
    %1681 = vmatpush1.msra.mxu0 %v1680
    %1682 = vmatprep.subr.mxu0 0.0
    %v1683 = vand.u32 %v1214, 4294901760
    %1684 = vmatpush1.msra.mxu0 %v1683
    %1685 = vmatprep.subr.mxu0 0.0
    %v1686 = vand.u32 %v1215, 4294901760
    %1687 = vmatpush1.msra.mxu0 %v1686
    %1688 = vmatprep.subr.mxu0 0.0
    %1689 = vmatpush1.msra.mxu0 0.0
    %1690 = vmatprep.subr.mxu0 0.0
    %1691 = vmatpush1.msra.mxu0 0.0
    %1692 = vmatprep.subr.mxu0 0.0
    %1693 = vmatpush1.msra.mxu0 0.0
    %1694 = vmatprep.subr.mxu0 0.0
    %1695 = vmatpush1.msra.mxu0 0.0
    %1696 = vmatprep.subr.mxu0 0.0
    %1697 = vmatpush1.msra.mxu0 0.0
    %1698 = vmatprep.subr.mxu0 0.0
    %1699 = vmatpush1.msra.mxu0 0.0
    %1700 = vmatprep.subr.mxu0 0.0
    %1701 = vmatpush1.msra.mxu0 0.0
    %1702 = vmatprep.subr.mxu0 0.0
    %1703 = vmatpush1.msra.mxu0 0.0
    %1704 = vmatprep.subr.mxu0 0.0
    %1705 = vmatpush1.msra.mxu0 0.0
    %1706 = vmatprep.subr.mxu0 0.0
    %1707 = vmatpush1.msra.mxu0 0.0
    %1708 = vmatprep.subr.mxu0 0.0
    %1709 = vmatpush1.msra.mxu0 0.0
    %1710 = vmatprep.subr.mxu0 0.0
    %1711 = vmatpush1.msra.mxu0 0.0
    %1712 = vmatprep.subr.mxu0 0.0
    %1713 = vmatpush1.msra.mxu0 0.0
    %1714 = vmatprep.subr.mxu0 0.0
    %1715 = vmatpush1.msra.mxu0 0.0
    %1716 = vmatprep.subr.mxu0 0.0
    %1717 = vmatpush1.msra.mxu0 0.0
    %1718 = vmatprep.subr.mxu0 0.0
    %1719 = vmatpush1.msra.mxu0 0.0
    %1720 = vmatprep.subr.mxu0 0.0
    %1721 = vmatpush1.msra.mxu0 0.0
    %1722 = vmatprep.subr.mxu0 0.0
    %1723 = vmatpush1.msra.mxu0 0.0
    %1724 = vmatprep.subr.mxu0 0.0
    %1725 = vmatpush1.msra.mxu0 0.0
    %1726 = vmatprep.subr.mxu0 0.0
    %1727 = vmatpush1.msra.mxu0 0.0
    %1728 = vmatprep.subr.mxu0 0.0
    %1729 = vmatpush1.msra.mxu0 0.0
    %1730 = vmatprep.subr.mxu0 0.0
    %1731 = vmatpush1.msra.mxu0 0.0
    %1732 = vmatprep.subr.mxu0 0.0
    %1733 = vmatpush1.msra.mxu0 0.0
    %1734 = vmatprep.subr.mxu0 0.0
    %1735 = vmatpush1.msra.mxu0 0.0
    %1736 = vmatprep.subr.mxu0 0.0
    %1737 = vmatpush1.msra.mxu0 0.0
    %1738 = vmatprep.subr.mxu0 0.0
    %1739 = vmatpush1.msra.mxu0 0.0
    %1740 = vmatprep.subr.mxu0 0.0
    %1741 = vmatpush1.msra.mxu0 0.0
    %1742 = vmatprep.subr.mxu0 0.0
    %1743 = vmatpush1.msra.mxu0 0.0
    %1744 = vmatprep.mubr.f32.mxu0 0.0
    %v1745 = vand.u32 %v1224, 4294901760
    %1746 = vmatmul.mubr.f32.gmra.mrb[0].mxu0 %v1745
    %v1747 = vpop.f32.mrb[0].mxu0
    %v1748 = vadd.f32 %v1667, %v1747
    %v1749 = vpop.f32.mrb[0].mxu0
    %1750 = vmatprep.mubr.f32.mxu0 0.0
    %v1751 = vand.u32 %v1227, 4294901760
    %1752 = vmatmul.mubr.f32.gmra.mrb[0].mxu0 %v1751
    %v1753 = vpop.f32.mrb[0].mxu0
    %v1754 = vadd.f32 %v1673, %v1753
    %v1755 = vpop.f32.mrb[0].mxu0
    %1756 = vdwg.mxu0
    %v1758 = vsel %vm128, %v654, 0
    %v1761 = vsel %vm128, %v1201, 0
    %1763 = vmatprep.subr.mxu0 0.0
    %v1764 = vand.u32 %v1761, 4294901760
    %1765 = vmatpush1.xpose.msra.mxu0 %v1764
    %1766 = vmatprep.subr.mxu0 0.0
    %1767 = vmatpush1.xpose.msra.mxu0 0.0
    %1768 = vmatprep.subr.mxu0 0.0
    %1769 = vmatpush1.xpose.msra.mxu0 0.0
    %1770 = vmatprep.subr.mxu0 0.0
    %1771 = vmatpush1.xpose.msra.mxu0 0.0
    %1772 = vmatprep.subr.mxu0 0.0
    %1773 = vmatpush1.xpose.msra.mxu0 0.0
    %1774 = vmatprep.subr.mxu0 0.0
    %1775 = vmatpush1.xpose.msra.mxu0 0.0
    %1776 = vmatprep.subr.mxu0 0.0
    %1777 = vmatpush1.xpose.msra.mxu0 0.0
    %1778 = vmatprep.subr.mxu0 0.0
    %1779 = vmatpush1.xpose.msra.mxu0 0.0
    %1780 = vmatprep.subr.mxu0 0.0
    %1781 = vmatpush1.xpose.msra.mxu0 0.0
    %1782 = vmatprep.subr.mxu0 0.0
    %1783 = vmatpush1.xpose.msra.mxu0 0.0
    %1784 = vmatprep.subr.mxu0 0.0
    %1785 = vmatpush1.xpose.msra.mxu0 0.0
    %1786 = vmatprep.subr.mxu0 0.0
    %1787 = vmatpush1.xpose.msra.mxu0 0.0
    %1788 = vmatprep.subr.mxu0 0.0
    %1789 = vmatpush1.xpose.msra.mxu0 0.0
    %1790 = vmatprep.subr.mxu0 0.0
    %1791 = vmatpush1.xpose.msra.mxu0 0.0
    %1792 = vmatprep.subr.mxu0 0.0
    %1793 = vmatpush1.xpose.msra.mxu0 0.0
    %1794 = vmatprep.subr.mxu0 0.0
    %1795 = vmatpush1.xpose.msra.mxu0 0.0
    %1796 = vmatprep.subr.mxu0 0.0
    %1797 = vmatpush1.xpose.msra.mxu0 0.0
    %1798 = vmatprep.subr.mxu0 0.0
    %1799 = vmatpush1.xpose.msra.mxu0 0.0
    %1800 = vmatprep.subr.mxu0 0.0
    %1801 = vmatpush1.xpose.msra.mxu0 0.0
    %1802 = vmatprep.subr.mxu0 0.0
    %1803 = vmatpush1.xpose.msra.mxu0 0.0
    %1804 = vmatprep.subr.mxu0 0.0
    %1805 = vmatpush1.xpose.msra.mxu0 0.0
    %1806 = vmatprep.subr.mxu0 0.0
    %1807 = vmatpush1.xpose.msra.mxu0 0.0
    %1808 = vmatprep.subr.mxu0 0.0
    %1809 = vmatpush1.xpose.msra.mxu0 0.0
    %1810 = vmatprep.subr.mxu0 0.0
    %1811 = vmatpush1.xpose.msra.mxu0 0.0
    %1812 = vmatprep.subr.mxu0 0.0
    %1813 = vmatpush1.xpose.msra.mxu0 0.0
    %1814 = vmatprep.subr.mxu0 0.0
    %1815 = vmatpush1.xpose.msra.mxu0 0.0
    %1816 = vmatprep.subr.mxu0 0.0
    %1817 = vmatpush1.xpose.msra.mxu0 0.0
    %1818 = vmatprep.subr.mxu0 0.0
    %1819 = vmatpush1.xpose.msra.mxu0 0.0
    %1820 = vmatprep.subr.mxu0 0.0
    %1821 = vmatpush1.xpose.msra.mxu0 0.0
    %1822 = vmatprep.subr.mxu0 0.0
    %1823 = vmatpush1.xpose.msra.mxu0 0.0
    %1824 = vmatprep.subr.mxu0 0.0
    %1825 = vmatpush1.xpose.msra.mxu0 0.0
    %1826 = vmatprep.subr.mxu0 0.0
    %1827 = vmatpush1.xpose.msra.mxu0 0.0
    %1828 = vmatprep.mubr.f32.mxu0 0.0
    %v1829 = vand.u32 %v1758, 4294901760
    %v1830 = vsub.f32 %v1758, %v1829
    %v1831 = vand.u32 %v1830, 4294901760
    %v1832 = vsub.f32 %v1830, %v1831
    %v1833 = vand.u32 %v1832, 4294901760
    %1834 = vmatmul.mubr.f32.gmra.mrb[0].mxu0 %v1833
    %v1835 = vpop.f32.mrb[0].mxu0
    %v1836 = vadd.f32 0.0, %v1835
    %v1837 = vpop.f32.mrb[0].mxu0
    %1838 = vdwg.mxu0
    %1839 = vmatprep.subr.mxu0 0.0
    %v1840 = vand.u32 %v1761, 4294901760
    %v1841 = vsub.f32 %v1761, %v1840
    %v1842 = vand.u32 %v1841, 4294901760
    %v1843 = vsub.f32 %v1841, %v1842
    %v1844 = vand.u32 %v1843, 4294901760
    %1845 = vmatpush1.xpose.msra.mxu0 %v1844
    %1846 = vmatprep.subr.mxu0 0.0
    %1847 = vmatpush1.xpose.msra.mxu0 0.0
    %1848 = vmatprep.subr.mxu0 0.0
    %1849 = vmatpush1.xpose.msra.mxu0 0.0
    %1850 = vmatprep.subr.mxu0 0.0
    %1851 = vmatpush1.xpose.msra.mxu0 0.0
    %1852 = vmatprep.subr.mxu0 0.0
    %1853 = vmatpush1.xpose.msra.mxu0 0.0
    %1854 = vmatprep.subr.mxu0 0.0
    %1855 = vmatpush1.xpose.msra.mxu0 0.0
    %1856 = vmatprep.subr.mxu0 0.0
    %1857 = vmatpush1.xpose.msra.mxu0 0.0
    %1858 = vmatprep.subr.mxu0 0.0
    %1859 = vmatpush1.xpose.msra.mxu0 0.0
    %1860 = vmatprep.subr.mxu0 0.0
    %1861 = vmatpush1.xpose.msra.mxu0 0.0
    %1862 = vmatprep.subr.mxu0 0.0
    %1863 = vmatpush1.xpose.msra.mxu0 0.0
    %1864 = vmatprep.subr.mxu0 0.0
    %1865 = vmatpush1.xpose.msra.mxu0 0.0
    %1866 = vmatprep.subr.mxu0 0.0
    %1867 = vmatpush1.xpose.msra.mxu0 0.0
    %1868 = vmatprep.subr.mxu0 0.0
    %1869 = vmatpush1.xpose.msra.mxu0 0.0
    %1870 = vmatprep.subr.mxu0 0.0
    %1871 = vmatpush1.xpose.msra.mxu0 0.0
    %1872 = vmatprep.subr.mxu0 0.0
    %1873 = vmatpush1.xpose.msra.mxu0 0.0
    %1874 = vmatprep.subr.mxu0 0.0
    %1875 = vmatpush1.xpose.msra.mxu0 0.0
    %1876 = vmatprep.subr.mxu0 0.0
    %1877 = vmatpush1.xpose.msra.mxu0 0.0
    %1878 = vmatprep.subr.mxu0 0.0
    %1879 = vmatpush1.xpose.msra.mxu0 0.0
    %1880 = vmatprep.subr.mxu0 0.0
    %1881 = vmatpush1.xpose.msra.mxu0 0.0
    %1882 = vmatprep.subr.mxu0 0.0
    %1883 = vmatpush1.xpose.msra.mxu0 0.0
    %1884 = vmatprep.subr.mxu0 0.0
    %1885 = vmatpush1.xpose.msra.mxu0 0.0
    %1886 = vmatprep.subr.mxu0 0.0
    %1887 = vmatpush1.xpose.msra.mxu0 0.0
    %1888 = vmatprep.subr.mxu0 0.0
    %1889 = vmatpush1.xpose.msra.mxu0 0.0
    %1890 = vmatprep.subr.mxu0 0.0
    %1891 = vmatpush1.xpose.msra.mxu0 0.0
    %1892 = vmatprep.subr.mxu0 0.0
    %1893 = vmatpush1.xpose.msra.mxu0 0.0
    %1894 = vmatprep.subr.mxu0 0.0
    %1895 = vmatpush1.xpose.msra.mxu0 0.0
    %1896 = vmatprep.subr.mxu0 0.0
    %1897 = vmatpush1.xpose.msra.mxu0 0.0
    %1898 = vmatprep.subr.mxu0 0.0
    %1899 = vmatpush1.xpose.msra.mxu0 0.0
    %1900 = vmatprep.subr.mxu0 0.0
    %1901 = vmatpush1.xpose.msra.mxu0 0.0
    %1902 = vmatprep.subr.mxu0 0.0
    %1903 = vmatpush1.xpose.msra.mxu0 0.0
    %1904 = vmatprep.subr.mxu0 0.0
    %1905 = vmatpush1.xpose.msra.mxu0 0.0
    %1906 = vmatprep.subr.mxu0 0.0
    %1907 = vmatpush1.xpose.msra.mxu0 0.0
    %1908 = vmatprep.mubr.f32.mxu0 0.0
    %v1909 = vand.u32 %v1758, 4294901760
    %1910 = vmatmul.mubr.f32.gmra.mrb[0].mxu0 %v1909
    %v1911 = vpop.f32.mrb[0].mxu0
    %v1912 = vadd.f32 %v1836, %v1911
    %v1913 = vpop.f32.mrb[0].mxu0
    %1914 = vdwg.mxu0
    %1915 = vmatprep.subr.mxu0 0.0
    %v1916 = vand.u32 %v1761, 4294901760
    %v1917 = vsub.f32 %v1761, %v1916
    %1918 = vmatpush1.xpose.msra.mxu0 %v1917
    %1919 = vmatprep.subr.mxu0 0.0
    %1920 = vmatpush1.xpose.msra.mxu0 0.0
    %1921 = vmatprep.subr.mxu0 0.0
    %1922 = vmatpush1.xpose.msra.mxu0 0.0
    %1923 = vmatprep.subr.mxu0 0.0
    %1924 = vmatpush1.xpose.msra.mxu0 0.0
    %1925 = vmatprep.subr.mxu0 0.0
    %1926 = vmatpush1.xpose.msra.mxu0 0.0
    %1927 = vmatprep.subr.mxu0 0.0
    %1928 = vmatpush1.xpose.msra.mxu0 0.0
    %1929 = vmatprep.subr.mxu0 0.0
    %1930 = vmatpush1.xpose.msra.mxu0 0.0
    %1931 = vmatprep.subr.mxu0 0.0
    %1932 = vmatpush1.xpose.msra.mxu0 0.0
    %1933 = vmatprep.subr.mxu0 0.0
    %1934 = vmatpush1.xpose.msra.mxu0 0.0
    %1935 = vmatprep.subr.mxu0 0.0
    %1936 = vmatpush1.xpose.msra.mxu0 0.0
    %1937 = vmatprep.subr.mxu0 0.0
    %1938 = vmatpush1.xpose.msra.mxu0 0.0
    %1939 = vmatprep.subr.mxu0 0.0
    %1940 = vmatpush1.xpose.msra.mxu0 0.0
    %1941 = vmatprep.subr.mxu0 0.0
    %1942 = vmatpush1.xpose.msra.mxu0 0.0
    %1943 = vmatprep.subr.mxu0 0.0
    %1944 = vmatpush1.xpose.msra.mxu0 0.0
    %1945 = vmatprep.subr.mxu0 0.0
    %1946 = vmatpush1.xpose.msra.mxu0 0.0
    %1947 = vmatprep.subr.mxu0 0.0
    %1948 = vmatpush1.xpose.msra.mxu0 0.0
    %1949 = vmatprep.subr.mxu0 0.0
    %1950 = vmatpush1.xpose.msra.mxu0 0.0
    %1951 = vmatprep.subr.mxu0 0.0
    %1952 = vmatpush1.xpose.msra.mxu0 0.0
    %1953 = vmatprep.subr.mxu0 0.0
    %1954 = vmatpush1.xpose.msra.mxu0 0.0
    %1955 = vmatprep.subr.mxu0 0.0
    %1956 = vmatpush1.xpose.msra.mxu0 0.0
    %1957 = vmatprep.subr.mxu0 0.0
    %1958 = vmatpush1.xpose.msra.mxu0 0.0
    %1959 = vmatprep.subr.mxu0 0.0
    %1960 = vmatpush1.xpose.msra.mxu0 0.0
    %1961 = vmatprep.subr.mxu0 0.0
    %1962 = vmatpush1.xpose.msra.mxu0 0.0
    %1963 = vmatprep.subr.mxu0 0.0
    %1964 = vmatpush1.xpose.msra.mxu0 0.0
    %1965 = vmatprep.subr.mxu0 0.0
    %1966 = vmatpush1.xpose.msra.mxu0 0.0
    %1967 = vmatprep.subr.mxu0 0.0
    %1968 = vmatpush1.xpose.msra.mxu0 0.0
    %1969 = vmatprep.subr.mxu0 0.0
    %1970 = vmatpush1.xpose.msra.mxu0 0.0
    %1971 = vmatprep.subr.mxu0 0.0
    %1972 = vmatpush1.xpose.msra.mxu0 0.0
    %1973 = vmatprep.subr.mxu0 0.0
    %1974 = vmatpush1.xpose.msra.mxu0 0.0
    %1975 = vmatprep.subr.mxu0 0.0
    %1976 = vmatpush1.xpose.msra.mxu0 0.0
    %1977 = vmatprep.subr.mxu0 0.0
    %1978 = vmatpush1.xpose.msra.mxu0 0.0
    %1979 = vmatprep.subr.mxu0 0.0
    %1980 = vmatpush1.xpose.msra.mxu0 0.0
    %1981 = vmatprep.mubr.f32.mxu0 0.0
    %v1982 = vand.u32 %v1758, 4294901760
    %v1983 = vsub.f32 %v1758, %v1982
    %1984 = vmatmul.mubr.f32.gmra.mrb[0].mxu0 %v1983
    %v1985 = vpop.f32.mrb[0].mxu0
    %v1986 = vadd.f32 %v1912, %v1985
    %v1987 = vpop.f32.mrb[0].mxu0
    %1988 = vdwg.mxu0
    %1989 = vmatprep.subr.mxu0 0.0
    %v1990 = vand.u32 %v1761, 4294901760
    %1991 = vmatpush1.xpose.msra.mxu0 %v1990
    %1992 = vmatprep.subr.mxu0 0.0
    %1993 = vmatpush1.xpose.msra.mxu0 0.0
    %1994 = vmatprep.subr.mxu0 0.0
    %1995 = vmatpush1.xpose.msra.mxu0 0.0
    %1996 = vmatprep.subr.mxu0 0.0
    %1997 = vmatpush1.xpose.msra.mxu0 0.0
    %1998 = vmatprep.subr.mxu0 0.0
    %1999 = vmatpush1.xpose.msra.mxu0 0.0
    %2000 = vmatprep.subr.mxu0 0.0
    %2001 = vmatpush1.xpose.msra.mxu0 0.0
    %2002 = vmatprep.subr.mxu0 0.0
    %2003 = vmatpush1.xpose.msra.mxu0 0.0
    %2004 = vmatprep.subr.mxu0 0.0
    %2005 = vmatpush1.xpose.msra.mxu0 0.0
    %2006 = vmatprep.subr.mxu0 0.0
    %2007 = vmatpush1.xpose.msra.mxu0 0.0
    %2008 = vmatprep.subr.mxu0 0.0
    %2009 = vmatpush1.xpose.msra.mxu0 0.0
    %2010 = vmatprep.subr.mxu0 0.0
    %2011 = vmatpush1.xpose.msra.mxu0 0.0
    %2012 = vmatprep.subr.mxu0 0.0
    %2013 = vmatpush1.xpose.msra.mxu0 0.0
    %2014 = vmatprep.subr.mxu0 0.0
    %2015 = vmatpush1.xpose.msra.mxu0 0.0
    %2016 = vmatprep.subr.mxu0 0.0
    %2017 = vmatpush1.xpose.msra.mxu0 0.0
    %2018 = vmatprep.subr.mxu0 0.0
    %2019 = vmatpush1.xpose.msra.mxu0 0.0
    %2020 = vmatprep.subr.mxu0 0.0
    %2021 = vmatpush1.xpose.msra.mxu0 0.0
    %2022 = vmatprep.subr.mxu0 0.0
    %2023 = vmatpush1.xpose.msra.mxu0 0.0
    %2024 = vmatprep.subr.mxu0 0.0
    %2025 = vmatpush1.xpose.msra.mxu0 0.0
    %2026 = vmatprep.subr.mxu0 0.0
    %2027 = vmatpush1.xpose.msra.mxu0 0.0
    %2028 = vmatprep.subr.mxu0 0.0
    %2029 = vmatpush1.xpose.msra.mxu0 0.0
    %2030 = vmatprep.subr.mxu0 0.0
    %2031 = vmatpush1.xpose.msra.mxu0 0.0
    %2032 = vmatprep.subr.mxu0 0.0
    %2033 = vmatpush1.xpose.msra.mxu0 0.0
    %2034 = vmatprep.subr.mxu0 0.0
    %2035 = vmatpush1.xpose.msra.mxu0 0.0
    %2036 = vmatprep.subr.mxu0 0.0
    %2037 = vmatpush1.xpose.msra.mxu0 0.0
    %2038 = vmatprep.subr.mxu0 0.0
    %2039 = vmatpush1.xpose.msra.mxu0 0.0
    %2040 = vmatprep.subr.mxu0 0.0
    %2041 = vmatpush1.xpose.msra.mxu0 0.0
    %2042 = vmatprep.subr.mxu0 0.0
    %2043 = vmatpush1.xpose.msra.mxu0 0.0
    %2044 = vmatprep.subr.mxu0 0.0
    %2045 = vmatpush1.xpose.msra.mxu0 0.0
    %2046 = vmatprep.subr.mxu0 0.0
    %2047 = vmatpush1.xpose.msra.mxu0 0.0
    %2048 = vmatprep.subr.mxu0 0.0
    %2049 = vmatpush1.xpose.msra.mxu0 0.0
    %2050 = vmatprep.subr.mxu0 0.0
    %2051 = vmatpush1.xpose.msra.mxu0 0.0
    %2052 = vmatprep.subr.mxu0 0.0
    %2053 = vmatpush1.xpose.msra.mxu0 0.0
    %2054 = vmatprep.mubr.f32.mxu0 0.0
    %v2055 = vand.u32 %v1758, 4294901760
    %v2056 = vsub.f32 %v1758, %v2055
    %v2057 = vand.u32 %v2056, 4294901760
    %2058 = vmatmul.mubr.f32.gmra.mrb[0].mxu0 %v2057
    %v2059 = vpop.f32.mrb[0].mxu0
    %v2060 = vadd.f32 %v1986, %v2059
    %v2061 = vpop.f32.mrb[0].mxu0
    %2062 = vdwg.mxu0
    %2063 = vmatprep.subr.mxu0 0.0
    %v2064 = vand.u32 %v1761, 4294901760
    %v2065 = vsub.f32 %v1761, %v2064
    %v2066 = vand.u32 %v2065, 4294901760
    %2067 = vmatpush1.xpose.msra.mxu0 %v2066
    %2068 = vmatprep.subr.mxu0 0.0
    %2069 = vmatpush1.xpose.msra.mxu0 0.0
    %2070 = vmatprep.subr.mxu0 0.0
    %2071 = vmatpush1.xpose.msra.mxu0 0.0
    %2072 = vmatprep.subr.mxu0 0.0
    %2073 = vmatpush1.xpose.msra.mxu0 0.0
    %2074 = vmatprep.subr.mxu0 0.0
    %2075 = vmatpush1.xpose.msra.mxu0 0.0
    %2076 = vmatprep.subr.mxu0 0.0
    %2077 = vmatpush1.xpose.msra.mxu0 0.0
    %2078 = vmatprep.subr.mxu0 0.0
    %2079 = vmatpush1.xpose.msra.mxu0 0.0
    %2080 = vmatprep.subr.mxu0 0.0
    %2081 = vmatpush1.xpose.msra.mxu0 0.0
    %2082 = vmatprep.subr.mxu0 0.0
    %2083 = vmatpush1.xpose.msra.mxu0 0.0
    %2084 = vmatprep.subr.mxu0 0.0
    %2085 = vmatpush1.xpose.msra.mxu0 0.0
    %2086 = vmatprep.subr.mxu0 0.0
    %2087 = vmatpush1.xpose.msra.mxu0 0.0
    %2088 = vmatprep.subr.mxu0 0.0
    %2089 = vmatpush1.xpose.msra.mxu0 0.0
    %2090 = vmatprep.subr.mxu0 0.0
    %2091 = vmatpush1.xpose.msra.mxu0 0.0
    %2092 = vmatprep.subr.mxu0 0.0
    %2093 = vmatpush1.xpose.msra.mxu0 0.0
    %2094 = vmatprep.subr.mxu0 0.0
    %2095 = vmatpush1.xpose.msra.mxu0 0.0
    %2096 = vmatprep.subr.mxu0 0.0
    %2097 = vmatpush1.xpose.msra.mxu0 0.0
    %2098 = vmatprep.subr.mxu0 0.0
    %2099 = vmatpush1.xpose.msra.mxu0 0.0
    %2100 = vmatprep.subr.mxu0 0.0
    %2101 = vmatpush1.xpose.msra.mxu0 0.0
    %2102 = vmatprep.subr.mxu0 0.0
    %2103 = vmatpush1.xpose.msra.mxu0 0.0
    %2104 = vmatprep.subr.mxu0 0.0
    %2105 = vmatpush1.xpose.msra.mxu0 0.0
    %2106 = vmatprep.subr.mxu0 0.0
    %2107 = vmatpush1.xpose.msra.mxu0 0.0
    %2108 = vmatprep.subr.mxu0 0.0
    %2109 = vmatpush1.xpose.msra.mxu0 0.0
    %2110 = vmatprep.subr.mxu0 0.0
    %2111 = vmatpush1.xpose.msra.mxu0 0.0
    %2112 = vmatprep.subr.mxu0 0.0
    %2113 = vmatpush1.xpose.msra.mxu0 0.0
    %2114 = vmatprep.subr.mxu0 0.0
    %2115 = vmatpush1.xpose.msra.mxu0 0.0
    %2116 = vmatprep.subr.mxu0 0.0
    %2117 = vmatpush1.xpose.msra.mxu0 0.0
    %2118 = vmatprep.subr.mxu0 0.0
    %2119 = vmatpush1.xpose.msra.mxu0 0.0
    %2120 = vmatprep.subr.mxu0 0.0
    %2121 = vmatpush1.xpose.msra.mxu0 0.0
    %2122 = vmatprep.subr.mxu0 0.0
    %2123 = vmatpush1.xpose.msra.mxu0 0.0
    %2124 = vmatprep.subr.mxu0 0.0
    %2125 = vmatpush1.xpose.msra.mxu0 0.0
    %2126 = vmatprep.subr.mxu0 0.0
    %2127 = vmatpush1.xpose.msra.mxu0 0.0
    %2128 = vmatprep.subr.mxu0 0.0
    %2129 = vmatpush1.xpose.msra.mxu0 0.0
    %2130 = vmatprep.mubr.f32.mxu0 0.0
    %v2131 = vand.u32 %v1758, 4294901760
    %2132 = vmatmul.mubr.f32.gmra.mrb[0].mxu0 %v2131
    %v2133 = vpop.f32.mrb[0].mxu0
    %v2134 = vadd.f32 %v2060, %v2133
    %v2135 = vpop.f32.mrb[0].mxu0
    %2136 = vdwg.mxu0
    %2137 = vmatprep.subr.mxu0 0.0
    %v2138 = vand.u32 %v1761, 4294901760
    %2139 = vmatpush1.xpose.msra.mxu0 %v2138
    %2140 = vmatprep.subr.mxu0 0.0
    %2141 = vmatpush1.xpose.msra.mxu0 0.0
    %2142 = vmatprep.subr.mxu0 0.0
    %2143 = vmatpush1.xpose.msra.mxu0 0.0
    %2144 = vmatprep.subr.mxu0 0.0
    %2145 = vmatpush1.xpose.msra.mxu0 0.0
    %2146 = vmatprep.subr.mxu0 0.0
    %2147 = vmatpush1.xpose.msra.mxu0 0.0
    %2148 = vmatprep.subr.mxu0 0.0
    %2149 = vmatpush1.xpose.msra.mxu0 0.0
    %2150 = vmatprep.subr.mxu0 0.0
    %2151 = vmatpush1.xpose.msra.mxu0 0.0
    %2152 = vmatprep.subr.mxu0 0.0
    %2153 = vmatpush1.xpose.msra.mxu0 0.0
    %2154 = vmatprep.subr.mxu0 0.0
    %2155 = vmatpush1.xpose.msra.mxu0 0.0
    %2156 = vmatprep.subr.mxu0 0.0
    %2157 = vmatpush1.xpose.msra.mxu0 0.0
    %2158 = vmatprep.subr.mxu0 0.0
    %2159 = vmatpush1.xpose.msra.mxu0 0.0
    %2160 = vmatprep.subr.mxu0 0.0
    %2161 = vmatpush1.xpose.msra.mxu0 0.0
    %2162 = vmatprep.subr.mxu0 0.0
    %2163 = vmatpush1.xpose.msra.mxu0 0.0
    %2164 = vmatprep.subr.mxu0 0.0
    %2165 = vmatpush1.xpose.msra.mxu0 0.0
    %2166 = vmatprep.subr.mxu0 0.0
    %2167 = vmatpush1.xpose.msra.mxu0 0.0
    %2168 = vmatprep.subr.mxu0 0.0
    %2169 = vmatpush1.xpose.msra.mxu0 0.0
    %2170 = vmatprep.subr.mxu0 0.0
    %2171 = vmatpush1.xpose.msra.mxu0 0.0
    %2172 = vmatprep.subr.mxu0 0.0
    %2173 = vmatpush1.xpose.msra.mxu0 0.0
    %2174 = vmatprep.subr.mxu0 0.0
    %2175 = vmatpush1.xpose.msra.mxu0 0.0
    %2176 = vmatprep.subr.mxu0 0.0
    %2177 = vmatpush1.xpose.msra.mxu0 0.0
    %2178 = vmatprep.subr.mxu0 0.0
    %2179 = vmatpush1.xpose.msra.mxu0 0.0
    %2180 = vmatprep.subr.mxu0 0.0
    %2181 = vmatpush1.xpose.msra.mxu0 0.0
    %2182 = vmatprep.subr.mxu0 0.0
    %2183 = vmatpush1.xpose.msra.mxu0 0.0
    %2184 = vmatprep.subr.mxu0 0.0
    %2185 = vmatpush1.xpose.msra.mxu0 0.0
    %2186 = vmatprep.subr.mxu0 0.0
    %2187 = vmatpush1.xpose.msra.mxu0 0.0
    %2188 = vmatprep.subr.mxu0 0.0
    %2189 = vmatpush1.xpose.msra.mxu0 0.0
    %2190 = vmatprep.subr.mxu0 0.0
    %2191 = vmatpush1.xpose.msra.mxu0 0.0
    %2192 = vmatprep.subr.mxu0 0.0
    %2193 = vmatpush1.xpose.msra.mxu0 0.0
    %2194 = vmatprep.subr.mxu0 0.0
    %2195 = vmatpush1.xpose.msra.mxu0 0.0
    %2196 = vmatprep.subr.mxu0 0.0
    %2197 = vmatpush1.xpose.msra.mxu0 0.0
    %2198 = vmatprep.subr.mxu0 0.0
    %2199 = vmatpush1.xpose.msra.mxu0 0.0
    %2200 = vmatprep.subr.mxu0 0.0
    %2201 = vmatpush1.xpose.msra.mxu0 0.0
    %2202 = vmatprep.mubr.f32.mxu0 0.0
    %v2203 = vand.u32 %v1758, 4294901760
    %2204 = vmatmul.mubr.f32.gmra.mrb[0].mxu0 %v2203
    %v2205 = vpop.f32.mrb[0].mxu0
    %v2206 = vadd.f32 %v2134, %v2205
    %v2207 = vpop.f32.mrb[0].mxu0
    %2208 = vdwg.mxu0
    %v2210 = vsel %vm128, %v660, 0
    %v2213 = vsel %vm128, %v1207, 0
    %2215 = vmatprep.subr.mxu0 0.0
    %v2216 = vand.u32 %v2213, 4294901760
    %2217 = vmatpush1.xpose.msra.mxu0 %v2216
    %2218 = vmatprep.subr.mxu0 0.0
    %2219 = vmatpush1.xpose.msra.mxu0 0.0
    %2220 = vmatprep.subr.mxu0 0.0
    %2221 = vmatpush1.xpose.msra.mxu0 0.0
    %2222 = vmatprep.subr.mxu0 0.0
    %2223 = vmatpush1.xpose.msra.mxu0 0.0
    %2224 = vmatprep.subr.mxu0 0.0
    %2225 = vmatpush1.xpose.msra.mxu0 0.0
    %2226 = vmatprep.subr.mxu0 0.0
    %2227 = vmatpush1.xpose.msra.mxu0 0.0
    %2228 = vmatprep.subr.mxu0 0.0
    %2229 = vmatpush1.xpose.msra.mxu0 0.0
    %2230 = vmatprep.subr.mxu0 0.0
    %2231 = vmatpush1.xpose.msra.mxu0 0.0
    %2232 = vmatprep.subr.mxu0 0.0
    %2233 = vmatpush1.xpose.msra.mxu0 0.0
    %2234 = vmatprep.subr.mxu0 0.0
    %2235 = vmatpush1.xpose.msra.mxu0 0.0
    %2236 = vmatprep.subr.mxu0 0.0
    %2237 = vmatpush1.xpose.msra.mxu0 0.0
    %2238 = vmatprep.subr.mxu0 0.0
    %2239 = vmatpush1.xpose.msra.mxu0 0.0
    %2240 = vmatprep.subr.mxu0 0.0
    %2241 = vmatpush1.xpose.msra.mxu0 0.0
    %2242 = vmatprep.subr.mxu0 0.0
    %2243 = vmatpush1.xpose.msra.mxu0 0.0
    %2244 = vmatprep.subr.mxu0 0.0
    %2245 = vmatpush1.xpose.msra.mxu0 0.0
    %2246 = vmatprep.subr.mxu0 0.0
    %2247 = vmatpush1.xpose.msra.mxu0 0.0
    %2248 = vmatprep.subr.mxu0 0.0
    %2249 = vmatpush1.xpose.msra.mxu0 0.0
    %2250 = vmatprep.subr.mxu0 0.0
    %2251 = vmatpush1.xpose.msra.mxu0 0.0
    %2252 = vmatprep.subr.mxu0 0.0
    %2253 = vmatpush1.xpose.msra.mxu0 0.0
    %2254 = vmatprep.subr.mxu0 0.0
    %2255 = vmatpush1.xpose.msra.mxu0 0.0
    %2256 = vmatprep.subr.mxu0 0.0
    %2257 = vmatpush1.xpose.msra.mxu0 0.0
    %2258 = vmatprep.subr.mxu0 0.0
    %2259 = vmatpush1.xpose.msra.mxu0 0.0
    %2260 = vmatprep.subr.mxu0 0.0
    %2261 = vmatpush1.xpose.msra.mxu0 0.0
    %2262 = vmatprep.subr.mxu0 0.0
    %2263 = vmatpush1.xpose.msra.mxu0 0.0
    %2264 = vmatprep.subr.mxu0 0.0
    %2265 = vmatpush1.xpose.msra.mxu0 0.0
    %2266 = vmatprep.subr.mxu0 0.0
    %2267 = vmatpush1.xpose.msra.mxu0 0.0
    %2268 = vmatprep.subr.mxu0 0.0
    %2269 = vmatpush1.xpose.msra.mxu0 0.0
    %2270 = vmatprep.subr.mxu0 0.0
    %2271 = vmatpush1.xpose.msra.mxu0 0.0
    %2272 = vmatprep.subr.mxu0 0.0
    %2273 = vmatpush1.xpose.msra.mxu0 0.0
    %2274 = vmatprep.subr.mxu0 0.0
    %2275 = vmatpush1.xpose.msra.mxu0 0.0
    %2276 = vmatprep.subr.mxu0 0.0
    %2277 = vmatpush1.xpose.msra.mxu0 0.0
    %2278 = vmatprep.subr.mxu0 0.0
    %2279 = vmatpush1.xpose.msra.mxu0 0.0
    %2280 = vmatprep.mubr.f32.mxu0 0.0
    %v2281 = vand.u32 %v2210, 4294901760
    %v2282 = vsub.f32 %v2210, %v2281
    %v2283 = vand.u32 %v2282, 4294901760
    %v2284 = vsub.f32 %v2282, %v2283
    %v2285 = vand.u32 %v2284, 4294901760
    %2286 = vmatmul.mubr.f32.gmra.mrb[0].mxu0 %v2285
    %v2287 = vpop.f32.mrb[0].mxu0
    %v2288 = vadd.f32 0.0, %v2287
    %v2289 = vpop.f32.mrb[0].mxu0
    %2290 = vdwg.mxu0
    %2291 = vmatprep.subr.mxu0 0.0
    %v2292 = vand.u32 %v2213, 4294901760
    %v2293 = vsub.f32 %v2213, %v2292
    %v2294 = vand.u32 %v2293, 4294901760
    %v2295 = vsub.f32 %v2293, %v2294
    %v2296 = vand.u32 %v2295, 4294901760
    %2297 = vmatpush1.xpose.msra.mxu0 %v2296
    %2298 = vmatprep.subr.mxu0 0.0
    %2299 = vmatpush1.xpose.msra.mxu0 0.0
    %2300 = vmatprep.subr.mxu0 0.0
    %2301 = vmatpush1.xpose.msra.mxu0 0.0
    %2302 = vmatprep.subr.mxu0 0.0
    %2303 = vmatpush1.xpose.msra.mxu0 0.0
    %2304 = vmatprep.subr.mxu0 0.0
    %2305 = vmatpush1.xpose.msra.mxu0 0.0
    %2306 = vmatprep.subr.mxu0 0.0
    %2307 = vmatpush1.xpose.msra.mxu0 0.0
    %2308 = vmatprep.subr.mxu0 0.0
    %2309 = vmatpush1.xpose.msra.mxu0 0.0
    %2310 = vmatprep.subr.mxu0 0.0
    %2311 = vmatpush1.xpose.msra.mxu0 0.0
    %2312 = vmatprep.subr.mxu0 0.0
    %2313 = vmatpush1.xpose.msra.mxu0 0.0
    %2314 = vmatprep.subr.mxu0 0.0
    %2315 = vmatpush1.xpose.msra.mxu0 0.0
    %2316 = vmatprep.subr.mxu0 0.0
    %2317 = vmatpush1.xpose.msra.mxu0 0.0
    %2318 = vmatprep.subr.mxu0 0.0
    %2319 = vmatpush1.xpose.msra.mxu0 0.0
    %2320 = vmatprep.subr.mxu0 0.0
    %2321 = vmatpush1.xpose.msra.mxu0 0.0
    %2322 = vmatprep.subr.mxu0 0.0
    %2323 = vmatpush1.xpose.msra.mxu0 0.0
    %2324 = vmatprep.subr.mxu0 0.0
    %2325 = vmatpush1.xpose.msra.mxu0 0.0
    %2326 = vmatprep.subr.mxu0 0.0
    %2327 = vmatpush1.xpose.msra.mxu0 0.0
    %2328 = vmatprep.subr.mxu0 0.0
    %2329 = vmatpush1.xpose.msra.mxu0 0.0
    %2330 = vmatprep.subr.mxu0 0.0
    %2331 = vmatpush1.xpose.msra.mxu0 0.0
    %2332 = vmatprep.subr.mxu0 0.0
    %2333 = vmatpush1.xpose.msra.mxu0 0.0
    %2334 = vmatprep.subr.mxu0 0.0
    %2335 = vmatpush1.xpose.msra.mxu0 0.0
    %2336 = vmatprep.subr.mxu0 0.0
    %2337 = vmatpush1.xpose.msra.mxu0 0.0
    %2338 = vmatprep.subr.mxu0 0.0
    %2339 = vmatpush1.xpose.msra.mxu0 0.0
    %2340 = vmatprep.subr.mxu0 0.0
    %2341 = vmatpush1.xpose.msra.mxu0 0.0
    %2342 = vmatprep.subr.mxu0 0.0
    %2343 = vmatpush1.xpose.msra.mxu0 0.0
    %2344 = vmatprep.subr.mxu0 0.0
    %2345 = vmatpush1.xpose.msra.mxu0 0.0
    %2346 = vmatprep.subr.mxu0 0.0
    %2347 = vmatpush1.xpose.msra.mxu0 0.0
    %2348 = vmatprep.subr.mxu0 0.0
    %2349 = vmatpush1.xpose.msra.mxu0 0.0
    %2350 = vmatprep.subr.mxu0 0.0
    %2351 = vmatpush1.xpose.msra.mxu0 0.0
    %2352 = vmatprep.subr.mxu0 0.0
    %2353 = vmatpush1.xpose.msra.mxu0 0.0
    %2354 = vmatprep.subr.mxu0 0.0
    %2355 = vmatpush1.xpose.msra.mxu0 0.0
    %2356 = vmatprep.subr.mxu0 0.0
    %2357 = vmatpush1.xpose.msra.mxu0 0.0
    %2358 = vmatprep.subr.mxu0 0.0
    %2359 = vmatpush1.xpose.msra.mxu0 0.0
    %2360 = vmatprep.mubr.f32.mxu0 0.0
    %v2361 = vand.u32 %v2210, 4294901760
    %2362 = vmatmul.mubr.f32.gmra.mrb[0].mxu0 %v2361
    %v2363 = vpop.f32.mrb[0].mxu0
    %v2364 = vadd.f32 %v2288, %v2363
    %v2365 = vpop.f32.mrb[0].mxu0
    %2366 = vdwg.mxu0
    %2367 = vmatprep.subr.mxu0 0.0
    %v2368 = vand.u32 %v2213, 4294901760
    %v2369 = vsub.f32 %v2213, %v2368
    %2370 = vmatpush1.xpose.msra.mxu0 %v2369
    %2371 = vmatprep.subr.mxu0 0.0
    %2372 = vmatpush1.xpose.msra.mxu0 0.0
    %2373 = vmatprep.subr.mxu0 0.0
    %2374 = vmatpush1.xpose.msra.mxu0 0.0
    %2375 = vmatprep.subr.mxu0 0.0
    %2376 = vmatpush1.xpose.msra.mxu0 0.0
    %2377 = vmatprep.subr.mxu0 0.0
    %2378 = vmatpush1.xpose.msra.mxu0 0.0
    %2379 = vmatprep.subr.mxu0 0.0
    %2380 = vmatpush1.xpose.msra.mxu0 0.0
    %2381 = vmatprep.subr.mxu0 0.0
    %2382 = vmatpush1.xpose.msra.mxu0 0.0
    %2383 = vmatprep.subr.mxu0 0.0
    %2384 = vmatpush1.xpose.msra.mxu0 0.0
    %2385 = vmatprep.subr.mxu0 0.0
    %2386 = vmatpush1.xpose.msra.mxu0 0.0
    %2387 = vmatprep.subr.mxu0 0.0
    %2388 = vmatpush1.xpose.msra.mxu0 0.0
    %2389 = vmatprep.subr.mxu0 0.0
    %2390 = vmatpush1.xpose.msra.mxu0 0.0
    %2391 = vmatprep.subr.mxu0 0.0
    %2392 = vmatpush1.xpose.msra.mxu0 0.0
    %2393 = vmatprep.subr.mxu0 0.0
    %2394 = vmatpush1.xpose.msra.mxu0 0.0
    %2395 = vmatprep.subr.mxu0 0.0
    %2396 = vmatpush1.xpose.msra.mxu0 0.0
    %2397 = vmatprep.subr.mxu0 0.0
    %2398 = vmatpush1.xpose.msra.mxu0 0.0
    %2399 = vmatprep.subr.mxu0 0.0
    %2400 = vmatpush1.xpose.msra.mxu0 0.0
    %2401 = vmatprep.subr.mxu0 0.0
    %2402 = vmatpush1.xpose.msra.mxu0 0.0
    %2403 = vmatprep.subr.mxu0 0.0
    %2404 = vmatpush1.xpose.msra.mxu0 0.0
    %2405 = vmatprep.subr.mxu0 0.0
    %2406 = vmatpush1.xpose.msra.mxu0 0.0
    %2407 = vmatprep.subr.mxu0 0.0
    %2408 = vmatpush1.xpose.msra.mxu0 0.0
    %2409 = vmatprep.subr.mxu0 0.0
    %2410 = vmatpush1.xpose.msra.mxu0 0.0
    %2411 = vmatprep.subr.mxu0 0.0
    %2412 = vmatpush1.xpose.msra.mxu0 0.0
    %2413 = vmatprep.subr.mxu0 0.0
    %2414 = vmatpush1.xpose.msra.mxu0 0.0
    %2415 = vmatprep.subr.mxu0 0.0
    %2416 = vmatpush1.xpose.msra.mxu0 0.0
    %2417 = vmatprep.subr.mxu0 0.0
    %2418 = vmatpush1.xpose.msra.mxu0 0.0
    %2419 = vmatprep.subr.mxu0 0.0
    %2420 = vmatpush1.xpose.msra.mxu0 0.0
    %2421 = vmatprep.subr.mxu0 0.0
    %2422 = vmatpush1.xpose.msra.mxu0 0.0
    %2423 = vmatprep.subr.mxu0 0.0
    %2424 = vmatpush1.xpose.msra.mxu0 0.0
    %2425 = vmatprep.subr.mxu0 0.0
    %2426 = vmatpush1.xpose.msra.mxu0 0.0
    %2427 = vmatprep.subr.mxu0 0.0
    %2428 = vmatpush1.xpose.msra.mxu0 0.0
    %2429 = vmatprep.subr.mxu0 0.0
    %2430 = vmatpush1.xpose.msra.mxu0 0.0
    %2431 = vmatprep.subr.mxu0 0.0
    %2432 = vmatpush1.xpose.msra.mxu0 0.0
    %2433 = vmatprep.mubr.f32.mxu0 0.0
    %v2434 = vand.u32 %v2210, 4294901760
    %v2435 = vsub.f32 %v2210, %v2434
    %2436 = vmatmul.mubr.f32.gmra.mrb[0].mxu0 %v2435
    %v2437 = vpop.f32.mrb[0].mxu0
    %v2438 = vadd.f32 %v2364, %v2437
    %v2439 = vpop.f32.mrb[0].mxu0
    %2440 = vdwg.mxu0
    %2441 = vmatprep.subr.mxu0 0.0
    %v2442 = vand.u32 %v2213, 4294901760
    %2443 = vmatpush1.xpose.msra.mxu0 %v2442
    %2444 = vmatprep.subr.mxu0 0.0
    %2445 = vmatpush1.xpose.msra.mxu0 0.0
    %2446 = vmatprep.subr.mxu0 0.0
    %2447 = vmatpush1.xpose.msra.mxu0 0.0
    %2448 = vmatprep.subr.mxu0 0.0
    %2449 = vmatpush1.xpose.msra.mxu0 0.0
    %2450 = vmatprep.subr.mxu0 0.0
    %2451 = vmatpush1.xpose.msra.mxu0 0.0
    %2452 = vmatprep.subr.mxu0 0.0
    %2453 = vmatpush1.xpose.msra.mxu0 0.0
    %2454 = vmatprep.subr.mxu0 0.0
    %2455 = vmatpush1.xpose.msra.mxu0 0.0
    %2456 = vmatprep.subr.mxu0 0.0
    %2457 = vmatpush1.xpose.msra.mxu0 0.0
    %2458 = vmatprep.subr.mxu0 0.0
    %2459 = vmatpush1.xpose.msra.mxu0 0.0
    %2460 = vmatprep.subr.mxu0 0.0
    %2461 = vmatpush1.xpose.msra.mxu0 0.0
    %2462 = vmatprep.subr.mxu0 0.0
    %2463 = vmatpush1.xpose.msra.mxu0 0.0
    %2464 = vmatprep.subr.mxu0 0.0
    %2465 = vmatpush1.xpose.msra.mxu0 0.0
    %2466 = vmatprep.subr.mxu0 0.0
    %2467 = vmatpush1.xpose.msra.mxu0 0.0
    %2468 = vmatprep.subr.mxu0 0.0
    %2469 = vmatpush1.xpose.msra.mxu0 0.0
    %2470 = vmatprep.subr.mxu0 0.0
    %2471 = vmatpush1.xpose.msra.mxu0 0.0
    %2472 = vmatprep.subr.mxu0 0.0
    %2473 = vmatpush1.xpose.msra.mxu0 0.0
    %2474 = vmatprep.subr.mxu0 0.0
    %2475 = vmatpush1.xpose.msra.mxu0 0.0
    %2476 = vmatprep.subr.mxu0 0.0
    %2477 = vmatpush1.xpose.msra.mxu0 0.0
    %2478 = vmatprep.subr.mxu0 0.0
    %2479 = vmatpush1.xpose.msra.mxu0 0.0
    %2480 = vmatprep.subr.mxu0 0.0
    %2481 = vmatpush1.xpose.msra.mxu0 0.0
    %2482 = vmatprep.subr.mxu0 0.0
    %2483 = vmatpush1.xpose.msra.mxu0 0.0
    %2484 = vmatprep.subr.mxu0 0.0
    %2485 = vmatpush1.xpose.msra.mxu0 0.0
    %2486 = vmatprep.subr.mxu0 0.0
    %2487 = vmatpush1.xpose.msra.mxu0 0.0
    %2488 = vmatprep.subr.mxu0 0.0
    %2489 = vmatpush1.xpose.msra.mxu0 0.0
    %2490 = vmatprep.subr.mxu0 0.0
    %2491 = vmatpush1.xpose.msra.mxu0 0.0
    %2492 = vmatprep.subr.mxu0 0.0
    %2493 = vmatpush1.xpose.msra.mxu0 0.0
    %2494 = vmatprep.subr.mxu0 0.0
    %2495 = vmatpush1.xpose.msra.mxu0 0.0
    %2496 = vmatprep.subr.mxu0 0.0
    %2497 = vmatpush1.xpose.msra.mxu0 0.0
    %2498 = vmatprep.subr.mxu0 0.0
    %2499 = vmatpush1.xpose.msra.mxu0 0.0
    %2500 = vmatprep.subr.mxu0 0.0
    %2501 = vmatpush1.xpose.msra.mxu0 0.0
    %2502 = vmatprep.subr.mxu0 0.0
    %2503 = vmatpush1.xpose.msra.mxu0 0.0
    %2504 = vmatprep.subr.mxu0 0.0
    %2505 = vmatpush1.xpose.msra.mxu0 0.0
    %2506 = vmatprep.mubr.f32.mxu0 0.0
    %v2507 = vand.u32 %v2210, 4294901760
    %v2508 = vsub.f32 %v2210, %v2507
    %v2509 = vand.u32 %v2508, 4294901760
    %2510 = vmatmul.mubr.f32.gmra.mrb[0].mxu0 %v2509
    %v2511 = vpop.f32.mrb[0].mxu0
    %v2512 = vadd.f32 %v2438, %v2511
    %v2513 = vpop.f32.mrb[0].mxu0
    %2514 = vdwg.mxu0
    %2515 = vmatprep.subr.mxu0 0.0
    %v2516 = vand.u32 %v2213, 4294901760
    %v2517 = vsub.f32 %v2213, %v2516
    %v2518 = vand.u32 %v2517, 4294901760
    %2519 = vmatpush1.xpose.msra.mxu0 %v2518
    %2520 = vmatprep.subr.mxu0 0.0
    %2521 = vmatpush1.xpose.msra.mxu0 0.0
    %2522 = vmatprep.subr.mxu0 0.0
    %2523 = vmatpush1.xpose.msra.mxu0 0.0
    %2524 = vmatprep.subr.mxu0 0.0
    %2525 = vmatpush1.xpose.msra.mxu0 0.0
    %2526 = vmatprep.subr.mxu0 0.0
    %2527 = vmatpush1.xpose.msra.mxu0 0.0
    %2528 = vmatprep.subr.mxu0 0.0
    %2529 = vmatpush1.xpose.msra.mxu0 0.0
    %2530 = vmatprep.subr.mxu0 0.0
    %2531 = vmatpush1.xpose.msra.mxu0 0.0
    %2532 = vmatprep.subr.mxu0 0.0
    %2533 = vmatpush1.xpose.msra.mxu0 0.0
    %2534 = vmatprep.subr.mxu0 0.0
    %2535 = vmatpush1.xpose.msra.mxu0 0.0
    %2536 = vmatprep.subr.mxu0 0.0
    %2537 = vmatpush1.xpose.msra.mxu0 0.0
    %2538 = vmatprep.subr.mxu0 0.0
    %2539 = vmatpush1.xpose.msra.mxu0 0.0
    %2540 = vmatprep.subr.mxu0 0.0
    %2541 = vmatpush1.xpose.msra.mxu0 0.0
    %2542 = vmatprep.subr.mxu0 0.0
    %2543 = vmatpush1.xpose.msra.mxu0 0.0
    %2544 = vmatprep.subr.mxu0 0.0
    %2545 = vmatpush1.xpose.msra.mxu0 0.0
    %2546 = vmatprep.subr.mxu0 0.0
    %2547 = vmatpush1.xpose.msra.mxu0 0.0
    %2548 = vmatprep.subr.mxu0 0.0
    %2549 = vmatpush1.xpose.msra.mxu0 0.0
    %2550 = vmatprep.subr.mxu0 0.0
    %2551 = vmatpush1.xpose.msra.mxu0 0.0
    %2552 = vmatprep.subr.mxu0 0.0
    %2553 = vmatpush1.xpose.msra.mxu0 0.0
    %2554 = vmatprep.subr.mxu0 0.0
    %2555 = vmatpush1.xpose.msra.mxu0 0.0
    %2556 = vmatprep.subr.mxu0 0.0
    %2557 = vmatpush1.xpose.msra.mxu0 0.0
    %2558 = vmatprep.subr.mxu0 0.0
    %2559 = vmatpush1.xpose.msra.mxu0 0.0
    %2560 = vmatprep.subr.mxu0 0.0
    %2561 = vmatpush1.xpose.msra.mxu0 0.0
    %2562 = vmatprep.subr.mxu0 0.0
    %2563 = vmatpush1.xpose.msra.mxu0 0.0
    %2564 = vmatprep.subr.mxu0 0.0
    %2565 = vmatpush1.xpose.msra.mxu0 0.0
    %2566 = vmatprep.subr.mxu0 0.0
    %2567 = vmatpush1.xpose.msra.mxu0 0.0
    %2568 = vmatprep.subr.mxu0 0.0
    %2569 = vmatpush1.xpose.msra.mxu0 0.0
    %2570 = vmatprep.subr.mxu0 0.0
    %2571 = vmatpush1.xpose.msra.mxu0 0.0
    %2572 = vmatprep.subr.mxu0 0.0
    %2573 = vmatpush1.xpose.msra.mxu0 0.0
    %2574 = vmatprep.subr.mxu0 0.0
    %2575 = vmatpush1.xpose.msra.mxu0 0.0
    %2576 = vmatprep.subr.mxu0 0.0
    %2577 = vmatpush1.xpose.msra.mxu0 0.0
    %2578 = vmatprep.subr.mxu0 0.0
    %2579 = vmatpush1.xpose.msra.mxu0 0.0
    %2580 = vmatprep.subr.mxu0 0.0
    %2581 = vmatpush1.xpose.msra.mxu0 0.0
    %2582 = vmatprep.mubr.f32.mxu0 0.0
    %v2583 = vand.u32 %v2210, 4294901760
    %2584 = vmatmul.mubr.f32.gmra.mrb[0].mxu0 %v2583
    %v2585 = vpop.f32.mrb[0].mxu0
    %v2586 = vadd.f32 %v2512, %v2585
    %v2587 = vpop.f32.mrb[0].mxu0
    %2588 = vdwg.mxu0
    %2589 = vmatprep.subr.mxu0 0.0
    %v2590 = vand.u32 %v2213, 4294901760
    %2591 = vmatpush1.xpose.msra.mxu0 %v2590
    %2592 = vmatprep.subr.mxu0 0.0
    %2593 = vmatpush1.xpose.msra.mxu0 0.0
    %2594 = vmatprep.subr.mxu0 0.0
    %2595 = vmatpush1.xpose.msra.mxu0 0.0
    %2596 = vmatprep.subr.mxu0 0.0
    %2597 = vmatpush1.xpose.msra.mxu0 0.0
    %2598 = vmatprep.subr.mxu0 0.0
    %2599 = vmatpush1.xpose.msra.mxu0 0.0
    %2600 = vmatprep.subr.mxu0 0.0
    %2601 = vmatpush1.xpose.msra.mxu0 0.0
    %2602 = vmatprep.subr.mxu0 0.0
    %2603 = vmatpush1.xpose.msra.mxu0 0.0
    %2604 = vmatprep.subr.mxu0 0.0
    %2605 = vmatpush1.xpose.msra.mxu0 0.0
    %2606 = vmatprep.subr.mxu0 0.0
    %2607 = vmatpush1.xpose.msra.mxu0 0.0
    %2608 = vmatprep.subr.mxu0 0.0
    %2609 = vmatpush1.xpose.msra.mxu0 0.0
    %2610 = vmatprep.subr.mxu0 0.0
    %2611 = vmatpush1.xpose.msra.mxu0 0.0
    %2612 = vmatprep.subr.mxu0 0.0
    %2613 = vmatpush1.xpose.msra.mxu0 0.0
    %2614 = vmatprep.subr.mxu0 0.0
    %2615 = vmatpush1.xpose.msra.mxu0 0.0
    %2616 = vmatprep.subr.mxu0 0.0
    %2617 = vmatpush1.xpose.msra.mxu0 0.0
    %2618 = vmatprep.subr.mxu0 0.0
    %2619 = vmatpush1.xpose.msra.mxu0 0.0
    %2620 = vmatprep.subr.mxu0 0.0
    %2621 = vmatpush1.xpose.msra.mxu0 0.0
    %2622 = vmatprep.subr.mxu0 0.0
    %2623 = vmatpush1.xpose.msra.mxu0 0.0
    %2624 = vmatprep.subr.mxu0 0.0
    %2625 = vmatpush1.xpose.msra.mxu0 0.0
    %2626 = vmatprep.subr.mxu0 0.0
    %2627 = vmatpush1.xpose.msra.mxu0 0.0
    %2628 = vmatprep.subr.mxu0 0.0
    %2629 = vmatpush1.xpose.msra.mxu0 0.0
    %2630 = vmatprep.subr.mxu0 0.0
    %2631 = vmatpush1.xpose.msra.mxu0 0.0
    %2632 = vmatprep.subr.mxu0 0.0
    %2633 = vmatpush1.xpose.msra.mxu0 0.0
    %2634 = vmatprep.subr.mxu0 0.0
    %2635 = vmatpush1.xpose.msra.mxu0 0.0
    %2636 = vmatprep.subr.mxu0 0.0
    %2637 = vmatpush1.xpose.msra.mxu0 0.0
    %2638 = vmatprep.subr.mxu0 0.0
    %2639 = vmatpush1.xpose.msra.mxu0 0.0
    %2640 = vmatprep.subr.mxu0 0.0
    %2641 = vmatpush1.xpose.msra.mxu0 0.0
    %2642 = vmatprep.subr.mxu0 0.0
    %2643 = vmatpush1.xpose.msra.mxu0 0.0
    %2644 = vmatprep.subr.mxu0 0.0
    %2645 = vmatpush1.xpose.msra.mxu0 0.0
    %2646 = vmatprep.subr.mxu0 0.0
    %2647 = vmatpush1.xpose.msra.mxu0 0.0
    %2648 = vmatprep.subr.mxu0 0.0
    %2649 = vmatpush1.xpose.msra.mxu0 0.0
    %2650 = vmatprep.subr.mxu0 0.0
    %2651 = vmatpush1.xpose.msra.mxu0 0.0
    %2652 = vmatprep.subr.mxu0 0.0
    %2653 = vmatpush1.xpose.msra.mxu0 0.0
    %2654 = vmatprep.mubr.f32.mxu0 0.0
    %v2655 = vand.u32 %v2210, 4294901760
    %2656 = vmatmul.mubr.f32.gmra.mrb[0].mxu0 %v2655
    %v2657 = vpop.f32.mrb[0].mxu0
    %v2658 = vadd.f32 %v2586, %v2657
    %v2659 = vpop.f32.mrb[0].mxu0
    %2660 = vdwg.mxu0
    %vm2661 = vcmask 64512
    %v2662 = vsel %vm2661, %v2206, -inf
    %2663 = vmax.xlane.f32.xlu0 %v2662
    %v2664 = vpop.xlane.xlu0 %2663
    %v2665 = vsel %vm2661, %v2658, -inf
    %2666 = vmax.xlane.f32.xlu0 %v2665
    %v2667 = vpop.xlane.xlu0 %2666
    %v2668 = vsub.f32 %v2206, %v2664
    %v2669 = vsub.f32 %v2658, %v2667
    %v2670 = vmul.f32 %v2668, 1.442695
    %v2671 = vpow.pop %v2670
    %v2672 = vmul.f32 %v2669, 1.442695
    %v2673 = vpow.pop %v2672
    %v2674 = vsel %vm2661, %v2671, 0.0
    %2675 = vadd.xlane.f32.xlu0 %v2674
    %v2676 = vpop.xlane.xlu0 %2675
    %v2677 = vsel %vm2661, %v2673, 0.0
    %2678 = vadd.xlane.f32.xlu0 %v2677
    %v2679 = vpop.xlane.xlu0 %2678
    %v2680 = vrcp.pop %v2676
    %v2681 = vrcp.pop %v2679
    %v2682 = vmul.f32 %v2676, %v2680
    %v2683 = vmul.f32 %v2679, %v2681
    %v2684 = vsub.f32 2.0, %v2682
    %v2685 = vsub.f32 2.0, %v2683
    %v2686 = vmul.f32 %v2680, %v2684
    %v2687 = vmul.f32 %v2681, %v2685
    %v2688 = vmul.f32 %v2671, %v2686
    %v2689 = vmul.f32 %v2673, %v2687
    %v2691 = vsel %vm2661, %v2688, 0
    %2693 = vmatprep.subr.mxu0 0.0
    %v2694 = vand.u32 %v1748, 4294901760
    %2695 = vmatpush1.msra.mxu0 %v2694
    %2696 = vmatprep.subr.mxu0 0.0
    %2697 = vmatpush1.msra.mxu0 0.0
    %2698 = vmatprep.subr.mxu0 0.0
    %2699 = vmatpush1.msra.mxu0 0.0
    %2700 = vmatprep.subr.mxu0 0.0
    %2701 = vmatpush1.msra.mxu0 0.0
    %2702 = vmatprep.subr.mxu0 0.0
    %2703 = vmatpush1.msra.mxu0 0.0
    %2704 = vmatprep.subr.mxu0 0.0
    %2705 = vmatpush1.msra.mxu0 0.0
    %2706 = vmatprep.subr.mxu0 0.0
    %2707 = vmatpush1.msra.mxu0 0.0
    %2708 = vmatprep.subr.mxu0 0.0
    %2709 = vmatpush1.msra.mxu0 0.0
    %2710 = vmatprep.subr.mxu0 0.0
    %2711 = vmatpush1.msra.mxu0 0.0
    %2712 = vmatprep.subr.mxu0 0.0
    %2713 = vmatpush1.msra.mxu0 0.0
    %2714 = vmatprep.subr.mxu0 0.0
    %2715 = vmatpush1.msra.mxu0 0.0
    %2716 = vmatprep.subr.mxu0 0.0
    %2717 = vmatpush1.msra.mxu0 0.0
    %2718 = vmatprep.subr.mxu0 0.0
    %2719 = vmatpush1.msra.mxu0 0.0
    %2720 = vmatprep.subr.mxu0 0.0
    %2721 = vmatpush1.msra.mxu0 0.0
    %2722 = vmatprep.subr.mxu0 0.0
    %2723 = vmatpush1.msra.mxu0 0.0
    %2724 = vmatprep.subr.mxu0 0.0
    %2725 = vmatpush1.msra.mxu0 0.0
    %2726 = vmatprep.subr.mxu0 0.0
    %2727 = vmatpush1.msra.mxu0 0.0
    %2728 = vmatprep.subr.mxu0 0.0
    %2729 = vmatpush1.msra.mxu0 0.0
    %2730 = vmatprep.subr.mxu0 0.0
    %2731 = vmatpush1.msra.mxu0 0.0
    %2732 = vmatprep.subr.mxu0 0.0
    %2733 = vmatpush1.msra.mxu0 0.0
    %2734 = vmatprep.subr.mxu0 0.0
    %2735 = vmatpush1.msra.mxu0 0.0
    %2736 = vmatprep.subr.mxu0 0.0
    %2737 = vmatpush1.msra.mxu0 0.0
    %2738 = vmatprep.subr.mxu0 0.0
    %2739 = vmatpush1.msra.mxu0 0.0
    %2740 = vmatprep.subr.mxu0 0.0
    %2741 = vmatpush1.msra.mxu0 0.0
    %2742 = vmatprep.subr.mxu0 0.0
    %2743 = vmatpush1.msra.mxu0 0.0
    %2744 = vmatprep.subr.mxu0 0.0
    %2745 = vmatpush1.msra.mxu0 0.0
    %2746 = vmatprep.subr.mxu0 0.0
    %2747 = vmatpush1.msra.mxu0 0.0
    %2748 = vmatprep.subr.mxu0 0.0
    %2749 = vmatpush1.msra.mxu0 0.0
    %2750 = vmatprep.subr.mxu0 0.0
    %2751 = vmatpush1.msra.mxu0 0.0
    %2752 = vmatprep.subr.mxu0 0.0
    %2753 = vmatpush1.msra.mxu0 0.0
    %2754 = vmatprep.subr.mxu0 0.0
    %2755 = vmatpush1.msra.mxu0 0.0
    %2756 = vmatprep.subr.mxu0 0.0
    %2757 = vmatpush1.msra.mxu0 0.0
    %2758 = vmatprep.mubr.f32.mxu0 0.0
    %v2759 = vand.u32 %v2691, 4294901760
    %v2760 = vsub.f32 %v2691, %v2759
    %v2761 = vand.u32 %v2760, 4294901760
    %v2762 = vsub.f32 %v2760, %v2761
    %v2763 = vand.u32 %v2762, 4294901760
    %2764 = vmatmul.mubr.f32.gmra.mrb[0].mxu0 %v2763
    %v2765 = vpop.f32.mrb[0].mxu0
    %v2766 = vadd.f32 0.0, %v2765
    %v2767 = vpop.f32.mrb[0].mxu0
    %2768 = vdwg.mxu0
    %2769 = vmatprep.subr.mxu0 0.0
    %v2770 = vand.u32 %v1748, 4294901760
    %v2771 = vsub.f32 %v1748, %v2770
    %v2772 = vand.u32 %v2771, 4294901760
    %v2773 = vsub.f32 %v2771, %v2772
    %v2774 = vand.u32 %v2773, 4294901760
    %2775 = vmatpush1.msra.mxu0 %v2774
    %2776 = vmatprep.subr.mxu0 0.0
    %2777 = vmatpush1.msra.mxu0 0.0
    %2778 = vmatprep.subr.mxu0 0.0
    %2779 = vmatpush1.msra.mxu0 0.0
    %2780 = vmatprep.subr.mxu0 0.0
    %2781 = vmatpush1.msra.mxu0 0.0
    %2782 = vmatprep.subr.mxu0 0.0
    %2783 = vmatpush1.msra.mxu0 0.0
    %2784 = vmatprep.subr.mxu0 0.0
    %2785 = vmatpush1.msra.mxu0 0.0
    %2786 = vmatprep.subr.mxu0 0.0
    %2787 = vmatpush1.msra.mxu0 0.0
    %2788 = vmatprep.subr.mxu0 0.0
    %2789 = vmatpush1.msra.mxu0 0.0
    %2790 = vmatprep.subr.mxu0 0.0
    %2791 = vmatpush1.msra.mxu0 0.0
    %2792 = vmatprep.subr.mxu0 0.0
    %2793 = vmatpush1.msra.mxu0 0.0
    %2794 = vmatprep.subr.mxu0 0.0
    %2795 = vmatpush1.msra.mxu0 0.0
    %2796 = vmatprep.subr.mxu0 0.0
    %2797 = vmatpush1.msra.mxu0 0.0
    %2798 = vmatprep.subr.mxu0 0.0
    %2799 = vmatpush1.msra.mxu0 0.0
    %2800 = vmatprep.subr.mxu0 0.0
    %2801 = vmatpush1.msra.mxu0 0.0
    %2802 = vmatprep.subr.mxu0 0.0
    %2803 = vmatpush1.msra.mxu0 0.0
    %2804 = vmatprep.subr.mxu0 0.0
    %2805 = vmatpush1.msra.mxu0 0.0
    %2806 = vmatprep.subr.mxu0 0.0
    %2807 = vmatpush1.msra.mxu0 0.0
    %2808 = vmatprep.subr.mxu0 0.0
    %2809 = vmatpush1.msra.mxu0 0.0
    %2810 = vmatprep.subr.mxu0 0.0
    %2811 = vmatpush1.msra.mxu0 0.0
    %2812 = vmatprep.subr.mxu0 0.0
    %2813 = vmatpush1.msra.mxu0 0.0
    %2814 = vmatprep.subr.mxu0 0.0
    %2815 = vmatpush1.msra.mxu0 0.0
    %2816 = vmatprep.subr.mxu0 0.0
    %2817 = vmatpush1.msra.mxu0 0.0
    %2818 = vmatprep.subr.mxu0 0.0
    %2819 = vmatpush1.msra.mxu0 0.0
    %2820 = vmatprep.subr.mxu0 0.0
    %2821 = vmatpush1.msra.mxu0 0.0
    %2822 = vmatprep.subr.mxu0 0.0
    %2823 = vmatpush1.msra.mxu0 0.0
    %2824 = vmatprep.subr.mxu0 0.0
    %2825 = vmatpush1.msra.mxu0 0.0
    %2826 = vmatprep.subr.mxu0 0.0
    %2827 = vmatpush1.msra.mxu0 0.0
    %2828 = vmatprep.subr.mxu0 0.0
    %2829 = vmatpush1.msra.mxu0 0.0
    %2830 = vmatprep.subr.mxu0 0.0
    %2831 = vmatpush1.msra.mxu0 0.0
    %2832 = vmatprep.subr.mxu0 0.0
    %2833 = vmatpush1.msra.mxu0 0.0
    %2834 = vmatprep.subr.mxu0 0.0
    %2835 = vmatpush1.msra.mxu0 0.0
    %2836 = vmatprep.subr.mxu0 0.0
    %2837 = vmatpush1.msra.mxu0 0.0
    %2838 = vmatprep.mubr.f32.mxu0 0.0
    %v2839 = vand.u32 %v2691, 4294901760
    %2840 = vmatmul.mubr.f32.gmra.mrb[0].mxu0 %v2839
    %v2841 = vpop.f32.mrb[0].mxu0
    %v2842 = vadd.f32 %v2766, %v2841
    %v2843 = vpop.f32.mrb[0].mxu0
    %2844 = vdwg.mxu0
    %2845 = vmatprep.subr.mxu0 0.0
    %v2846 = vand.u32 %v1748, 4294901760
    %v2847 = vsub.f32 %v1748, %v2846
    %2848 = vmatpush1.msra.mxu0 %v2847
    %2849 = vmatprep.subr.mxu0 0.0
    %2850 = vmatpush1.msra.mxu0 0.0
    %2851 = vmatprep.subr.mxu0 0.0
    %2852 = vmatpush1.msra.mxu0 0.0
    %2853 = vmatprep.subr.mxu0 0.0
    %2854 = vmatpush1.msra.mxu0 0.0
    %2855 = vmatprep.subr.mxu0 0.0
    %2856 = vmatpush1.msra.mxu0 0.0
    %2857 = vmatprep.subr.mxu0 0.0
    %2858 = vmatpush1.msra.mxu0 0.0
    %2859 = vmatprep.subr.mxu0 0.0
    %2860 = vmatpush1.msra.mxu0 0.0
    %2861 = vmatprep.subr.mxu0 0.0
    %2862 = vmatpush1.msra.mxu0 0.0
    %2863 = vmatprep.subr.mxu0 0.0
    %2864 = vmatpush1.msra.mxu0 0.0
    %2865 = vmatprep.subr.mxu0 0.0
    %2866 = vmatpush1.msra.mxu0 0.0
    %2867 = vmatprep.subr.mxu0 0.0
    %2868 = vmatpush1.msra.mxu0 0.0
    %2869 = vmatprep.subr.mxu0 0.0
    %2870 = vmatpush1.msra.mxu0 0.0
    %2871 = vmatprep.subr.mxu0 0.0
    %2872 = vmatpush1.msra.mxu0 0.0
    %2873 = vmatprep.subr.mxu0 0.0
    %2874 = vmatpush1.msra.mxu0 0.0
    %2875 = vmatprep.subr.mxu0 0.0
    %2876 = vmatpush1.msra.mxu0 0.0
    %2877 = vmatprep.subr.mxu0 0.0
    %2878 = vmatpush1.msra.mxu0 0.0
    %2879 = vmatprep.subr.mxu0 0.0
    %2880 = vmatpush1.msra.mxu0 0.0
    %2881 = vmatprep.subr.mxu0 0.0
    %2882 = vmatpush1.msra.mxu0 0.0
    %2883 = vmatprep.subr.mxu0 0.0
    %2884 = vmatpush1.msra.mxu0 0.0
    %2885 = vmatprep.subr.mxu0 0.0
    %2886 = vmatpush1.msra.mxu0 0.0
    %2887 = vmatprep.subr.mxu0 0.0
    %2888 = vmatpush1.msra.mxu0 0.0
    %2889 = vmatprep.subr.mxu0 0.0
    %2890 = vmatpush1.msra.mxu0 0.0
    %2891 = vmatprep.subr.mxu0 0.0
    %2892 = vmatpush1.msra.mxu0 0.0
    %2893 = vmatprep.subr.mxu0 0.0
    %2894 = vmatpush1.msra.mxu0 0.0
    %2895 = vmatprep.subr.mxu0 0.0
    %2896 = vmatpush1.msra.mxu0 0.0
    %2897 = vmatprep.subr.mxu0 0.0
    %2898 = vmatpush1.msra.mxu0 0.0
    %2899 = vmatprep.subr.mxu0 0.0
    %2900 = vmatpush1.msra.mxu0 0.0
    %2901 = vmatprep.subr.mxu0 0.0
    %2902 = vmatpush1.msra.mxu0 0.0
    %2903 = vmatprep.subr.mxu0 0.0
    %2904 = vmatpush1.msra.mxu0 0.0
    %2905 = vmatprep.subr.mxu0 0.0
    %2906 = vmatpush1.msra.mxu0 0.0
    %2907 = vmatprep.subr.mxu0 0.0
    %2908 = vmatpush1.msra.mxu0 0.0
    %2909 = vmatprep.subr.mxu0 0.0
    %2910 = vmatpush1.msra.mxu0 0.0
    %2911 = vmatprep.mubr.f32.mxu0 0.0
    %v2912 = vand.u32 %v2691, 4294901760
    %v2913 = vsub.f32 %v2691, %v2912
    %2914 = vmatmul.mubr.f32.gmra.mrb[0].mxu0 %v2913
    %v2915 = vpop.f32.mrb[0].mxu0
    %v2916 = vadd.f32 %v2842, %v2915
    %v2917 = vpop.f32.mrb[0].mxu0
    %2918 = vdwg.mxu0
    %2919 = vmatprep.subr.mxu0 0.0
    %v2920 = vand.u32 %v1748, 4294901760
    %2921 = vmatpush1.msra.mxu0 %v2920
    %2922 = vmatprep.subr.mxu0 0.0
    %2923 = vmatpush1.msra.mxu0 0.0
    %2924 = vmatprep.subr.mxu0 0.0
    %2925 = vmatpush1.msra.mxu0 0.0
    %2926 = vmatprep.subr.mxu0 0.0
    %2927 = vmatpush1.msra.mxu0 0.0
    %2928 = vmatprep.subr.mxu0 0.0
    %2929 = vmatpush1.msra.mxu0 0.0
    %2930 = vmatprep.subr.mxu0 0.0
    %2931 = vmatpush1.msra.mxu0 0.0
    %2932 = vmatprep.subr.mxu0 0.0
    %2933 = vmatpush1.msra.mxu0 0.0
    %2934 = vmatprep.subr.mxu0 0.0
    %2935 = vmatpush1.msra.mxu0 0.0
    %2936 = vmatprep.subr.mxu0 0.0
    %2937 = vmatpush1.msra.mxu0 0.0
    %2938 = vmatprep.subr.mxu0 0.0
    %2939 = vmatpush1.msra.mxu0 0.0
    %2940 = vmatprep.subr.mxu0 0.0
    %2941 = vmatpush1.msra.mxu0 0.0
    %2942 = vmatprep.subr.mxu0 0.0
    %2943 = vmatpush1.msra.mxu0 0.0
    %2944 = vmatprep.subr.mxu0 0.0
    %2945 = vmatpush1.msra.mxu0 0.0
    %2946 = vmatprep.subr.mxu0 0.0
    %2947 = vmatpush1.msra.mxu0 0.0
    %2948 = vmatprep.subr.mxu0 0.0
    %2949 = vmatpush1.msra.mxu0 0.0
    %2950 = vmatprep.subr.mxu0 0.0
    %2951 = vmatpush1.msra.mxu0 0.0
    %2952 = vmatprep.subr.mxu0 0.0
    %2953 = vmatpush1.msra.mxu0 0.0
    %2954 = vmatprep.subr.mxu0 0.0
    %2955 = vmatpush1.msra.mxu0 0.0
    %2956 = vmatprep.subr.mxu0 0.0
    %2957 = vmatpush1.msra.mxu0 0.0
    %2958 = vmatprep.subr.mxu0 0.0
    %2959 = vmatpush1.msra.mxu0 0.0
    %2960 = vmatprep.subr.mxu0 0.0
    %2961 = vmatpush1.msra.mxu0 0.0
    %2962 = vmatprep.subr.mxu0 0.0
    %2963 = vmatpush1.msra.mxu0 0.0
    %2964 = vmatprep.subr.mxu0 0.0
    %2965 = vmatpush1.msra.mxu0 0.0
    %2966 = vmatprep.subr.mxu0 0.0
    %2967 = vmatpush1.msra.mxu0 0.0
    %2968 = vmatprep.subr.mxu0 0.0
    %2969 = vmatpush1.msra.mxu0 0.0
    %2970 = vmatprep.subr.mxu0 0.0
    %2971 = vmatpush1.msra.mxu0 0.0
    %2972 = vmatprep.subr.mxu0 0.0
    %2973 = vmatpush1.msra.mxu0 0.0
    %2974 = vmatprep.subr.mxu0 0.0
    %2975 = vmatpush1.msra.mxu0 0.0
    %2976 = vmatprep.subr.mxu0 0.0
    %2977 = vmatpush1.msra.mxu0 0.0
    %2978 = vmatprep.subr.mxu0 0.0
    %2979 = vmatpush1.msra.mxu0 0.0
    %2980 = vmatprep.subr.mxu0 0.0
    %2981 = vmatpush1.msra.mxu0 0.0
    %2982 = vmatprep.subr.mxu0 0.0
    %2983 = vmatpush1.msra.mxu0 0.0
    %2984 = vmatprep.mubr.f32.mxu0 0.0
    %v2985 = vand.u32 %v2691, 4294901760
    %v2986 = vsub.f32 %v2691, %v2985
    %v2987 = vand.u32 %v2986, 4294901760
    %2988 = vmatmul.mubr.f32.gmra.mrb[0].mxu0 %v2987
    %v2989 = vpop.f32.mrb[0].mxu0
    %v2990 = vadd.f32 %v2916, %v2989
    %v2991 = vpop.f32.mrb[0].mxu0
    %2992 = vdwg.mxu0
    %2993 = vmatprep.subr.mxu0 0.0
    %v2994 = vand.u32 %v1748, 4294901760
    %v2995 = vsub.f32 %v1748, %v2994
    %v2996 = vand.u32 %v2995, 4294901760
    %2997 = vmatpush1.msra.mxu0 %v2996
    %2998 = vmatprep.subr.mxu0 0.0
    %2999 = vmatpush1.msra.mxu0 0.0
    %3000 = vmatprep.subr.mxu0 0.0
    %3001 = vmatpush1.msra.mxu0 0.0
    %3002 = vmatprep.subr.mxu0 0.0
    %3003 = vmatpush1.msra.mxu0 0.0
    %3004 = vmatprep.subr.mxu0 0.0
    %3005 = vmatpush1.msra.mxu0 0.0
    %3006 = vmatprep.subr.mxu0 0.0
    %3007 = vmatpush1.msra.mxu0 0.0
    %3008 = vmatprep.subr.mxu0 0.0
    %3009 = vmatpush1.msra.mxu0 0.0
    %3010 = vmatprep.subr.mxu0 0.0
    %3011 = vmatpush1.msra.mxu0 0.0
    %3012 = vmatprep.subr.mxu0 0.0
    %3013 = vmatpush1.msra.mxu0 0.0
    %3014 = vmatprep.subr.mxu0 0.0
    %3015 = vmatpush1.msra.mxu0 0.0
    %3016 = vmatprep.subr.mxu0 0.0
    %3017 = vmatpush1.msra.mxu0 0.0
    %3018 = vmatprep.subr.mxu0 0.0
    %3019 = vmatpush1.msra.mxu0 0.0
    %3020 = vmatprep.subr.mxu0 0.0
    %3021 = vmatpush1.msra.mxu0 0.0
    %3022 = vmatprep.subr.mxu0 0.0
    %3023 = vmatpush1.msra.mxu0 0.0
    %3024 = vmatprep.subr.mxu0 0.0
    %3025 = vmatpush1.msra.mxu0 0.0
    %3026 = vmatprep.subr.mxu0 0.0
    %3027 = vmatpush1.msra.mxu0 0.0
    %3028 = vmatprep.subr.mxu0 0.0
    %3029 = vmatpush1.msra.mxu0 0.0
    %3030 = vmatprep.subr.mxu0 0.0
    %3031 = vmatpush1.msra.mxu0 0.0
    %3032 = vmatprep.subr.mxu0 0.0
    %3033 = vmatpush1.msra.mxu0 0.0
    %3034 = vmatprep.subr.mxu0 0.0
    %3035 = vmatpush1.msra.mxu0 0.0
    %3036 = vmatprep.subr.mxu0 0.0
    %3037 = vmatpush1.msra.mxu0 0.0
    %3038 = vmatprep.subr.mxu0 0.0
    %3039 = vmatpush1.msra.mxu0 0.0
    %3040 = vmatprep.subr.mxu0 0.0
    %3041 = vmatpush1.msra.mxu0 0.0
    %3042 = vmatprep.subr.mxu0 0.0
    %3043 = vmatpush1.msra.mxu0 0.0
    %3044 = vmatprep.subr.mxu0 0.0
    %3045 = vmatpush1.msra.mxu0 0.0
    %3046 = vmatprep.subr.mxu0 0.0
    %3047 = vmatpush1.msra.mxu0 0.0
    %3048 = vmatprep.subr.mxu0 0.0
    %3049 = vmatpush1.msra.mxu0 0.0
    %3050 = vmatprep.subr.mxu0 0.0
    %3051 = vmatpush1.msra.mxu0 0.0
    %3052 = vmatprep.subr.mxu0 0.0
    %3053 = vmatpush1.msra.mxu0 0.0
    %3054 = vmatprep.subr.mxu0 0.0
    %3055 = vmatpush1.msra.mxu0 0.0
    %3056 = vmatprep.subr.mxu0 0.0
    %3057 = vmatpush1.msra.mxu0 0.0
    %3058 = vmatprep.subr.mxu0 0.0
    %3059 = vmatpush1.msra.mxu0 0.0
    %3060 = vmatprep.mubr.f32.mxu0 0.0
    %v3061 = vand.u32 %v2691, 4294901760
    %3062 = vmatmul.mubr.f32.gmra.mrb[0].mxu0 %v3061
    %v3063 = vpop.f32.mrb[0].mxu0
    %v3064 = vadd.f32 %v2990, %v3063
    %v3065 = vpop.f32.mrb[0].mxu0
    %3066 = vdwg.mxu0
    %3067 = vmatprep.subr.mxu0 0.0
    %v3068 = vand.u32 %v1748, 4294901760
    %3069 = vmatpush1.msra.mxu0 %v3068
    %3070 = vmatprep.subr.mxu0 0.0
    %3071 = vmatpush1.msra.mxu0 0.0
    %3072 = vmatprep.subr.mxu0 0.0
    %3073 = vmatpush1.msra.mxu0 0.0
    %3074 = vmatprep.subr.mxu0 0.0
    %3075 = vmatpush1.msra.mxu0 0.0
    %3076 = vmatprep.subr.mxu0 0.0
    %3077 = vmatpush1.msra.mxu0 0.0
    %3078 = vmatprep.subr.mxu0 0.0
    %3079 = vmatpush1.msra.mxu0 0.0
    %3080 = vmatprep.subr.mxu0 0.0
    %3081 = vmatpush1.msra.mxu0 0.0
    %3082 = vmatprep.subr.mxu0 0.0
    %3083 = vmatpush1.msra.mxu0 0.0
    %3084 = vmatprep.subr.mxu0 0.0
    %3085 = vmatpush1.msra.mxu0 0.0
    %3086 = vmatprep.subr.mxu0 0.0
    %3087 = vmatpush1.msra.mxu0 0.0
    %3088 = vmatprep.subr.mxu0 0.0
    %3089 = vmatpush1.msra.mxu0 0.0
    %3090 = vmatprep.subr.mxu0 0.0
    %3091 = vmatpush1.msra.mxu0 0.0
    %3092 = vmatprep.subr.mxu0 0.0
    %3093 = vmatpush1.msra.mxu0 0.0
    %3094 = vmatprep.subr.mxu0 0.0
    %3095 = vmatpush1.msra.mxu0 0.0
    %3096 = vmatprep.subr.mxu0 0.0
    %3097 = vmatpush1.msra.mxu0 0.0
    %3098 = vmatprep.subr.mxu0 0.0
    %3099 = vmatpush1.msra.mxu0 0.0
    %3100 = vmatprep.subr.mxu0 0.0
    %3101 = vmatpush1.msra.mxu0 0.0
    %3102 = vmatprep.subr.mxu0 0.0
    %3103 = vmatpush1.msra.mxu0 0.0
    %3104 = vmatprep.subr.mxu0 0.0
    %3105 = vmatpush1.msra.mxu0 0.0
    %3106 = vmatprep.subr.mxu0 0.0
    %3107 = vmatpush1.msra.mxu0 0.0
    %3108 = vmatprep.subr.mxu0 0.0
    %3109 = vmatpush1.msra.mxu0 0.0
    %3110 = vmatprep.subr.mxu0 0.0
    %3111 = vmatpush1.msra.mxu0 0.0
    %3112 = vmatprep.subr.mxu0 0.0
    %3113 = vmatpush1.msra.mxu0 0.0
    %3114 = vmatprep.subr.mxu0 0.0
    %3115 = vmatpush1.msra.mxu0 0.0
    %3116 = vmatprep.subr.mxu0 0.0
    %3117 = vmatpush1.msra.mxu0 0.0
    %3118 = vmatprep.subr.mxu0 0.0
    %3119 = vmatpush1.msra.mxu0 0.0
    %3120 = vmatprep.subr.mxu0 0.0
    %3121 = vmatpush1.msra.mxu0 0.0
    %3122 = vmatprep.subr.mxu0 0.0
    %3123 = vmatpush1.msra.mxu0 0.0
    %3124 = vmatprep.subr.mxu0 0.0
    %3125 = vmatpush1.msra.mxu0 0.0
    %3126 = vmatprep.subr.mxu0 0.0
    %3127 = vmatpush1.msra.mxu0 0.0
    %3128 = vmatprep.subr.mxu0 0.0
    %3129 = vmatpush1.msra.mxu0 0.0
    %3130 = vmatprep.subr.mxu0 0.0
    %3131 = vmatpush1.msra.mxu0 0.0
    %3132 = vmatprep.mubr.f32.mxu0 0.0
    %v3133 = vand.u32 %v2691, 4294901760
    %3134 = vmatmul.mubr.f32.gmra.mrb[0].mxu0 %v3133
    %v3135 = vpop.f32.mrb[0].mxu0
    %v3136 = vadd.f32 %v3064, %v3135
    %v3137 = vpop.f32.mrb[0].mxu0
    %3138 = vdwg.mxu0
    %v3140 = vsel %vm2661, %v2689, 0
    %3142 = vmatprep.subr.mxu0 0.0
    %v3143 = vand.u32 %v1754, 4294901760
    %3144 = vmatpush1.msra.mxu0 %v3143
    %3145 = vmatprep.subr.mxu0 0.0
    %3146 = vmatpush1.msra.mxu0 0.0
    %3147 = vmatprep.subr.mxu0 0.0
    %3148 = vmatpush1.msra.mxu0 0.0
    %3149 = vmatprep.subr.mxu0 0.0
    %3150 = vmatpush1.msra.mxu0 0.0
    %3151 = vmatprep.subr.mxu0 0.0
    %3152 = vmatpush1.msra.mxu0 0.0
    %3153 = vmatprep.subr.mxu0 0.0
    %3154 = vmatpush1.msra.mxu0 0.0
    %3155 = vmatprep.subr.mxu0 0.0
    %3156 = vmatpush1.msra.mxu0 0.0
    %3157 = vmatprep.subr.mxu0 0.0
    %3158 = vmatpush1.msra.mxu0 0.0
    %3159 = vmatprep.subr.mxu0 0.0
    %3160 = vmatpush1.msra.mxu0 0.0
    %3161 = vmatprep.subr.mxu0 0.0
    %3162 = vmatpush1.msra.mxu0 0.0
    %3163 = vmatprep.subr.mxu0 0.0
    %3164 = vmatpush1.msra.mxu0 0.0
    %3165 = vmatprep.subr.mxu0 0.0
    %3166 = vmatpush1.msra.mxu0 0.0
    %3167 = vmatprep.subr.mxu0 0.0
    %3168 = vmatpush1.msra.mxu0 0.0
    %3169 = vmatprep.subr.mxu0 0.0
    %3170 = vmatpush1.msra.mxu0 0.0
    %3171 = vmatprep.subr.mxu0 0.0
    %3172 = vmatpush1.msra.mxu0 0.0
    %3173 = vmatprep.subr.mxu0 0.0
    %3174 = vmatpush1.msra.mxu0 0.0
    %3175 = vmatprep.subr.mxu0 0.0
    %3176 = vmatpush1.msra.mxu0 0.0
    %3177 = vmatprep.subr.mxu0 0.0
    %3178 = vmatpush1.msra.mxu0 0.0
    %3179 = vmatprep.subr.mxu0 0.0
    %3180 = vmatpush1.msra.mxu0 0.0
    %3181 = vmatprep.subr.mxu0 0.0
    %3182 = vmatpush1.msra.mxu0 0.0
    %3183 = vmatprep.subr.mxu0 0.0
    %3184 = vmatpush1.msra.mxu0 0.0
    %3185 = vmatprep.subr.mxu0 0.0
    %3186 = vmatpush1.msra.mxu0 0.0
    %3187 = vmatprep.subr.mxu0 0.0
    %3188 = vmatpush1.msra.mxu0 0.0
    %3189 = vmatprep.subr.mxu0 0.0
    %3190 = vmatpush1.msra.mxu0 0.0
    %3191 = vmatprep.subr.mxu0 0.0
    %3192 = vmatpush1.msra.mxu0 0.0
    %3193 = vmatprep.subr.mxu0 0.0
    %3194 = vmatpush1.msra.mxu0 0.0
    %3195 = vmatprep.subr.mxu0 0.0
    %3196 = vmatpush1.msra.mxu0 0.0
    %3197 = vmatprep.subr.mxu0 0.0
    %3198 = vmatpush1.msra.mxu0 0.0
    %3199 = vmatprep.subr.mxu0 0.0
    %3200 = vmatpush1.msra.mxu0 0.0
    %3201 = vmatprep.subr.mxu0 0.0
    %3202 = vmatpush1.msra.mxu0 0.0
    %3203 = vmatprep.subr.mxu0 0.0
    %3204 = vmatpush1.msra.mxu0 0.0
    %3205 = vmatprep.subr.mxu0 0.0
    %3206 = vmatpush1.msra.mxu0 0.0
    %3207 = vmatprep.mubr.f32.mxu0 0.0
    %v3208 = vand.u32 %v3140, 4294901760
    %v3209 = vsub.f32 %v3140, %v3208
    %v3210 = vand.u32 %v3209, 4294901760
    %v3211 = vsub.f32 %v3209, %v3210
    %v3212 = vand.u32 %v3211, 4294901760
    %3213 = vmatmul.mubr.f32.gmra.mrb[0].mxu0 %v3212
    %v3214 = vpop.f32.mrb[0].mxu0
    %v3215 = vadd.f32 0.0, %v3214
    %v3216 = vpop.f32.mrb[0].mxu0
    %3217 = vdwg.mxu0
    %3218 = vmatprep.subr.mxu0 0.0
    %v3219 = vand.u32 %v1754, 4294901760
    %v3220 = vsub.f32 %v1754, %v3219
    %v3221 = vand.u32 %v3220, 4294901760
    %v3222 = vsub.f32 %v3220, %v3221
    %v3223 = vand.u32 %v3222, 4294901760
    %3224 = vmatpush1.msra.mxu0 %v3223
    %3225 = vmatprep.subr.mxu0 0.0
    %3226 = vmatpush1.msra.mxu0 0.0
    %3227 = vmatprep.subr.mxu0 0.0
    %3228 = vmatpush1.msra.mxu0 0.0
    %3229 = vmatprep.subr.mxu0 0.0
    %3230 = vmatpush1.msra.mxu0 0.0
    %3231 = vmatprep.subr.mxu0 0.0
    %3232 = vmatpush1.msra.mxu0 0.0
    %3233 = vmatprep.subr.mxu0 0.0
    %3234 = vmatpush1.msra.mxu0 0.0
    %3235 = vmatprep.subr.mxu0 0.0
    %3236 = vmatpush1.msra.mxu0 0.0
    %3237 = vmatprep.subr.mxu0 0.0
    %3238 = vmatpush1.msra.mxu0 0.0
    %3239 = vmatprep.subr.mxu0 0.0
    %3240 = vmatpush1.msra.mxu0 0.0
    %3241 = vmatprep.subr.mxu0 0.0
    %3242 = vmatpush1.msra.mxu0 0.0
    %3243 = vmatprep.subr.mxu0 0.0
    %3244 = vmatpush1.msra.mxu0 0.0
    %3245 = vmatprep.subr.mxu0 0.0
    %3246 = vmatpush1.msra.mxu0 0.0
    %3247 = vmatprep.subr.mxu0 0.0
    %3248 = vmatpush1.msra.mxu0 0.0
    %3249 = vmatprep.subr.mxu0 0.0
    %3250 = vmatpush1.msra.mxu0 0.0
    %3251 = vmatprep.subr.mxu0 0.0
    %3252 = vmatpush1.msra.mxu0 0.0
    %3253 = vmatprep.subr.mxu0 0.0
    %3254 = vmatpush1.msra.mxu0 0.0
    %3255 = vmatprep.subr.mxu0 0.0
    %3256 = vmatpush1.msra.mxu0 0.0
    %3257 = vmatprep.subr.mxu0 0.0
    %3258 = vmatpush1.msra.mxu0 0.0
    %3259 = vmatprep.subr.mxu0 0.0
    %3260 = vmatpush1.msra.mxu0 0.0
    %3261 = vmatprep.subr.mxu0 0.0
    %3262 = vmatpush1.msra.mxu0 0.0
    %3263 = vmatprep.subr.mxu0 0.0
    %3264 = vmatpush1.msra.mxu0 0.0
    %3265 = vmatprep.subr.mxu0 0.0
    %3266 = vmatpush1.msra.mxu0 0.0
    %3267 = vmatprep.subr.mxu0 0.0
    %3268 = vmatpush1.msra.mxu0 0.0
    %3269 = vmatprep.subr.mxu0 0.0
    %3270 = vmatpush1.msra.mxu0 0.0
    %3271 = vmatprep.subr.mxu0 0.0
    %3272 = vmatpush1.msra.mxu0 0.0
    %3273 = vmatprep.subr.mxu0 0.0
    %3274 = vmatpush1.msra.mxu0 0.0
    %3275 = vmatprep.subr.mxu0 0.0
    %3276 = vmatpush1.msra.mxu0 0.0
    %3277 = vmatprep.subr.mxu0 0.0
    %3278 = vmatpush1.msra.mxu0 0.0
    %3279 = vmatprep.subr.mxu0 0.0
    %3280 = vmatpush1.msra.mxu0 0.0
    %3281 = vmatprep.subr.mxu0 0.0
    %3282 = vmatpush1.msra.mxu0 0.0
    %3283 = vmatprep.subr.mxu0 0.0
    %3284 = vmatpush1.msra.mxu0 0.0
    %3285 = vmatprep.subr.mxu0 0.0
    %3286 = vmatpush1.msra.mxu0 0.0
    %3287 = vmatprep.mubr.f32.mxu0 0.0
    %v3288 = vand.u32 %v3140, 4294901760
    %3289 = vmatmul.mubr.f32.gmra.mrb[0].mxu0 %v3288
    %v3290 = vpop.f32.mrb[0].mxu0
    %v3291 = vadd.f32 %v3215, %v3290
    %v3292 = vpop.f32.mrb[0].mxu0
    %3293 = vdwg.mxu0
    %3294 = vmatprep.subr.mxu0 0.0
    %v3295 = vand.u32 %v1754, 4294901760
    %v3296 = vsub.f32 %v1754, %v3295
    %3297 = vmatpush1.msra.mxu0 %v3296
    %3298 = vmatprep.subr.mxu0 0.0
    %3299 = vmatpush1.msra.mxu0 0.0
    %3300 = vmatprep.subr.mxu0 0.0
    %3301 = vmatpush1.msra.mxu0 0.0
    %3302 = vmatprep.subr.mxu0 0.0
    %3303 = vmatpush1.msra.mxu0 0.0
    %3304 = vmatprep.subr.mxu0 0.0
    %3305 = vmatpush1.msra.mxu0 0.0
    %3306 = vmatprep.subr.mxu0 0.0
    %3307 = vmatpush1.msra.mxu0 0.0
    %3308 = vmatprep.subr.mxu0 0.0
    %3309 = vmatpush1.msra.mxu0 0.0
    %3310 = vmatprep.subr.mxu0 0.0
    %3311 = vmatpush1.msra.mxu0 0.0
    %3312 = vmatprep.subr.mxu0 0.0
    %3313 = vmatpush1.msra.mxu0 0.0
    %3314 = vmatprep.subr.mxu0 0.0
    %3315 = vmatpush1.msra.mxu0 0.0
    %3316 = vmatprep.subr.mxu0 0.0
    %3317 = vmatpush1.msra.mxu0 0.0
    %3318 = vmatprep.subr.mxu0 0.0
    %3319 = vmatpush1.msra.mxu0 0.0
    %3320 = vmatprep.subr.mxu0 0.0
    %3321 = vmatpush1.msra.mxu0 0.0
    %3322 = vmatprep.subr.mxu0 0.0
    %3323 = vmatpush1.msra.mxu0 0.0
    %3324 = vmatprep.subr.mxu0 0.0
    %3325 = vmatpush1.msra.mxu0 0.0
    %3326 = vmatprep.subr.mxu0 0.0
    %3327 = vmatpush1.msra.mxu0 0.0
    %3328 = vmatprep.subr.mxu0 0.0
    %3329 = vmatpush1.msra.mxu0 0.0
    %3330 = vmatprep.subr.mxu0 0.0
    %3331 = vmatpush1.msra.mxu0 0.0
    %3332 = vmatprep.subr.mxu0 0.0
    %3333 = vmatpush1.msra.mxu0 0.0
    %3334 = vmatprep.subr.mxu0 0.0
    %3335 = vmatpush1.msra.mxu0 0.0
    %3336 = vmatprep.subr.mxu0 0.0
    %3337 = vmatpush1.msra.mxu0 0.0
    %3338 = vmatprep.subr.mxu0 0.0
    %3339 = vmatpush1.msra.mxu0 0.0
    %3340 = vmatprep.subr.mxu0 0.0
    %3341 = vmatpush1.msra.mxu0 0.0
    %3342 = vmatprep.subr.mxu0 0.0
    %3343 = vmatpush1.msra.mxu0 0.0
    %3344 = vmatprep.subr.mxu0 0.0
    %3345 = vmatpush1.msra.mxu0 0.0
    %3346 = vmatprep.subr.mxu0 0.0
    %3347 = vmatpush1.msra.mxu0 0.0
    %3348 = vmatprep.subr.mxu0 0.0
    %3349 = vmatpush1.msra.mxu0 0.0
    %3350 = vmatprep.subr.mxu0 0.0
    %3351 = vmatpush1.msra.mxu0 0.0
    %3352 = vmatprep.subr.mxu0 0.0
    %3353 = vmatpush1.msra.mxu0 0.0
    %3354 = vmatprep.subr.mxu0 0.0
    %3355 = vmatpush1.msra.mxu0 0.0
    %3356 = vmatprep.subr.mxu0 0.0
    %3357 = vmatpush1.msra.mxu0 0.0
    %3358 = vmatprep.subr.mxu0 0.0
    %3359 = vmatpush1.msra.mxu0 0.0
    %3360 = vmatprep.mubr.f32.mxu0 0.0
    %v3361 = vand.u32 %v3140, 4294901760
    %v3362 = vsub.f32 %v3140, %v3361
    %3363 = vmatmul.mubr.f32.gmra.mrb[0].mxu0 %v3362
    %v3364 = vpop.f32.mrb[0].mxu0
    %v3365 = vadd.f32 %v3291, %v3364
    %v3366 = vpop.f32.mrb[0].mxu0
    %3367 = vdwg.mxu0
    %3368 = vmatprep.subr.mxu0 0.0
    %v3369 = vand.u32 %v1754, 4294901760
    %3370 = vmatpush1.msra.mxu0 %v3369
    %3371 = vmatprep.subr.mxu0 0.0
    %3372 = vmatpush1.msra.mxu0 0.0
    %3373 = vmatprep.subr.mxu0 0.0
    %3374 = vmatpush1.msra.mxu0 0.0
    %3375 = vmatprep.subr.mxu0 0.0
    %3376 = vmatpush1.msra.mxu0 0.0
    %3377 = vmatprep.subr.mxu0 0.0
    %3378 = vmatpush1.msra.mxu0 0.0
    %3379 = vmatprep.subr.mxu0 0.0
    %3380 = vmatpush1.msra.mxu0 0.0
    %3381 = vmatprep.subr.mxu0 0.0
    %3382 = vmatpush1.msra.mxu0 0.0
    %3383 = vmatprep.subr.mxu0 0.0
    %3384 = vmatpush1.msra.mxu0 0.0
    %3385 = vmatprep.subr.mxu0 0.0
    %3386 = vmatpush1.msra.mxu0 0.0
    %3387 = vmatprep.subr.mxu0 0.0
    %3388 = vmatpush1.msra.mxu0 0.0
    %3389 = vmatprep.subr.mxu0 0.0
    %3390 = vmatpush1.msra.mxu0 0.0
    %3391 = vmatprep.subr.mxu0 0.0
    %3392 = vmatpush1.msra.mxu0 0.0
    %3393 = vmatprep.subr.mxu0 0.0
    %3394 = vmatpush1.msra.mxu0 0.0
    %3395 = vmatprep.subr.mxu0 0.0
    %3396 = vmatpush1.msra.mxu0 0.0
    %3397 = vmatprep.subr.mxu0 0.0
    %3398 = vmatpush1.msra.mxu0 0.0
    %3399 = vmatprep.subr.mxu0 0.0
    %3400 = vmatpush1.msra.mxu0 0.0
    %3401 = vmatprep.subr.mxu0 0.0
    %3402 = vmatpush1.msra.mxu0 0.0
    %3403 = vmatprep.subr.mxu0 0.0
    %3404 = vmatpush1.msra.mxu0 0.0
    %3405 = vmatprep.subr.mxu0 0.0
    %3406 = vmatpush1.msra.mxu0 0.0
    %3407 = vmatprep.subr.mxu0 0.0
    %3408 = vmatpush1.msra.mxu0 0.0
    %3409 = vmatprep.subr.mxu0 0.0
    %3410 = vmatpush1.msra.mxu0 0.0
    %3411 = vmatprep.subr.mxu0 0.0
    %3412 = vmatpush1.msra.mxu0 0.0
    %3413 = vmatprep.subr.mxu0 0.0
    %3414 = vmatpush1.msra.mxu0 0.0
    %3415 = vmatprep.subr.mxu0 0.0
    %3416 = vmatpush1.msra.mxu0 0.0
    %3417 = vmatprep.subr.mxu0 0.0
    %3418 = vmatpush1.msra.mxu0 0.0
    %3419 = vmatprep.subr.mxu0 0.0
    %3420 = vmatpush1.msra.mxu0 0.0
    %3421 = vmatprep.subr.mxu0 0.0
    %3422 = vmatpush1.msra.mxu0 0.0
    %3423 = vmatprep.subr.mxu0 0.0
    %3424 = vmatpush1.msra.mxu0 0.0
    %3425 = vmatprep.subr.mxu0 0.0
    %3426 = vmatpush1.msra.mxu0 0.0
    %3427 = vmatprep.subr.mxu0 0.0
    %3428 = vmatpush1.msra.mxu0 0.0
    %3429 = vmatprep.subr.mxu0 0.0
    %3430 = vmatpush1.msra.mxu0 0.0
    %3431 = vmatprep.subr.mxu0 0.0
    %3432 = vmatpush1.msra.mxu0 0.0
    %3433 = vmatprep.mubr.f32.mxu0 0.0
    %v3434 = vand.u32 %v3140, 4294901760
    %v3435 = vsub.f32 %v3140, %v3434
    %v3436 = vand.u32 %v3435, 4294901760
    %3437 = vmatmul.mubr.f32.gmra.mrb[0].mxu0 %v3436
    %v3438 = vpop.f32.mrb[0].mxu0
    %v3439 = vadd.f32 %v3365, %v3438
    %v3440 = vpop.f32.mrb[0].mxu0
    %3441 = vdwg.mxu0
    %3442 = vmatprep.subr.mxu0 0.0
    %v3443 = vand.u32 %v1754, 4294901760
    %v3444 = vsub.f32 %v1754, %v3443
    %v3445 = vand.u32 %v3444, 4294901760
    %3446 = vmatpush1.msra.mxu0 %v3445
    %3447 = vmatprep.subr.mxu0 0.0
    %3448 = vmatpush1.msra.mxu0 0.0
    %3449 = vmatprep.subr.mxu0 0.0
    %3450 = vmatpush1.msra.mxu0 0.0
    %3451 = vmatprep.subr.mxu0 0.0
    %3452 = vmatpush1.msra.mxu0 0.0
    %3453 = vmatprep.subr.mxu0 0.0
    %3454 = vmatpush1.msra.mxu0 0.0
    %3455 = vmatprep.subr.mxu0 0.0
    %3456 = vmatpush1.msra.mxu0 0.0
    %3457 = vmatprep.subr.mxu0 0.0
    %3458 = vmatpush1.msra.mxu0 0.0
    %3459 = vmatprep.subr.mxu0 0.0
    %3460 = vmatpush1.msra.mxu0 0.0
    %3461 = vmatprep.subr.mxu0 0.0
    %3462 = vmatpush1.msra.mxu0 0.0
    %3463 = vmatprep.subr.mxu0 0.0
    %3464 = vmatpush1.msra.mxu0 0.0
    %3465 = vmatprep.subr.mxu0 0.0
    %3466 = vmatpush1.msra.mxu0 0.0
    %3467 = vmatprep.subr.mxu0 0.0
    %3468 = vmatpush1.msra.mxu0 0.0
    %3469 = vmatprep.subr.mxu0 0.0
    %3470 = vmatpush1.msra.mxu0 0.0
    %3471 = vmatprep.subr.mxu0 0.0
    %3472 = vmatpush1.msra.mxu0 0.0
    %3473 = vmatprep.subr.mxu0 0.0
    %3474 = vmatpush1.msra.mxu0 0.0
    %3475 = vmatprep.subr.mxu0 0.0
    %3476 = vmatpush1.msra.mxu0 0.0
    %3477 = vmatprep.subr.mxu0 0.0
    %3478 = vmatpush1.msra.mxu0 0.0
    %3479 = vmatprep.subr.mxu0 0.0
    %3480 = vmatpush1.msra.mxu0 0.0
    %3481 = vmatprep.subr.mxu0 0.0
    %3482 = vmatpush1.msra.mxu0 0.0
    %3483 = vmatprep.subr.mxu0 0.0
    %3484 = vmatpush1.msra.mxu0 0.0
    %3485 = vmatprep.subr.mxu0 0.0
    %3486 = vmatpush1.msra.mxu0 0.0
    %3487 = vmatprep.subr.mxu0 0.0
    %3488 = vmatpush1.msra.mxu0 0.0
    %3489 = vmatprep.subr.mxu0 0.0
    %3490 = vmatpush1.msra.mxu0 0.0
    %3491 = vmatprep.subr.mxu0 0.0
    %3492 = vmatpush1.msra.mxu0 0.0
    %3493 = vmatprep.subr.mxu0 0.0
    %3494 = vmatpush1.msra.mxu0 0.0
    %3495 = vmatprep.subr.mxu0 0.0
    %3496 = vmatpush1.msra.mxu0 0.0
    %3497 = vmatprep.subr.mxu0 0.0
    %3498 = vmatpush1.msra.mxu0 0.0
    %3499 = vmatprep.subr.mxu0 0.0
    %3500 = vmatpush1.msra.mxu0 0.0
    %3501 = vmatprep.subr.mxu0 0.0
    %3502 = vmatpush1.msra.mxu0 0.0
    %3503 = vmatprep.subr.mxu0 0.0
    %3504 = vmatpush1.msra.mxu0 0.0
    %3505 = vmatprep.subr.mxu0 0.0
    %3506 = vmatpush1.msra.mxu0 0.0
    %3507 = vmatprep.subr.mxu0 0.0
    %3508 = vmatpush1.msra.mxu0 0.0
    %3509 = vmatprep.mubr.f32.mxu0 0.0
    %v3510 = vand.u32 %v3140, 4294901760
    %3511 = vmatmul.mubr.f32.gmra.mrb[0].mxu0 %v3510
    %v3512 = vpop.f32.mrb[0].mxu0
    %v3513 = vadd.f32 %v3439, %v3512
    %v3514 = vpop.f32.mrb[0].mxu0
    %3515 = vdwg.mxu0
    %3516 = vmatprep.subr.mxu0 0.0
    %v3517 = vand.u32 %v1754, 4294901760
    %3518 = vmatpush1.msra.mxu0 %v3517
    %3519 = vmatprep.subr.mxu0 0.0
    %3520 = vmatpush1.msra.mxu0 0.0
    %3521 = vmatprep.subr.mxu0 0.0
    %3522 = vmatpush1.msra.mxu0 0.0
    %3523 = vmatprep.subr.mxu0 0.0
    %3524 = vmatpush1.msra.mxu0 0.0
    %3525 = vmatprep.subr.mxu0 0.0
    %3526 = vmatpush1.msra.mxu0 0.0
    %3527 = vmatprep.subr.mxu0 0.0
    %3528 = vmatpush1.msra.mxu0 0.0
    %3529 = vmatprep.subr.mxu0 0.0
    %3530 = vmatpush1.msra.mxu0 0.0
    %3531 = vmatprep.subr.mxu0 0.0
    %3532 = vmatpush1.msra.mxu0 0.0
    %3533 = vmatprep.subr.mxu0 0.0
    %3534 = vmatpush1.msra.mxu0 0.0
    %3535 = vmatprep.subr.mxu0 0.0
    %3536 = vmatpush1.msra.mxu0 0.0
    %3537 = vmatprep.subr.mxu0 0.0
    %3538 = vmatpush1.msra.mxu0 0.0
    %3539 = vmatprep.subr.mxu0 0.0
    %3540 = vmatpush1.msra.mxu0 0.0
    %3541 = vmatprep.subr.mxu0 0.0
    %3542 = vmatpush1.msra.mxu0 0.0
    %3543 = vmatprep.subr.mxu0 0.0
    %3544 = vmatpush1.msra.mxu0 0.0
    %3545 = vmatprep.subr.mxu0 0.0
    %3546 = vmatpush1.msra.mxu0 0.0
    %3547 = vmatprep.subr.mxu0 0.0
    %3548 = vmatpush1.msra.mxu0 0.0
    %3549 = vmatprep.subr.mxu0 0.0
    %3550 = vmatpush1.msra.mxu0 0.0
    %3551 = vmatprep.subr.mxu0 0.0
    %3552 = vmatpush1.msra.mxu0 0.0
    %3553 = vmatprep.subr.mxu0 0.0
    %3554 = vmatpush1.msra.mxu0 0.0
    %3555 = vmatprep.subr.mxu0 0.0
    %3556 = vmatpush1.msra.mxu0 0.0
    %3557 = vmatprep.subr.mxu0 0.0
    %3558 = vmatpush1.msra.mxu0 0.0
    %3559 = vmatprep.subr.mxu0 0.0
    %3560 = vmatpush1.msra.mxu0 0.0
    %3561 = vmatprep.subr.mxu0 0.0
    %3562 = vmatpush1.msra.mxu0 0.0
    %3563 = vmatprep.subr.mxu0 0.0
    %3564 = vmatpush1.msra.mxu0 0.0
    %3565 = vmatprep.subr.mxu0 0.0
    %3566 = vmatpush1.msra.mxu0 0.0
    %3567 = vmatprep.subr.mxu0 0.0
    %3568 = vmatpush1.msra.mxu0 0.0
    %3569 = vmatprep.subr.mxu0 0.0
    %3570 = vmatpush1.msra.mxu0 0.0
    %3571 = vmatprep.subr.mxu0 0.0
    %3572 = vmatpush1.msra.mxu0 0.0
    %3573 = vmatprep.subr.mxu0 0.0
    %3574 = vmatpush1.msra.mxu0 0.0
    %3575 = vmatprep.subr.mxu0 0.0
    %3576 = vmatpush1.msra.mxu0 0.0
    %3577 = vmatprep.subr.mxu0 0.0
    %3578 = vmatpush1.msra.mxu0 0.0
    %3579 = vmatprep.subr.mxu0 0.0
    %3580 = vmatpush1.msra.mxu0 0.0
    %3581 = vmatprep.mubr.f32.mxu0 0.0
    %v3582 = vand.u32 %v3140, 4294901760
    %3583 = vmatmul.mubr.f32.gmra.mrb[0].mxu0 %v3582
    %v3584 = vpop.f32.mrb[0].mxu0
    %v3585 = vadd.f32 %v3513, %v3584
    %v3586 = vpop.f32.mrb[0].mxu0
    %3587 = vdwg.mxu0
    %3588 = vst.msk [vmem:[#allocation13] sm:$0xff] %vm128, %v3136
    %3589 = vst.msk [vmem:[#allocation13 + $0x8] sm:$0xff] %vm128, %v3585
    // Predicated region
    $region62: #{tpu_custom_call.1} parent=1 // pred_check
      _
    $region63: #{tpu_custom_call.1} parent=1 // pred_check_branch
      %3591 = sbr.rel (0) target = $region65
    $region64: #{tpu_custom_call.1} parent=1 // pred_region
      %s3593 = ssub.s32 256, 256
      %3594 = vsyncadd [#allocation4], %s3593
      %s3595 = sshll.u32 [#allocation13], 4
      %s3596 = int_to_ptr.vmem [resolvable:$true] %s3595
      %3601 = dma.vmem_to_hbm [thread:$0]  %s3596, 256, %s9, [#allocation4], 128, 128, 8
    $region65: #{tpu_custom_call.1} parent=1 // pred_fallthru
      _
    // Predicated region
    $region66: #{tpu_custom_call.1} parent=1 // pred_check
      _
    $region67: #{tpu_custom_call.1} parent=1 // pred_check_branch
      %3603 = sbr.rel (0) target = $region69
    $region68: #{tpu_custom_call.1} parent=1 // pred_region
      %3604 = dma.done [#allocation4], 256
    $region69: #{tpu_custom_call.1} parent=1 // pred_fallthru
      _
    %3605 = vsyncpa [#allocation3], 1
    %3606 = vsyncpa [#allocation6], 1
    %3607 = vsyncpa [#allocation9], 1
    %3608 = vsyncpa [#allocation12], 1
    %3609 = vsyncpa [#allocation4], 1

// kernel: tpu_custom_call.1
$region0: #{tpu_custom_call.1}
  #allocation0 [shape = 'u32[]', space=smem, size = 0x4, offset = 0x4, fixed_abs, tag = 'smem constant byte address 0x4 - core index']
  #allocation1 [shape = 'u32[144,128]{1,0:T(1,128)}', space=vmem, size = 0x12000, scoped, tag = 'internal scratch']
  %s0 = inlined_call_operand.hbm [shape: f32[2,8,32], index: 0, kind: input, shape index: {}]
  %s1 = inlined_call_operand.hbm [shape: f32[2,8,32], index: 1, kind: input, shape index: {}]
  %s2 = inlined_call_operand.hbm [shape: f32[2,8,32], index: 2, kind: input, shape index: {}]
  %s3 = inlined_call_operand.hbm [shape: f32[32,32], index: 3, kind: input, shape index: {}]
  %s4 = inlined_call_operand.hbm [shape: f32[32,32], index: 4, kind: input, shape index: {}]
  %s5 = inlined_call_operand.hbm [shape: f32[32,32], index: 5, kind: input, shape index: {}]
  %s6 = inlined_call_operand.vmem [shape: f32[1,32], index: 6, kind: input, shape index: {}]
  %s7 = inlined_call_operand.vmem [shape: f32[1,32], index: 7, kind: input, shape index: {}]
  %s8 = inlined_call_operand.vmem [shape: f32[1,32], index: 8, kind: input, shape index: {}]
  %s9 = inlined_call_operand.hbm [shape: f32[2,8,32], index: 9, kind: output, shape index: {}]
  %s10 = sld [smem:[#allocation0]]
  $region70: #{tpu_custom_call.1} parent=0
    _
  %s12 = ssub.s32 1, %s10
  %s13 = scalar_select 0, %s12, %s10
  $region1: #{tpu_custom_call.1} parent=0
    #allocation2 [shape = 'u8[8192]{0}', space=vmem, size = 0x2000, scoped, tag = 'input window, operand 0, single buffered']
    #allocation3 [shape = 's32[1]{0}', space=sflag, size = 0x4, scoped, tag = 'scoped memory for tpu_custom_call.1']
    #allocation4 [shape = 's32[1]{0}', space=sflag, size = 0x4, scoped, tag = 'scoped memory for tpu_custom_call.1']
    #allocation5 [shape = 'u8[8192]{0}', space=vmem, size = 0x2000, scoped, tag = 'input window, operand 1, single buffered']
    #allocation6 [shape = 's32[1]{0}', space=sflag, size = 0x4, scoped, tag = 'scoped memory for tpu_custom_call.1']
    #allocation7 [shape = 'u8[8192]{0}', space=vmem, size = 0x2000, scoped, tag = 'input window, operand 2, single buffered']
    #allocation8 [shape = 'u8[16384]{0}', space=vmem, size = 0x4000, scoped, tag = 'input window, operand 3, single buffered']
    #allocation9 [shape = 's32[1]{0}', space=sflag, size = 0x4, scoped, tag = 'scoped memory for tpu_custom_call.1']
    #allocation10 [shape = 'u8[16384]{0}', space=vmem, size = 0x4000, scoped, tag = 'input window, operand 4, single buffered']
    #allocation11 [shape = 'u8[16384]{0}', space=vmem, size = 0x4000, scoped, tag = 'input window, operand 5, single buffered']
    #allocation12 [shape = 's32[1]{0}', space=sflag, size = 0x4, scoped, tag = 'scoped memory for tpu_custom_call.1']
    #allocation13 [shape = 'u8[8192]{0}', space=vmem, size = 0x2000, scoped, tag = 'output window, operand 0, single buffered']
    %14 = vsyncpa [#allocation3], 0
    %15 = vsyncpa [#allocation6], 0
    %16 = vsyncpa [#allocation9], 0
    %17 = vsyncpa [#allocation12], 0
    %18 = vsyncpa [#allocation4], 0
    // Predicated region
    $region2: #{tpu_custom_call.1} parent=1 // pred_check
      _
    $region3: #{tpu_custom_call.1} parent=1 // pred_check_branch
      %20 = sbr.rel (0) target = $region5
    $region4: #{tpu_custom_call.1} parent=1 // pred_region
      %s22 = ssub.s32 256, 256
      %23 = vsyncadd [#allocation3], %s22
      %s24 = sshll.u32 [#allocation2], 4
      %s25 = int_to_ptr.vmem [resolvable:$true] %s24
      %30 = dma.hbm_to_vmem [thread:$0]  %s0, 256, %s25, [#allocation3], 128, 128, 8
    $region5: #{tpu_custom_call.1} parent=1 // pred_fallthru
      _
    // Predicated region
    $region6: #{tpu_custom_call.1} parent=1 // pred_check
      _
    $region7: #{tpu_custom_call.1} parent=1 // pred_check_branch
      %32 = sbr.rel (0) target = $region9
    $region8: #{tpu_custom_call.1} parent=1 // pred_region
      %s34 = ssub.s32 256, 256
      %35 = vsyncadd [#allocation6], %s34
      %s36 = sshll.u32 [#allocation5], 4
      %s37 = int_to_ptr.vmem [resolvable:$true] %s36
      %42 = dma.hbm_to_vmem [thread:$0]  %s1, 256, %s37, [#allocation6], 128, 128, 8
    $region9: #{tpu_custom_call.1} parent=1 // pred_fallthru
      _
    // Predicated region
    $region10: #{tpu_custom_call.1} parent=1 // pred_check
      _
    $region11: #{tpu_custom_call.1} parent=1 // pred_check_branch
      %44 = sbr.rel (0) target = $region13
    $region12: #{tpu_custom_call.1} parent=1 // pred_region
      %s46 = ssub.s32 256, 256
      %47 = vsyncadd [#allocation6], %s46
      %s48 = sshll.u32 [#allocation7], 4
      %s49 = int_to_ptr.vmem [resolvable:$true] %s48
      %54 = dma.hbm_to_vmem [thread:$0]  %s2, 256, %s49, [#allocation6], 128, 128, 8
    $region13: #{tpu_custom_call.1} parent=1 // pred_fallthru
      _
    // Predicated region
    $region14: #{tpu_custom_call.1} parent=1 // pred_check
      _
    $region15: #{tpu_custom_call.1} parent=1 // pred_check_branch
      %56 = sbr.rel (0) target = $region17
    $region16: #{tpu_custom_call.1} parent=1 // pred_region
      %s58 = ssub.s32 512, 512
      %59 = vsyncadd [#allocation9], %s58
      %s60 = sshll.u32 [#allocation8], 4
      %s61 = int_to_ptr.vmem [resolvable:$true] %s60
      %66 = dma.hbm_to_vmem [thread:$0]  %s3, 512, %s61, [#allocation9], 128, 128, 8
    $region17: #{tpu_custom_call.1} parent=1 // pred_fallthru
      _
    // Predicated region
    $region18: #{tpu_custom_call.1} parent=1 // pred_check
      _
    $region19: #{tpu_custom_call.1} parent=1 // pred_check_branch
      %68 = sbr.rel (0) target = $region21
    $region20: #{tpu_custom_call.1} parent=1 // pred_region
      %s70 = ssub.s32 512, 512
      %71 = vsyncadd [#allocation9], %s70
      %s72 = sshll.u32 [#allocation10], 4
      %s73 = int_to_ptr.vmem [resolvable:$true] %s72
      %78 = dma.hbm_to_vmem [thread:$0]  %s4, 512, %s73, [#allocation9], 128, 128, 8
    $region21: #{tpu_custom_call.1} parent=1 // pred_fallthru
      _
    // Predicated region
    $region22: #{tpu_custom_call.1} parent=1 // pred_check
      _
    $region23: #{tpu_custom_call.1} parent=1 // pred_check_branch
      %80 = sbr.rel (0) target = $region25
    $region24: #{tpu_custom_call.1} parent=1 // pred_region
      %s82 = ssub.s32 512, 512
      %83 = vsyncadd [#allocation12], %s82
      %s84 = sshll.u32 [#allocation11], 4
      %s85 = int_to_ptr.vmem [resolvable:$true] %s84
      %90 = dma.hbm_to_vmem [thread:$0]  %s5, 512, %s85, [#allocation12], 128, 128, 8
    $region25: #{tpu_custom_call.1} parent=1 // pred_fallthru
      _
    // Predicated region
    $region26: #{tpu_custom_call.1} parent=1 // pred_check
      _
    $region27: #{tpu_custom_call.1} parent=1 // pred_check_branch
      %92 = sbr.rel (0) target = $region29
    $region28: #{tpu_custom_call.1} parent=1 // pred_region
      _
    $region29: #{tpu_custom_call.1} parent=1 // pred_fallthru
      _
    // Predicated region
    $region30: #{tpu_custom_call.1} parent=1 // pred_check
      _
    $region31: #{tpu_custom_call.1} parent=1 // pred_check_branch
      %94 = sbr.rel (0) target = $region33
    $region32: #{tpu_custom_call.1} parent=1 // pred_region
      _
    $region33: #{tpu_custom_call.1} parent=1 // pred_fallthru
      _
    // Predicated region
    $region34: #{tpu_custom_call.1} parent=1 // pred_check
      _
    $region35: #{tpu_custom_call.1} parent=1 // pred_check_branch
      %96 = sbr.rel (0) target = $region37
    $region36: #{tpu_custom_call.1} parent=1 // pred_region
      _
    $region37: #{tpu_custom_call.1} parent=1 // pred_fallthru
      _
    // Predicated region
    $region38: #{tpu_custom_call.1} parent=1 // pred_check
      _
    $region39: #{tpu_custom_call.1} parent=1 // pred_check_branch
      %98 = sbr.rel (0) target = $region41
    $region40: #{tpu_custom_call.1} parent=1 // pred_region
      %99 = dma.done [#allocation3], 256
    $region41: #{tpu_custom_call.1} parent=1 // pred_fallthru
      _
    // Predicated region
    $region42: #{tpu_custom_call.1} parent=1 // pred_check
      _
    $region43: #{tpu_custom_call.1} parent=1 // pred_check_branch
      %101 = sbr.rel (0) target = $region45
    $region44: #{tpu_custom_call.1} parent=1 // pred_region
      %102 = dma.done [#allocation6], 256
    $region45: #{tpu_custom_call.1} parent=1 // pred_fallthru
      _
    // Predicated region
    $region46: #{tpu_custom_call.1} parent=1 // pred_check
      _
    $region47: #{tpu_custom_call.1} parent=1 // pred_check_branch
      %104 = sbr.rel (0) target = $region49
    $region48: #{tpu_custom_call.1} parent=1 // pred_region
      %105 = dma.done [#allocation6], 256
    $region49: #{tpu_custom_call.1} parent=1 // pred_fallthru
      _
    // Predicated region
    $region50: #{tpu_custom_call.1} parent=1 // pred_check
      _
    $region51: #{tpu_custom_call.1} parent=1 // pred_check_branch
      %107 = sbr.rel (0) target = $region53
    $region52: #{tpu_custom_call.1} parent=1 // pred_region
      %108 = dma.done [#allocation9], 512
    $region53: #{tpu_custom_call.1} parent=1 // pred_fallthru
      _
    // Predicated region
    $region54: #{tpu_custom_call.1} parent=1 // pred_check
      _
    $region55: #{tpu_custom_call.1} parent=1 // pred_check_branch
      %110 = sbr.rel (0) target = $region57
    $region56: #{tpu_custom_call.1} parent=1 // pred_region
      %111 = dma.done [#allocation9], 512
    $region57: #{tpu_custom_call.1} parent=1 // pred_fallthru
      _
    // Predicated region
    $region58: #{tpu_custom_call.1} parent=1 // pred_check
      _
    $region59: #{tpu_custom_call.1} parent=1 // pred_check_branch
      %113 = sbr.rel (0) target = $region61
    $region60: #{tpu_custom_call.1} parent=1 // pred_region
      %114 = dma.done [#allocation12], 512
    $region61: #{tpu_custom_call.1} parent=1 // pred_fallthru
      _
    %v115 = vld [vmem:[#allocation2] sm:$0xff]
    %v116 = vld [vmem:[#allocation2 + $0x8] sm:$0xff]
    %v117 = vld [vmem:[#allocation8] sm:$0xff]
    %v118 = vld [vmem:[#allocation8 + $0x8] sm:$0xff]
    %v119 = vld [vmem:[#allocation8 + $0x10] sm:$0xff]
    %v120 = vld [vmem:[#allocation8 + $0x18] sm:$0xff]
    %v121 = vld [vmem:[%s6] sm:$0x1]
    %v123 = vlaneseq
    %v124 = vshrl.u32 %v123, 7
    %v125 = vsub.s32 0, %v124
    %v126 = vrot.slane %v121, %v125
    %vm128 = vcmask 261120
    %v130 = vsel %vm128, %v115, 0
    %v133 = vsel %vm128, %v116, 0
    %135 = vmatprep.subr.mxu0 0.0
    %136 = vmatpush1.msra.mxu0 %v117
    %137 = vmatprep.subr.mxu0 0.0
    %138 = vmatpush1.msra.mxu0 %v118
    %139 = vmatprep.subr.mxu0 0.0
    %140 = vmatpush1.msra.mxu0 %v119
    %141 = vmatprep.subr.mxu0 0.0
    %142 = vmatpush1.msra.mxu0 %v120
    %143 = vmatprep.subr.mxu0 0.0
    %144 = vmatpush1.msra.mxu0 0.0
    %145 = vmatprep.subr.mxu0 0.0
    %146 = vmatpush1.msra.mxu0 0.0
    %147 = vmatprep.subr.mxu0 0.0
    %148 = vmatpush1.msra.mxu0 0.0
    %149 = vmatprep.subr.mxu0 0.0
    %150 = vmatpush1.msra.mxu0 0.0
    %151 = vmatprep.subr.mxu0 0.0
    %152 = vmatpush1.msra.mxu0 0.0
    %153 = vmatprep.subr.mxu0 0.0
    %154 = vmatpush1.msra.mxu0 0.0
    %155 = vmatprep.subr.mxu0 0.0
    %156 = vmatpush1.msra.mxu0 0.0
    %157 = vmatprep.subr.mxu0 0.0
    %158 = vmatpush1.msra.mxu0 0.0
    %159 = vmatprep.subr.mxu0 0.0
    %160 = vmatpush1.msra.mxu0 0.0
    %161 = vmatprep.subr.mxu0 0.0
    %162 = vmatpush1.msra.mxu0 0.0
    %163 = vmatprep.subr.mxu0 0.0
    %164 = vmatpush1.msra.mxu0 0.0
    %165 = vmatprep.subr.mxu0 0.0
    %166 = vmatpush1.msra.mxu0 0.0
    %167 = vmatprep.subr.mxu0 0.0
    %168 = vmatpush1.msra.mxu0 0.0
    %169 = vmatprep.subr.mxu0 0.0
    %170 = vmatpush1.msra.mxu0 0.0
    %171 = vmatprep.subr.mxu0 0.0
    %172 = vmatpush1.msra.mxu0 0.0
    %173 = vmatprep.subr.mxu0 0.0
    %174 = vmatpush1.msra.mxu0 0.0
    %175 = vmatprep.subr.mxu0 0.0
    %176 = vmatpush1.msra.mxu0 0.0
    %177 = vmatprep.subr.mxu0 0.0
    %178 = vmatpush1.msra.mxu0 0.0
    %179 = vmatprep.subr.mxu0 0.0
    %180 = vmatpush1.msra.mxu0 0.0
    %181 = vmatprep.subr.mxu0 0.0
    %182 = vmatpush1.msra.mxu0 0.0
    %183 = vmatprep.subr.mxu0 0.0
    %184 = vmatpush1.msra.mxu0 0.0
    %185 = vmatprep.subr.mxu0 0.0
    %186 = vmatpush1.msra.mxu0 0.0
    %187 = vmatprep.subr.mxu0 0.0
    %188 = vmatpush1.msra.mxu0 0.0
    %189 = vmatprep.subr.mxu0 0.0
    %190 = vmatpush1.msra.mxu0 0.0
    %191 = vmatprep.subr.mxu0 0.0
    %192 = vmatpush1.msra.mxu0 0.0
    %193 = vmatprep.subr.mxu0 0.0
    %194 = vmatpush1.msra.mxu0 0.0
    %195 = vmatprep.subr.mxu0 0.0
    %196 = vmatpush1.msra.mxu0 0.0
    %197 = vmatprep.subr.mxu0 0.0
    %198 = vmatpush1.msra.mxu0 0.0
    %199 = vmatprep.mubr.f32.mxu0 0.0
    %200 = vmatmul.mubr.f32.gmra.mrb[0].mxu0 %v130
    %v201 = vpop.f32.mrb[0].mxu0
    %v202 = vadd.f32 %v126, %v201
    %v203 = vpop.f32.mrb[0].mxu0
    %204 = vmatprep.mubr.f32.mxu0 0.0
    %205 = vmatmul.mubr.f32.gmra.mrb[0].mxu0 %v133
    %v206 = vpop.f32.mrb[0].mxu0
    %v207 = vadd.f32 %v126, %v206
    %v208 = vpop.f32.mrb[0].mxu0
    %209 = vdwg.mxu0
    %v210 = vld [vmem:[#allocation5] sm:$0xff]
    %v211 = vld [vmem:[#allocation5 + $0x8] sm:$0xff]
    %v212 = vld [vmem:[#allocation10] sm:$0xff]
    %v213 = vld [vmem:[#allocation10 + $0x8] sm:$0xff]
    %v214 = vld [vmem:[#allocation10 + $0x10] sm:$0xff]
    %v215 = vld [vmem:[#allocation10 + $0x18] sm:$0xff]
    %v216 = vld [vmem:[%s7] sm:$0x1]
    %v218 = vlaneseq
    %v219 = vshrl.u32 %v218, 7
    %v220 = vsub.s32 0, %v219
    %v221 = vrot.slane %v216, %v220
    %v224 = vsel %vm128, %v210, 0
    %v227 = vsel %vm128, %v211, 0
    %229 = vmatprep.subr.mxu0 0.0
    %230 = vmatpush1.msra.mxu0 %v212
    %231 = vmatprep.subr.mxu0 0.0
    %232 = vmatpush1.msra.mxu0 %v213
    %233 = vmatprep.subr.mxu0 0.0
    %234 = vmatpush1.msra.mxu0 %v214
    %235 = vmatprep.subr.mxu0 0.0
    %236 = vmatpush1.msra.mxu0 %v215
    %237 = vmatprep.subr.mxu0 0.0
    %238 = vmatpush1.msra.mxu0 0.0
    %239 = vmatprep.subr.mxu0 0.0
    %240 = vmatpush1.msra.mxu0 0.0
    %241 = vmatprep.subr.mxu0 0.0
    %242 = vmatpush1.msra.mxu0 0.0
    %243 = vmatprep.subr.mxu0 0.0
    %244 = vmatpush1.msra.mxu0 0.0
    %245 = vmatprep.subr.mxu0 0.0
    %246 = vmatpush1.msra.mxu0 0.0
    %247 = vmatprep.subr.mxu0 0.0
    %248 = vmatpush1.msra.mxu0 0.0
    %249 = vmatprep.subr.mxu0 0.0
    %250 = vmatpush1.msra.mxu0 0.0
    %251 = vmatprep.subr.mxu0 0.0
    %252 = vmatpush1.msra.mxu0 0.0
    %253 = vmatprep.subr.mxu0 0.0
    %254 = vmatpush1.msra.mxu0 0.0
    %255 = vmatprep.subr.mxu0 0.0
    %256 = vmatpush1.msra.mxu0 0.0
    %257 = vmatprep.subr.mxu0 0.0
    %258 = vmatpush1.msra.mxu0 0.0
    %259 = vmatprep.subr.mxu0 0.0
    %260 = vmatpush1.msra.mxu0 0.0
    %261 = vmatprep.subr.mxu0 0.0
    %262 = vmatpush1.msra.mxu0 0.0
    %263 = vmatprep.subr.mxu0 0.0
    %264 = vmatpush1.msra.mxu0 0.0
    %265 = vmatprep.subr.mxu0 0.0
    %266 = vmatpush1.msra.mxu0 0.0
    %267 = vmatprep.subr.mxu0 0.0
    %268 = vmatpush1.msra.mxu0 0.0
    %269 = vmatprep.subr.mxu0 0.0
    %270 = vmatpush1.msra.mxu0 0.0
    %271 = vmatprep.subr.mxu0 0.0
    %272 = vmatpush1.msra.mxu0 0.0
    %273 = vmatprep.subr.mxu0 0.0
    %274 = vmatpush1.msra.mxu0 0.0
    %275 = vmatprep.subr.mxu0 0.0
    %276 = vmatpush1.msra.mxu0 0.0
    %277 = vmatprep.subr.mxu0 0.0
    %278 = vmatpush1.msra.mxu0 0.0
    %279 = vmatprep.subr.mxu0 0.0
    %280 = vmatpush1.msra.mxu0 0.0
    %281 = vmatprep.subr.mxu0 0.0
    %282 = vmatpush1.msra.mxu0 0.0
    %283 = vmatprep.subr.mxu0 0.0
    %284 = vmatpush1.msra.mxu0 0.0
    %285 = vmatprep.subr.mxu0 0.0
    %286 = vmatpush1.msra.mxu0 0.0
    %287 = vmatprep.subr.mxu0 0.0
    %288 = vmatpush1.msra.mxu0 0.0
    %289 = vmatprep.subr.mxu0 0.0
    %290 = vmatpush1.msra.mxu0 0.0
    %291 = vmatprep.subr.mxu0 0.0
    %292 = vmatpush1.msra.mxu0 0.0
    %293 = vmatprep.mubr.f32.mxu0 0.0
    %294 = vmatmul.mubr.f32.gmra.mrb[0].mxu0 %v224
    %v295 = vpop.f32.mrb[0].mxu0
    %v296 = vadd.f32 %v221, %v295
    %v297 = vpop.f32.mrb[0].mxu0
    %298 = vmatprep.mubr.f32.mxu0 0.0
    %299 = vmatmul.mubr.f32.gmra.mrb[0].mxu0 %v227
    %v300 = vpop.f32.mrb[0].mxu0
    %v301 = vadd.f32 %v221, %v300
    %v302 = vpop.f32.mrb[0].mxu0
    %303 = vdwg.mxu0
    %v304 = vld [vmem:[#allocation7] sm:$0xff]
    %v305 = vld [vmem:[#allocation7 + $0x8] sm:$0xff]
    %v306 = vld [vmem:[#allocation11] sm:$0xff]
    %v307 = vld [vmem:[#allocation11 + $0x8] sm:$0xff]
    %v308 = vld [vmem:[#allocation11 + $0x10] sm:$0xff]
    %v309 = vld [vmem:[#allocation11 + $0x18] sm:$0xff]
    %v310 = vld [vmem:[%s8] sm:$0x1]
    %v312 = vlaneseq
    %v313 = vshrl.u32 %v312, 7
    %v314 = vsub.s32 0, %v313
    %v315 = vrot.slane %v310, %v314
    %v318 = vsel %vm128, %v304, 0
    %v321 = vsel %vm128, %v305, 0
    %323 = vmatprep.subr.mxu0 0.0
    %324 = vmatpush1.msra.mxu0 %v306
    %325 = vmatprep.subr.mxu0 0.0
    %326 = vmatpush1.msra.mxu0 %v307
    %327 = vmatprep.subr.mxu0 0.0
    %328 = vmatpush1.msra.mxu0 %v308
    %329 = vmatprep.subr.mxu0 0.0
    %330 = vmatpush1.msra.mxu0 %v309
    %331 = vmatprep.subr.mxu0 0.0
    %332 = vmatpush1.msra.mxu0 0.0
    %333 = vmatprep.subr.mxu0 0.0
    %334 = vmatpush1.msra.mxu0 0.0
    %335 = vmatprep.subr.mxu0 0.0
    %336 = vmatpush1.msra.mxu0 0.0
    %337 = vmatprep.subr.mxu0 0.0
    %338 = vmatpush1.msra.mxu0 0.0
    %339 = vmatprep.subr.mxu0 0.0
    %340 = vmatpush1.msra.mxu0 0.0
    %341 = vmatprep.subr.mxu0 0.0
    %342 = vmatpush1.msra.mxu0 0.0
    %343 = vmatprep.subr.mxu0 0.0
    %344 = vmatpush1.msra.mxu0 0.0
    %345 = vmatprep.subr.mxu0 0.0
    %346 = vmatpush1.msra.mxu0 0.0
    %347 = vmatprep.subr.mxu0 0.0
    %348 = vmatpush1.msra.mxu0 0.0
    %349 = vmatprep.subr.mxu0 0.0
    %350 = vmatpush1.msra.mxu0 0.0
    %351 = vmatprep.subr.mxu0 0.0
    %352 = vmatpush1.msra.mxu0 0.0
    %353 = vmatprep.subr.mxu0 0.0
    %354 = vmatpush1.msra.mxu0 0.0
    %355 = vmatprep.subr.mxu0 0.0
    %356 = vmatpush1.msra.mxu0 0.0
    %357 = vmatprep.subr.mxu0 0.0
    %358 = vmatpush1.msra.mxu0 0.0
    %359 = vmatprep.subr.mxu0 0.0
    %360 = vmatpush1.msra.mxu0 0.0
    %361 = vmatprep.subr.mxu0 0.0
    %362 = vmatpush1.msra.mxu0 0.0
    %363 = vmatprep.subr.mxu0 0.0
    %364 = vmatpush1.msra.mxu0 0.0
    %365 = vmatprep.subr.mxu0 0.0
    %366 = vmatpush1.msra.mxu0 0.0
    %367 = vmatprep.subr.mxu0 0.0
    %368 = vmatpush1.msra.mxu0 0.0
    %369 = vmatprep.subr.mxu0 0.0
    %370 = vmatpush1.msra.mxu0 0.0
    %371 = vmatprep.subr.mxu0 0.0
    %372 = vmatpush1.msra.mxu0 0.0
    %373 = vmatprep.subr.mxu0 0.0
    %374 = vmatpush1.msra.mxu0 0.0
    %375 = vmatprep.subr.mxu0 0.0
    %376 = vmatpush1.msra.mxu0 0.0
    %377 = vmatprep.subr.mxu0 0.0
    %378 = vmatpush1.msra.mxu0 0.0
    %379 = vmatprep.subr.mxu0 0.0
    %380 = vmatpush1.msra.mxu0 0.0
    %381 = vmatprep.subr.mxu0 0.0
    %382 = vmatpush1.msra.mxu0 0.0
    %383 = vmatprep.subr.mxu0 0.0
    %384 = vmatpush1.msra.mxu0 0.0
    %385 = vmatprep.subr.mxu0 0.0
    %386 = vmatpush1.msra.mxu0 0.0
    %387 = vmatprep.mubr.f32.mxu0 0.0
    %388 = vmatmul.mubr.f32.gmra.mrb[0].mxu0 %v318
    %v389 = vpop.f32.mrb[0].mxu0
    %v390 = vadd.f32 %v315, %v389
    %v391 = vpop.f32.mrb[0].mxu0
    %392 = vmatprep.mubr.f32.mxu0 0.0
    %393 = vmatmul.mubr.f32.gmra.mrb[0].mxu0 %v321
    %v394 = vpop.f32.mrb[0].mxu0
    %v395 = vadd.f32 %v315, %v394
    %v396 = vpop.f32.mrb[0].mxu0
    %397 = vdwg.mxu0
    %v399 = vsel %vm128, %v202, 0
    %v402 = vsel %vm128, %v296, 0
    %404 = vmatprep.subr.mxu0 0.0
    %405 = vmatpush1.xpose.msra.mxu0 %v402
    %406 = vmatprep.subr.mxu0 0.0
    %407 = vmatpush1.xpose.msra.mxu0 0.0
    %408 = vmatprep.subr.mxu0 0.0
    %409 = vmatpush1.xpose.msra.mxu0 0.0
    %410 = vmatprep.subr.mxu0 0.0
    %411 = vmatpush1.xpose.msra.mxu0 0.0
    %412 = vmatprep.subr.mxu0 0.0
    %413 = vmatpush1.xpose.msra.mxu0 0.0
    %414 = vmatprep.subr.mxu0 0.0
    %415 = vmatpush1.xpose.msra.mxu0 0.0
    %416 = vmatprep.subr.mxu0 0.0
    %417 = vmatpush1.xpose.msra.mxu0 0.0
    %418 = vmatprep.subr.mxu0 0.0
    %419 = vmatpush1.xpose.msra.mxu0 0.0
    %420 = vmatprep.subr.mxu0 0.0
    %421 = vmatpush1.xpose.msra.mxu0 0.0
    %422 = vmatprep.subr.mxu0 0.0
    %423 = vmatpush1.xpose.msra.mxu0 0.0
    %424 = vmatprep.subr.mxu0 0.0
    %425 = vmatpush1.xpose.msra.mxu0 0.0
    %426 = vmatprep.subr.mxu0 0.0
    %427 = vmatpush1.xpose.msra.mxu0 0.0
    %428 = vmatprep.subr.mxu0 0.0
    %429 = vmatpush1.xpose.msra.mxu0 0.0
    %430 = vmatprep.subr.mxu0 0.0
    %431 = vmatpush1.xpose.msra.mxu0 0.0
    %432 = vmatprep.subr.mxu0 0.0
    %433 = vmatpush1.xpose.msra.mxu0 0.0
    %434 = vmatprep.subr.mxu0 0.0
    %435 = vmatpush1.xpose.msra.mxu0 0.0
    %436 = vmatprep.subr.mxu0 0.0
    %437 = vmatpush1.xpose.msra.mxu0 0.0
    %438 = vmatprep.subr.mxu0 0.0
    %439 = vmatpush1.xpose.msra.mxu0 0.0
    %440 = vmatprep.subr.mxu0 0.0
    %441 = vmatpush1.xpose.msra.mxu0 0.0
    %442 = vmatprep.subr.mxu0 0.0
    %443 = vmatpush1.xpose.msra.mxu0 0.0
    %444 = vmatprep.subr.mxu0 0.0
    %445 = vmatpush1.xpose.msra.mxu0 0.0
    %446 = vmatprep.subr.mxu0 0.0
    %447 = vmatpush1.xpose.msra.mxu0 0.0
    %448 = vmatprep.subr.mxu0 0.0
    %449 = vmatpush1.xpose.msra.mxu0 0.0
    %450 = vmatprep.subr.mxu0 0.0
    %451 = vmatpush1.xpose.msra.mxu0 0.0
    %452 = vmatprep.subr.mxu0 0.0
    %453 = vmatpush1.xpose.msra.mxu0 0.0
    %454 = vmatprep.subr.mxu0 0.0
    %455 = vmatpush1.xpose.msra.mxu0 0.0
    %456 = vmatprep.subr.mxu0 0.0
    %457 = vmatpush1.xpose.msra.mxu0 0.0
    %458 = vmatprep.subr.mxu0 0.0
    %459 = vmatpush1.xpose.msra.mxu0 0.0
    %460 = vmatprep.subr.mxu0 0.0
    %461 = vmatpush1.xpose.msra.mxu0 0.0
    %462 = vmatprep.subr.mxu0 0.0
    %463 = vmatpush1.xpose.msra.mxu0 0.0
    %464 = vmatprep.subr.mxu0 0.0
    %465 = vmatpush1.xpose.msra.mxu0 0.0
    %466 = vmatprep.subr.mxu0 0.0
    %467 = vmatpush1.xpose.msra.mxu0 0.0
    %468 = vmatprep.mubr.f32.mxu0 0.0
    %469 = vmatmul.mubr.f32.gmra.mrb[0].mxu0 %v399
    %v470 = vpop.f32.mrb[0].mxu0
    %v471 = vadd.f32 0.0, %v470
    %v472 = vpop.f32.mrb[0].mxu0
    %473 = vdwg.mxu0
    %v475 = vsel %vm128, %v207, 0
    %v478 = vsel %vm128, %v301, 0
    %480 = vmatprep.subr.mxu0 0.0
    %481 = vmatpush1.xpose.msra.mxu0 %v478
    %482 = vmatprep.subr.mxu0 0.0
    %483 = vmatpush1.xpose.msra.mxu0 0.0
    %484 = vmatprep.subr.mxu0 0.0
    %485 = vmatpush1.xpose.msra.mxu0 0.0
    %486 = vmatprep.subr.mxu0 0.0
    %487 = vmatpush1.xpose.msra.mxu0 0.0
    %488 = vmatprep.subr.mxu0 0.0
    %489 = vmatpush1.xpose.msra.mxu0 0.0
    %490 = vmatprep.subr.mxu0 0.0
    %491 = vmatpush1.xpose.msra.mxu0 0.0
    %492 = vmatprep.subr.mxu0 0.0
    %493 = vmatpush1.xpose.msra.mxu0 0.0
    %494 = vmatprep.subr.mxu0 0.0
    %495 = vmatpush1.xpose.msra.mxu0 0.0
    %496 = vmatprep.subr.mxu0 0.0
    %497 = vmatpush1.xpose.msra.mxu0 0.0
    %498 = vmatprep.subr.mxu0 0.0
    %499 = vmatpush1.xpose.msra.mxu0 0.0
    %500 = vmatprep.subr.mxu0 0.0
    %501 = vmatpush1.xpose.msra.mxu0 0.0
    %502 = vmatprep.subr.mxu0 0.0
    %503 = vmatpush1.xpose.msra.mxu0 0.0
    %504 = vmatprep.subr.mxu0 0.0
    %505 = vmatpush1.xpose.msra.mxu0 0.0
    %506 = vmatprep.subr.mxu0 0.0
    %507 = vmatpush1.xpose.msra.mxu0 0.0
    %508 = vmatprep.subr.mxu0 0.0
    %509 = vmatpush1.xpose.msra.mxu0 0.0
    %510 = vmatprep.subr.mxu0 0.0
    %511 = vmatpush1.xpose.msra.mxu0 0.0
    %512 = vmatprep.subr.mxu0 0.0
    %513 = vmatpush1.xpose.msra.mxu0 0.0
    %514 = vmatprep.subr.mxu0 0.0
    %515 = vmatpush1.xpose.msra.mxu0 0.0
    %516 = vmatprep.subr.mxu0 0.0
    %517 = vmatpush1.xpose.msra.mxu0 0.0
    %518 = vmatprep.subr.mxu0 0.0
    %519 = vmatpush1.xpose.msra.mxu0 0.0
    %520 = vmatprep.subr.mxu0 0.0
    %521 = vmatpush1.xpose.msra.mxu0 0.0
    %522 = vmatprep.subr.mxu0 0.0
    %523 = vmatpush1.xpose.msra.mxu0 0.0
    %524 = vmatprep.subr.mxu0 0.0
    %525 = vmatpush1.xpose.msra.mxu0 0.0
    %526 = vmatprep.subr.mxu0 0.0
    %527 = vmatpush1.xpose.msra.mxu0 0.0
    %528 = vmatprep.subr.mxu0 0.0
    %529 = vmatpush1.xpose.msra.mxu0 0.0
    %530 = vmatprep.subr.mxu0 0.0
    %531 = vmatpush1.xpose.msra.mxu0 0.0
    %532 = vmatprep.subr.mxu0 0.0
    %533 = vmatpush1.xpose.msra.mxu0 0.0
    %534 = vmatprep.subr.mxu0 0.0
    %535 = vmatpush1.xpose.msra.mxu0 0.0
    %536 = vmatprep.subr.mxu0 0.0
    %537 = vmatpush1.xpose.msra.mxu0 0.0
    %538 = vmatprep.subr.mxu0 0.0
    %539 = vmatpush1.xpose.msra.mxu0 0.0
    %540 = vmatprep.subr.mxu0 0.0
    %541 = vmatpush1.xpose.msra.mxu0 0.0
    %542 = vmatprep.subr.mxu0 0.0
    %543 = vmatpush1.xpose.msra.mxu0 0.0
    %544 = vmatprep.mubr.f32.mxu0 0.0
    %545 = vmatmul.mubr.f32.gmra.mrb[0].mxu0 %v475
    %v546 = vpop.f32.mrb[0].mxu0
    %v547 = vadd.f32 0.0, %v546
    %v548 = vpop.f32.mrb[0].mxu0
    %549 = vdwg.mxu0
    %vm550 = vcmask 64512
    %v551 = vsel %vm550, %v471, -inf
    %552 = vmax.xlane.f32.xlu0 %v551
    %v553 = vpop.xlane.xlu0 %552
    %v554 = vsel %vm550, %v547, -inf
    %555 = vmax.xlane.f32.xlu0 %v554
    %v556 = vpop.xlane.xlu0 %555
    %v557 = vsub.f32 %v471, %v553
    %v558 = vsub.f32 %v547, %v556
    %v559 = vmul.f32 %v557, 1.442695
    %v560 = vpow.pop %v559
    %v561 = vmul.f32 %v558, 1.442695
    %v562 = vpow.pop %v561
    %v563 = vsel %vm550, %v560, 0.0
    %564 = vadd.xlane.f32.xlu0 %v563
    %v565 = vpop.xlane.xlu0 %564
    %v566 = vsel %vm550, %v562, 0.0
    %567 = vadd.xlane.f32.xlu0 %v566
    %v568 = vpop.xlane.xlu0 %567
    %v569 = vrcp.pop %v565
    %v570 = vrcp.pop %v568
    %v571 = vmul.f32 %v565, %v569
    %v572 = vmul.f32 %v568, %v570
    %v573 = vsub.f32 2.0, %v571
    %v574 = vsub.f32 2.0, %v572
    %v575 = vmul.f32 %v569, %v573
    %v576 = vmul.f32 %v570, %v574
    %v577 = vmul.f32 %v560, %v575
    %v578 = vmul.f32 %v562, %v576
    %v580 = vsel %vm550, %v577, 0
    %582 = vmatprep.subr.mxu0 0.0
    %583 = vmatpush1.msra.mxu0 %v390
    %584 = vmatprep.subr.mxu0 0.0
    %585 = vmatpush1.msra.mxu0 0.0
    %586 = vmatprep.subr.mxu0 0.0
    %587 = vmatpush1.msra.mxu0 0.0
    %588 = vmatprep.subr.mxu0 0.0
    %589 = vmatpush1.msra.mxu0 0.0
    %590 = vmatprep.subr.mxu0 0.0
    %591 = vmatpush1.msra.mxu0 0.0
    %592 = vmatprep.subr.mxu0 0.0
    %593 = vmatpush1.msra.mxu0 0.0
    %594 = vmatprep.subr.mxu0 0.0
    %595 = vmatpush1.msra.mxu0 0.0
    %596 = vmatprep.subr.mxu0 0.0
    %597 = vmatpush1.msra.mxu0 0.0
    %598 = vmatprep.subr.mxu0 0.0
    %599 = vmatpush1.msra.mxu0 0.0
    %600 = vmatprep.subr.mxu0 0.0
    %601 = vmatpush1.msra.mxu0 0.0
    %602 = vmatprep.subr.mxu0 0.0
    %603 = vmatpush1.msra.mxu0 0.0
    %604 = vmatprep.subr.mxu0 0.0
    %605 = vmatpush1.msra.mxu0 0.0
    %606 = vmatprep.subr.mxu0 0.0
    %607 = vmatpush1.msra.mxu0 0.0
    %608 = vmatprep.subr.mxu0 0.0
    %609 = vmatpush1.msra.mxu0 0.0
    %610 = vmatprep.subr.mxu0 0.0
    %611 = vmatpush1.msra.mxu0 0.0
    %612 = vmatprep.subr.mxu0 0.0
    %613 = vmatpush1.msra.mxu0 0.0
    %614 = vmatprep.subr.mxu0 0.0
    %615 = vmatpush1.msra.mxu0 0.0
    %616 = vmatprep.subr.mxu0 0.0
    %617 = vmatpush1.msra.mxu0 0.0
    %618 = vmatprep.subr.mxu0 0.0
    %619 = vmatpush1.msra.mxu0 0.0
    %620 = vmatprep.subr.mxu0 0.0
    %621 = vmatpush1.msra.mxu0 0.0
    %622 = vmatprep.subr.mxu0 0.0
    %623 = vmatpush1.msra.mxu0 0.0
    %624 = vmatprep.subr.mxu0 0.0
    %625 = vmatpush1.msra.mxu0 0.0
    %626 = vmatprep.subr.mxu0 0.0
    %627 = vmatpush1.msra.mxu0 0.0
    %628 = vmatprep.subr.mxu0 0.0
    %629 = vmatpush1.msra.mxu0 0.0
    %630 = vmatprep.subr.mxu0 0.0
    %631 = vmatpush1.msra.mxu0 0.0
    %632 = vmatprep.subr.mxu0 0.0
    %633 = vmatpush1.msra.mxu0 0.0
    %634 = vmatprep.subr.mxu0 0.0
    %635 = vmatpush1.msra.mxu0 0.0
    %636 = vmatprep.subr.mxu0 0.0
    %637 = vmatpush1.msra.mxu0 0.0
    %638 = vmatprep.subr.mxu0 0.0
    %639 = vmatpush1.msra.mxu0 0.0
    %640 = vmatprep.subr.mxu0 0.0
    %641 = vmatpush1.msra.mxu0 0.0
    %642 = vmatprep.subr.mxu0 0.0
    %643 = vmatpush1.msra.mxu0 0.0
    %644 = vmatprep.subr.mxu0 0.0
    %645 = vmatpush1.msra.mxu0 0.0
    %646 = vmatprep.mubr.f32.mxu0 0.0
    %647 = vmatmul.mubr.f32.gmra.mrb[0].mxu0 %v580
    %v648 = vpop.f32.mrb[0].mxu0
    %v649 = vadd.f32 0.0, %v648
    %v650 = vpop.f32.mrb[0].mxu0
    %651 = vdwg.mxu0
    %v653 = vsel %vm550, %v578, 0
    %655 = vmatprep.subr.mxu0 0.0
    %656 = vmatpush1.msra.mxu0 %v395
    %657 = vmatprep.subr.mxu0 0.0
    %658 = vmatpush1.msra.mxu0 0.0
    %659 = vmatprep.subr.mxu0 0.0
    %660 = vmatpush1.msra.mxu0 0.0
    %661 = vmatprep.subr.mxu0 0.0
    %662 = vmatpush1.msra.mxu0 0.0
    %663 = vmatprep.subr.mxu0 0.0
    %664 = vmatpush1.msra.mxu0 0.0
    %665 = vmatprep.subr.mxu0 0.0
    %666 = vmatpush1.msra.mxu0 0.0
    %667 = vmatprep.subr.mxu0 0.0
    %668 = vmatpush1.msra.mxu0 0.0
    %669 = vmatprep.subr.mxu0 0.0
    %670 = vmatpush1.msra.mxu0 0.0
    %671 = vmatprep.subr.mxu0 0.0
    %672 = vmatpush1.msra.mxu0 0.0
    %673 = vmatprep.subr.mxu0 0.0
    %674 = vmatpush1.msra.mxu0 0.0
    %675 = vmatprep.subr.mxu0 0.0
    %676 = vmatpush1.msra.mxu0 0.0
    %677 = vmatprep.subr.mxu0 0.0
    %678 = vmatpush1.msra.mxu0 0.0
    %679 = vmatprep.subr.mxu0 0.0
    %680 = vmatpush1.msra.mxu0 0.0
    %681 = vmatprep.subr.mxu0 0.0
    %682 = vmatpush1.msra.mxu0 0.0
    %683 = vmatprep.subr.mxu0 0.0
    %684 = vmatpush1.msra.mxu0 0.0
    %685 = vmatprep.subr.mxu0 0.0
    %686 = vmatpush1.msra.mxu0 0.0
    %687 = vmatprep.subr.mxu0 0.0
    %688 = vmatpush1.msra.mxu0 0.0
    %689 = vmatprep.subr.mxu0 0.0
    %690 = vmatpush1.msra.mxu0 0.0
    %691 = vmatprep.subr.mxu0 0.0
    %692 = vmatpush1.msra.mxu0 0.0
    %693 = vmatprep.subr.mxu0 0.0
    %694 = vmatpush1.msra.mxu0 0.0
    %695 = vmatprep.subr.mxu0 0.0
    %696 = vmatpush1.msra.mxu0 0.0
    %697 = vmatprep.subr.mxu0 0.0
    %698 = vmatpush1.msra.mxu0 0.0
    %699 = vmatprep.subr.mxu0 0.0
    %700 = vmatpush1.msra.mxu0 0.0
    %701 = vmatprep.subr.mxu0 0.0
    %702 = vmatpush1.msra.mxu0 0.0
    %703 = vmatprep.subr.mxu0 0.0
    %704 = vmatpush1.msra.mxu0 0.0
    %705 = vmatprep.subr.mxu0 0.0
    %706 = vmatpush1.msra.mxu0 0.0
    %707 = vmatprep.subr.mxu0 0.0
    %708 = vmatpush1.msra.mxu0 0.0
    %709 = vmatprep.subr.mxu0 0.0
    %710 = vmatpush1.msra.mxu0 0.0
    %711 = vmatprep.subr.mxu0 0.0
    %712 = vmatpush1.msra.mxu0 0.0
    %713 = vmatprep.subr.mxu0 0.0
    %714 = vmatpush1.msra.mxu0 0.0
    %715 = vmatprep.subr.mxu0 0.0
    %716 = vmatpush1.msra.mxu0 0.0
    %717 = vmatprep.subr.mxu0 0.0
    %718 = vmatpush1.msra.mxu0 0.0
    %719 = vmatprep.mubr.f32.mxu0 0.0
    %720 = vmatmul.mubr.f32.gmra.mrb[0].mxu0 %v653
    %v721 = vpop.f32.mrb[0].mxu0
    %v722 = vadd.f32 0.0, %v721
    %v723 = vpop.f32.mrb[0].mxu0
    %724 = vdwg.mxu0
    %725 = vst.msk [vmem:[#allocation13] sm:$0xff] %vm128, %v649
    %726 = vst.msk [vmem:[#allocation13 + $0x8] sm:$0xff] %vm128, %v722
    // Predicated region
    $region62: #{tpu_custom_call.1} parent=1 // pred_check
      _
    $region63: #{tpu_custom_call.1} parent=1 // pred_check_branch
      %728 = sbr.rel (0) target = $region65
    $region64: #{tpu_custom_call.1} parent=1 // pred_region
      %s730 = ssub.s32 256, 256
      %731 = vsyncadd [#allocation4], %s730
      %s732 = sshll.u32 [#allocation13], 4
      %s733 = int_to_ptr.vmem [resolvable:$true] %s732
      %738 = dma.vmem_to_hbm [thread:$0]  %s733, 256, %s9, [#allocation4], 128, 128, 8
    $region65: #{tpu_custom_call.1} parent=1 // pred_fallthru
      _
    // Predicated region
    $region66: #{tpu_custom_call.1} parent=1 // pred_check
      _
    $region67: #{tpu_custom_call.1} parent=1 // pred_check_branch
      %740 = sbr.rel (0) target = $region69
    $region68: #{tpu_custom_call.1} parent=1 // pred_region
      %741 = dma.done [#allocation4], 256
    $region69: #{tpu_custom_call.1} parent=1 // pred_fallthru
      _
    %742 = vsyncpa [#allocation3], 1
    %743 = vsyncpa [#allocation6], 1
    %744 = vsyncpa [#allocation9], 1
    %745 = vsyncpa [#allocation12], 1
    %746 = vsyncpa [#allocation4], 1

</llo_original>
